<compile_context>
chip_gen: v7x
topology: tpu7x:2x2x1
jax: 0.10.0
libtpu: 0.0.40
codegen_flags: <defaults>
</compile_context>

<pallas_src>
import jax
import jax.numpy as jnp
import numpy as np
from jax.experimental import pallas as pl
from jax.experimental.pallas import tpu as pltpu

NEG_SLOPE = 0.01       # F.leaky_relu default negative_slope
PAD_NEG = -1e30        # bias value for padded fc4 columns (exp underflows to 0)
OUT_DIM = 102
PAD_OUT = 128          # lane-dense padded fc4 width


def _leaky_relu(z):
    return jnp.where(z > 0, z, NEG_SLOPE * z)


# ---------------------------------------------------------------------------
# Fused kernel: fc1 (K-tiled, bf16 weights, f32 accum) + tail under pl.when
# ---------------------------------------------------------------------------
def _mlp_kernel(x_ref, w1_ref, b1_ref, w2_ref, b2_ref, w3_ref, b3_ref,
                w4_ref, b4_ref, o_ref, acc_ref):
    k = pl.program_id(0)

    @pl.when(k == 0)
    def _():
        acc_ref[...] = jnp.zeros_like(acc_ref)

    # bf16 x bf16 -> f32 accumulation on the MXU.
    acc_ref[...] += jnp.dot(
        x_ref[...], w1_ref[...], preferred_element_type=jnp.float32
    )

    @pl.when(k == pl.num_programs(0) - 1)
    def _():
        # fc1 epilogue
        h = _leaky_relu(acc_ref[...] + b1_ref[...])
        # dropout(p=0.35) -> identity in eval mode
        # fc2
        h = _leaky_relu(
            jnp.dot(h, w2_ref[...], preferred_element_type=jnp.float32)
            + b2_ref[...]
        )
        # fc3
        h = _leaky_relu(
            jnp.dot(h, w3_ref[...], preferred_element_type=jnp.float32)
            + b3_ref[...]
        )
        # fc4 (padded to 128 lanes; pad bias ~ -1e30 vanishes in log_softmax)
        z = (
            jnp.dot(h, w4_ref[...], preferred_element_type=jnp.float32)
            + b4_ref[...]
        )
        m = jnp.max(z, axis=-1, keepdims=True)
        s = z - m
        lse = jnp.log(jnp.sum(jnp.exp(s), axis=-1, keepdims=True))
        o_ref[...] = (s - lse).astype(o_ref.dtype)


def mlp_forward_fused(x, prepared, *, tk=6272):
    """Full fused forward. x: (B, 25088) f32.  Returns (B, 128) padded log-probs."""
    w1 = prepared["w1"]; b1 = prepared["b1"]
    w2 = prepared["w2"]; b2 = prepared["b2"]
    w3 = prepared["w3"]; b3 = prepared["b3"]
    w4p = prepared["w4p"]; b4p = prepared["b4p"]

    B, K = x.shape
    K2, H0 = w1.shape
    assert K == K2 and K % tk == 0
    NP = w4p.shape[1]
    n_k = K // tk

    x_bf16 = x.astype(jnp.bfloat16)

    flops = 2 * B * (K * H0
                     + w2.shape[0] * w2.shape[1]
                     + w3.shape[0] * w3.shape[1]
                     + w4p.shape[0] * NP)
    bytes_accessed = (x_bf16.size * 2 + w1.size * 2
                      + 4 * sum(a.size for a in (b1, w2, b2, w3, b3, w4p, b4p))
                      + 4 * B * NP)

    grid_spec = pltpu.PrefetchScalarGridSpec(
        num_scalar_prefetch=0,
        grid=(n_k,),
        in_specs=[
            pl.BlockSpec((B, tk), lambda k: (0, k)),        # activations
            pl.BlockSpec((tk, H0), lambda k: (k, 0)),       # W1 block (contiguous, full N)
            pl.BlockSpec(b1.shape, lambda k: (0, 0)),       # grid-constant tail params
            pl.BlockSpec(w2.shape, lambda k: (0, 0)),
            pl.BlockSpec(b2.shape, lambda k: (0, 0)),
            pl.BlockSpec(w3.shape, lambda k: (0, 0)),
            pl.BlockSpec(b3.shape, lambda k: (0, 0)),
            pl.BlockSpec(w4p.shape, lambda k: (0, 0)),
            pl.BlockSpec(b4p.shape, lambda k: (0, 0)),
        ],
        out_specs=pl.BlockSpec((B, NP), lambda k: (0, 0)),
        scratch_shapes=[pltpu.VMEM((B, H0), jnp.float32)],  # fc1 accumulator
    )

    return pl.pallas_call(
        _mlp_kernel,
        out_shape=jax.ShapeDtypeStruct((B, NP), jnp.float32),
        grid_spec=grid_spec,
        compiler_params=pltpu.CompilerParams(
            dimension_semantics=("arbitrary",),   # K is a reduction axis
        ),
        cost_estimate=pl.CostEstimate(
            flops=int(flops),
            transcendentals=int(B * NP + B),
            bytes_accessed=int(bytes_accessed),
        ),
    )(x_bf16, w1, b1, w2, b2, w3, b3, w4p, b4p)


# ---------------------------------------------------------------------------
# Parameters & model
# ---------------------------------------------------------------------------
def init_linear_params(key, in_features, out_features):
    """Deterministic init mimicking nn.Linear default: U(-1/sqrt(fan_in), ...)."""
    kw, kb = jax.random.split(key)
    bound = 1.0 / np.sqrt(in_features)
    # stored as (in_features, out_features) — pre-transposed vs. PyTorch (out, in)
    w = jax.random.uniform(
        kw, (in_features, out_features), jnp.float32, -bound, bound
    )
    b = jax.random.uniform(kb, (1, out_features), jnp.float32, -bound, bound)
    return w, b


def prepare_params(params, pad_to=PAD_OUT):
    """One-time parameter prep (NOT in the hot path): cast W1 to bf16 and pad
    fc4 to a lane-dense 128-wide output with -1e30 pad bias."""
    (w1, b1), (w2, b2), (w3, b3), (w4, b4) = params
    n = w4.shape[1]
    pad = pad_to - n
    w4p = jnp.pad(w4, ((0, 0), (0, pad)))
    b4p = jnp.pad(b4, ((0, 0), (0, pad)), constant_values=PAD_NEG)
    return dict(
        w1=w1.astype(jnp.bfloat16), b1=b1,
        w2=w2, b2=b2, w3=w3, b3=b3,
        w4p=w4p, b4p=b4p,
    )


def model_forward(x, prepared, out_dim=OUT_DIM):
    out_padded = mlp_forward_fused(x, prepared)
    return out_padded[:, :out_dim]


# ---------------------------------------------------------------------------
# References
# ---------------------------------------------------------------------------
def reference_forward_f32(x, params):
    """Exact semantics of the original f32 PyTorch module (eval mode)."""
    (w1, b1), (w2, b2), (w3, b3), (w4, b4) = params
    x = _leaky_relu(x @ w1 + b1)
    x = _leaky_relu(x @ w2 + b2)
    x = _leaky_relu(x @ w3 + b3)
    z = x @ w4 + b4
    return jax.nn.log_softmax(z, axis=1)


def reference_forward_bf16_w1(x, params):
    """Same math as the kernel (bf16 W1 / bf16 activations for fc1 only)."""
    (w1, b1), (w2, b2), (w3, b3), (w4, b4) = params
    h = jnp.dot(x.astype(jnp.bfloat16), w1.astype(jnp.bfloat16),
                preferred_element_type=jnp.float32)
    h = _leaky_relu(h + b1)
    h = _leaky_relu(h @ w2 + b2)
    h = _leaky_relu(h @ w3 + b3)
    z = h @ w4 + b4
    return jax.nn.log_softmax(z, axis=1)


if __name__ == "__main__":
    hidden_units_size = [256, 128, 64]
    in_dim = 25088   # fixed by fc1 in the original module (512 * 7 * 7)
    out_dim = OUT_DIM
    batch = 2

    root = jax.random.PRNGKey(0)
    k_in, k1, k2, k3, k4 = jax.random.split(root, 5)

    x = jax.random.normal(k_in, (batch, in_dim), jnp.float32)

    params = [
        init_linear_params(k1, in_dim, hidden_units_size[0]),
        init_linear_params(k2, hidden_units_size[0], hidden_units_size[1]),
        init_linear_params(k3, hidden_units_size[1], hidden_units_size[2]),
        init_linear_params(k4, hidden_units_size[2], out_dim),
    ]
    prepared = prepare_params(params)   # one-time: bf16 cast + fc4 padding

    out = jax.block_until_ready(model_forward(x, prepared))
    assert out.shape == (batch, out_dim), out.shape

    # Check 1: matches a reference that uses the same bf16 fc1 weights
    # (kernel correctness; only reduction-order differences remain).
    ref_matched = jax.block_until_ready(reference_forward_bf16_w1(x, params))
    np.testing.assert_allclose(np.asarray(out), np.asarray(ref_matched),
                               rtol=1e-3, atol=1e-3)

    # Check 2: matches the original all-f32 module semantics within bf16
    # quantization error of the fc1 weight stream.
    ref_f32 = jax.block_until_ready(reference_forward_f32(x, params))
    np.testing.assert_allclose(np.asarray(out), np.asarray(ref_f32),
                               rtol=5e-2, atol=5e-2)

    print("KERNEL_OK")
</pallas_src>

<mosaic_0001>
module attributes {stable_mosaic.version = 11 : i64} {
  func.func @_mlp_kernel(%arg0: i32, %arg1: memref<2x6272xbf16, #tpu.memory_space<vmem>>, %arg2: memref<6272x256xbf16, #tpu.memory_space<vmem>>, %arg3: memref<1x256xf32, #tpu.memory_space<vmem>>, %arg4: memref<256x128xf32, #tpu.memory_space<vmem>>, %arg5: memref<1x128xf32, #tpu.memory_space<vmem>>, %arg6: memref<128x64xf32, #tpu.memory_space<vmem>>, %arg7: memref<1x64xf32, #tpu.memory_space<vmem>>, %arg8: memref<64x128xf32, #tpu.memory_space<vmem>>, %arg9: memref<1x128xf32, #tpu.memory_space<vmem>>, %arg10: memref<2x128xf32, #tpu.memory_space<vmem>>, %arg11: memref<2x256xf32, #tpu.memory_space<vmem>>) attributes {dimension_semantics = [#tpu.dimension_semantics<arbitrary>], iteration_bounds = array<i64: 4>, scalar_prefetch = 0 : i64, scratch_operands = 1 : i64, tpu.core_type = #tpu.core_type<tc>, window_params = [{transform_indices = @transform_0, window_bounds = array<i64: 2, 6272>}, {transform_indices = @transform_1, window_bounds = array<i64: 6272, 256>}, {pipeline_mode = #tpu.pipeline_mode<synchronous>, transform_indices = @transform_2, window_bounds = array<i64: 1, 256>}, {pipeline_mode = #tpu.pipeline_mode<synchronous>, transform_indices = @transform_3, window_bounds = array<i64: 256, 128>}, {pipeline_mode = #tpu.pipeline_mode<synchronous>, transform_indices = @transform_4, window_bounds = array<i64: 1, 128>}, {pipeline_mode = #tpu.pipeline_mode<synchronous>, transform_indices = @transform_5, window_bounds = array<i64: 128, 64>}, {pipeline_mode = #tpu.pipeline_mode<synchronous>, transform_indices = @transform_6, window_bounds = array<i64: 1, 64>}, {pipeline_mode = #tpu.pipeline_mode<synchronous>, transform_indices = @transform_7, window_bounds = array<i64: 64, 128>}, {pipeline_mode = #tpu.pipeline_mode<synchronous>, transform_indices = @transform_8, window_bounds = array<i64: 1, 128>}, {pipeline_mode = #tpu.pipeline_mode<synchronous>, transform_indices = @transform_9, window_bounds = array<i64: 2, 128>}]} {
    %c0_i32 = arith.constant 0 : i32
    %0 = arith.cmpi eq, %arg0, %c0_i32 : i32
    %1 = arith.extui %0 : i1 to i32
    %c0_i32_0 = arith.constant 0 : i32
    %2 = arith.cmpi ne, %1, %c0_i32_0 : i32
    scf.if %2 {
      %cst_9 = arith.constant 0.000000e+00 : f32
      %12 = vector.broadcast %cst_9 : f32 to vector<2x256xf32>
      %c0_10 = arith.constant 0 : index
      %c0_11 = arith.constant 0 : index
      %13 = vector.load %arg11[%c0_10, %c0_11] : memref<2x256xf32, #tpu.memory_space<vmem>>, vector<2x256xf32>
      tpu.vector_store %arg11[%c0_10, %c0_11], %12 {strides = array<i32>} : memref<2x256xf32, #tpu.memory_space<vmem>>, vector<2x256xf32>,
    } else {
    }
    %c0 = arith.constant 0 : index
    %c0_1 = arith.constant 0 : index
    %3 = vector.load %arg11[%c0, %c0_1] : memref<2x256xf32, #tpu.memory_space<vmem>>, vector<2x256xf32>
    %c0_2 = arith.constant 0 : index
    %c0_3 = arith.constant 0 : index
    %4 = vector.load %arg1[%c0_2, %c0_3] : memref<2x6272xbf16, #tpu.memory_space<vmem>>, vector<2x6272xbf16>
    %c0_4 = arith.constant 0 : index
    %c0_5 = arith.constant 0 : index
    %5 = vector.load %arg2[%c0_4, %c0_5] : memref<6272x256xbf16, #tpu.memory_space<vmem>>, vector<6272x256xbf16>
    %cst = arith.constant dense<0.000000e+00> : vector<2x256xf32>
    %6 = tpu.matmul %4, %5, %cst {dimension_numbers = #tpu.dot_dimension_numbers<[1], [0], [0], [1], [0, 0, 1, 1], [], []>} : vector<2x6272xbf16>, vector<6272x256xbf16>, vector<2x256xf32> -> vector<2x256xf32>
    %7 = arith.addf %3, %6 : vector<2x256xf32>
    %c0_6 = arith.constant 0 : index
    %c0_7 = arith.constant 0 : index
    %8 = vector.load %arg11[%c0_6, %c0_7] : memref<2x256xf32, #tpu.memory_space<vmem>>, vector<2x256xf32>
    tpu.vector_store %arg11[%c0_6, %c0_7], %7 {strides = array<i32>} : memref<2x256xf32, #tpu.memory_space<vmem>>, vector<2x256xf32>,
    %c3_i32 = arith.constant 3 : i32
    %9 = arith.cmpi eq, %arg0, %c3_i32 : i32
    %10 = arith.extui %9 : i1 to i32
    %c0_i32_8 = arith.constant 0 : i32
    %11 = arith.cmpi ne, %10, %c0_i32_8 : i32
    scf.if %11 {
      %c0_9 = arith.constant 0 : index
      %c0_10 = arith.constant 0 : index
      %12 = vector.load %arg11[%c0_9, %c0_10] : memref<2x256xf32, #tpu.memory_space<vmem>>, vector<2x256xf32>
      %c0_11 = arith.constant 0 : index
      %c0_12 = arith.constant 0 : index
      %13 = vector.load %arg3[%c0_11, %c0_12] : memref<1x256xf32, #tpu.memory_space<vmem>>, vector<1x256xf32>
      %14 = vector.broadcast %13 : vector<1x256xf32> to vector<2x256xf32>
      %15 = arith.addf %12, %14 : vector<2x256xf32>
      %cst_13 = arith.constant 0.000000e+00 : f32
      %16 = vector.broadcast %cst_13 : f32 to vector<2x256xf32>
      %17 = arith.cmpf ogt, %15, %16 : vector<2x256xf32>
      %cst_14 = arith.constant 0.00999999977 : f32
      %18 = vector.broadcast %cst_14 : f32 to vector<2x256xf32>
      %19 = arith.mulf %18, %15 : vector<2x256xf32>
      %20 = arith.select %17, %15, %19 : vector<2x256xi1>, vector<2x256xf32>
      %c0_15 = arith.constant 0 : index
      %c0_16 = arith.constant 0 : index
      %21 = vector.load %arg4[%c0_15, %c0_16] : memref<256x128xf32, #tpu.memory_space<vmem>>, vector<256x128xf32>
      %cst_17 = arith.constant dense<0.000000e+00> : vector<2x128xf32>
      %22 = tpu.matmul %20, %21, %cst_17 {dimension_numbers = #tpu.dot_dimension_numbers<[1], [0], [0], [1], [0, 0, 1, 1], [], []>} : vector<2x256xf32>, vector<256x128xf32>, vector<2x128xf32> -> vector<2x128xf32>
      %c0_18 = arith.constant 0 : index
      %c0_19 = arith.constant 0 : index
      %23 = vector.load %arg5[%c0_18, %c0_19] : memref<1x128xf32, #tpu.memory_space<vmem>>, vector<1x128xf32>
      %24 = vector.broadcast %23 : vector<1x128xf32> to vector<2x128xf32>
      %25 = arith.addf %22, %24 : vector<2x128xf32>
      %cst_20 = arith.constant 0.000000e+00 : f32
      %26 = vector.broadcast %cst_20 : f32 to vector<2x128xf32>
      %27 = arith.cmpf ogt, %25, %26 : vector<2x128xf32>
      %cst_21 = arith.constant 0.00999999977 : f32
      %28 = vector.broadcast %cst_21 : f32 to vector<2x128xf32>
      %29 = arith.mulf %28, %25 : vector<2x128xf32>
      %30 = arith.select %27, %25, %29 : vector<2x128xi1>, vector<2x128xf32>
      %c0_22 = arith.constant 0 : index
      %c0_23 = arith.constant 0 : index
      %31 = vector.load %arg6[%c0_22, %c0_23] : memref<128x64xf32, #tpu.memory_space<vmem>>, vector<128x64xf32>
      %cst_24 = arith.constant dense<0.000000e+00> : vector<2x64xf32>
      %32 = tpu.matmul %30, %31, %cst_24 {dimension_numbers = #tpu.dot_dimension_numbers<[1], [0], [0], [1], [0, 0, 1, 1], [], []>} : vector<2x128xf32>, vector<128x64xf32>, vector<2x64xf32> -> vector<2x64xf32>
      %c0_25 = arith.constant 0 : index
      %c0_26 = arith.constant 0 : index
      %33 = vector.load %arg7[%c0_25, %c0_26] : memref<1x64xf32, #tpu.memory_space<vmem>>, vector<1x64xf32>
      %34 = vector.broadcast %33 : vector<1x64xf32> to vector<2x64xf32>
      %35 = arith.addf %32, %34 : vector<2x64xf32>
      %cst_27 = arith.constant 0.000000e+00 : f32
      %36 = vector.broadcast %cst_27 : f32 to vector<2x64xf32>
      %37 = arith.cmpf ogt, %35, %36 : vector<2x64xf32>
      %cst_28 = arith.constant 0.00999999977 : f32
      %38 = vector.broadcast %cst_28 : f32 to vector<2x64xf32>
      %39 = arith.mulf %38, %35 : vector<2x64xf32>
      %40 = arith.select %37, %35, %39 : vector<2x64xi1>, vector<2x64xf32>
      %c0_29 = arith.constant 0 : index
      %c0_30 = arith.constant 0 : index
      %41 = vector.load %arg8[%c0_29, %c0_30] : memref<64x128xf32, #tpu.memory_space<vmem>>, vector<64x128xf32>
      %cst_31 = arith.constant dense<0.000000e+00> : vector<2x128xf32>
      %42 = tpu.matmul %40, %41, %cst_31 {dimension_numbers = #tpu.dot_dimension_numbers<[1], [0], [0], [1], [0, 0, 1, 1], [], []>} : vector<2x64xf32>, vector<64x128xf32>, vector<2x128xf32> -> vector<2x128xf32>
      %c0_32 = arith.constant 0 : index
      %c0_33 = arith.constant 0 : index
      %43 = vector.load %arg9[%c0_32, %c0_33] : memref<1x128xf32, #tpu.memory_space<vmem>>, vector<1x128xf32>
      %44 = vector.broadcast %43 : vector<1x128xf32> to vector<2x128xf32>
      %45 = arith.addf %42, %44 : vector<2x128xf32>
      %cst_34 = arith.constant dense<0xFF800000> : vector<2xf32>
      %46 = vector.multi_reduction <maximumf>, %45, %cst_34 [1] : vector<2x128xf32> to vector<2xf32>
      %47 = vector.shape_cast %46 : vector<2xf32> to vector<2x1xf32>
      %48 = vector.broadcast %47 : vector<2x1xf32> to vector<2x128xf32>
      %49 = arith.subf %45, %48 : vector<2x128xf32>
      %50 = math.exp %49 : vector<2x128xf32>
      %cst_35 = arith.constant dense<0.000000e+00> : vector<2xf32>
      %51 = vector.multi_reduction <add>, %50, %cst_35 [1] : vector<2x128xf32> to vector<2xf32>
      %52 = vector.shape_cast %51 : vector<2xf32> to vector<2x1xf32>
      %53 = math.log %52 : vector<2x1xf32>
      %54 = vector.broadcast %53 : vector<2x1xf32> to vector<2x128xf32>
      %55 = arith.subf %49, %54 : vector<2x128xf32>
      %c0_36 = arith.constant 0 : index
      %c0_37 = arith.constant 0 : index
      %56 = vector.load %arg10[%c0_36, %c0_37] : memref<2x128xf32, #tpu.memory_space<vmem>>, vector<2x128xf32>
      tpu.vector_store %arg10[%c0_36, %c0_37], %55 {strides = array<i32>} : memref<2x128xf32, #tpu.memory_space<vmem>>, vector<2x128xf32>,
    } else {
    }
    return
  }
  func.func @transform_0(%arg0: i32) -> (i32, i32) {
    %c0_i32 = arith.constant 0 : i32
    %c0_i32_0 = arith.constant 0 : i32
    return %c0_i32, %arg0 : i32, i32
  }
  func.func @transform_1(%arg0: i32) -> (i32, i32) {
    %c0_i32 = arith.constant 0 : i32
    %c0_i32_0 = arith.constant 0 : i32
    return %arg0, %c0_i32 : i32, i32
  }
  func.func @transform_2(%arg0: i32) -> (i32, i32) {
    %c0_i32 = arith.constant 0 : i32
    %c0_i32_0 = arith.constant 0 : i32
    %c0_i32_1 = arith.constant 0 : i32
    return %c0_i32, %c0_i32_0 : i32, i32
  }
  func.func @transform_3(%arg0: i32) -> (i32, i32) {
    %c0_i32 = arith.constant 0 : i32
    %c0_i32_0 = arith.constant 0 : i32
    %c0_i32_1 = arith.constant 0 : i32
    return %c0_i32, %c0_i32_0 : i32, i32
  }
  func.func @transform_4(%arg0: i32) -> (i32, i32) {
    %c0_i32 = arith.constant 0 : i32
    %c0_i32_0 = arith.constant 0 : i32
    %c0_i32_1 = arith.constant 0 : i32
    return %c0_i32, %c0_i32_0 : i32, i32
  }
  func.func @transform_5(%arg0: i32) -> (i32, i32) {
    %c0_i32 = arith.constant 0 : i32
    %c0_i32_0 = arith.constant 0 : i32
    %c0_i32_1 = arith.constant 0 : i32
    return %c0_i32, %c0_i32_0 : i32, i32
  }
  func.func @transform_6(%arg0: i32) -> (i32, i32) {
    %c0_i32 = arith.constant 0 : i32
    %c0_i32_0 = arith.constant 0 : i32
    %c0_i32_1 = arith.constant 0 : i32
    return %c0_i32, %c0_i32_0 : i32, i32
  }
  func.func @transform_7(%arg0: i32) -> (i32, i32) {
    %c0_i32 = arith.constant 0 : i32
    %c0_i32_0 = arith.constant 0 : i32
    %c0_i32_1 = arith.constant 0 : i32
    return %c0_i32, %c0_i32_0 : i32, i32
  }
  func.func @transform_8(%arg0: i32) -> (i32, i32) {
    %c0_i32 = arith.constant 0 : i32
    %c0_i32_0 = arith.constant 0 : i32
    %c0_i32_1 = arith.constant 0 : i32
    return %c0_i32, %c0_i32_0 : i32, i32
  }
  func.func @transform_9(%arg0: i32) -> (i32, i32) {
    %c0_i32 = arith.constant 0 : i32
    %c0_i32_0 = arith.constant 0 : i32
    %c0_i32_1 = arith.constant 0 : i32
    return %c0_i32, %c0_i32_0 : i32, i32
  }
}

</mosaic_0001>

<llo_original>
// kernel: tpu_custom_call.1
$region0: #{tpu_custom_call.1}
  #allocation0 [shape = 'u32[]', space=smem, size = 0x4, offset = 0x4, fixed_abs, tag = 'smem constant byte address 0x4 - core index']
  #allocation1 [shape = 'u32[144,128]{1,0:T(1,128)}', space=vmem, size = 0x12000, scoped, tag = 'internal scratch']
  #allocation2 [shape = 'f32[2,256]{1,0:T(2,128)}', space=vmem, size = 0x800, scoped, tag = 'scratch operand']
  %s0 = inlined_call_operand.hbm [shape: bf16[2,25088], index: 0, kind: input, shape index: {}]
  %s1 = inlined_call_operand.hbm [shape: bf16[25088,256], index: 1, kind: input, shape index: {}]
  %s2 = inlined_call_operand.hbm [shape: f32[1,256], index: 2, kind: input, shape index: {}]
  %s3 = inlined_call_operand.hbm [shape: f32[256,128], index: 3, kind: input, shape index: {}]
  %s4 = inlined_call_operand.hbm [shape: f32[1,128], index: 4, kind: input, shape index: {}]
  %s5 = inlined_call_operand.vmem [shape: f32[128,64], index: 5, kind: input, shape index: {}]
  %s6 = inlined_call_operand.hbm [shape: f32[1,64], index: 6, kind: input, shape index: {}]
  %s7 = inlined_call_operand.hbm [shape: f32[64,128], index: 7, kind: input, shape index: {}]
  %s8 = inlined_call_operand.hbm [shape: f32[1,128], index: 8, kind: input, shape index: {}]
  %s9 = inlined_call_operand.hbm [shape: f32[2,128], index: 9, kind: output, shape index: {}]
  %s10 = sld [smem:[#allocation0]]
  $region109: #{tpu_custom_call.1} parent=0
    _
  %s12 = ssub.s32 1, %s10
  %s13 = scalar_select 0, %s12, %s10
  $region1: #{tpu_custom_call.1} parent=0
    #allocation3 [shape = 'u8[50176]{0}', space=vmem, size = 0xc400, scoped, tag = 'input window, operand 0']
    #allocation4 [shape = 's32[2]{0}', space=sflag, size = 0x8, scoped, tag = 'scoped memory for tpu_custom_call.1']
    #allocation5 [shape = 's32[2]{0}', space=sflag, size = 0x8, scoped, tag = 'scoped memory for tpu_custom_call.1']
    #allocation6 [shape = 'u8[6422528]{0}', space=vmem, size = 0x620000, scoped, tag = 'input window, operand 1']
    #allocation7 [shape = 's32[2]{0}', space=sflag, size = 0x8, scoped, tag = 'scoped memory for tpu_custom_call.1']
    #allocation8 [shape = 'u8[1024]{0}', space=vmem, size = 0x400, scoped, tag = 'input window, operand 2, single buffered']
    #allocation9 [shape = 'u8[131072]{0}', space=vmem, size = 0x20000, scoped, tag = 'input window, operand 3, single buffered']
    #allocation10 [shape = 's32[1]{0}', space=sflag, size = 0x4, scoped, tag = 'scoped memory for tpu_custom_call.1']
    #allocation11 [shape = 'u8[512]{0}', space=vmem, size = 0x400, scoped, tag = 'input window, operand 4, single buffered']
    #allocation12 [shape = 'u8[512]{0}', space=vmem, size = 0x400, scoped, tag = 'input window, operand 6, single buffered']
    #allocation13 [shape = 's32[1]{0}', space=sflag, size = 0x4, scoped, tag = 'scoped memory for tpu_custom_call.1']
    #allocation14 [shape = 'u8[32768]{0}', space=vmem, size = 0x8000, scoped, tag = 'input window, operand 7, single buffered']
    #allocation15 [shape = 'u8[512]{0}', space=vmem, size = 0x400, scoped, tag = 'input window, operand 8, single buffered']
    #allocation16 [shape = 's32[1]{0}', space=sflag, size = 0x4, scoped, tag = 'scoped memory for tpu_custom_call.1']
    #allocation17 [shape = 'u8[1024]{0}', space=vmem, size = 0x400, scoped, tag = 'output window, operand 0, single buffered']
    %14 = vsyncpa [#allocation4], 0
    %s15 = scalar_lea.sflag [#allocation4], 1
    %16 = vsyncpa %s15, 0
    %17 = vsyncpa [#allocation7], 0
    %s18 = scalar_lea.sflag [#allocation7], 1
    %19 = vsyncpa %s18, 0
    %20 = vsyncpa [#allocation10], 0
    %21 = vsyncpa [#allocation13], 0
    %22 = vsyncpa [#allocation16], 0
    %23 = vsyncpa [#allocation5], 0
    loop: start=0, step=1, limit=6
    $region2: #{tpu_custom_call.1} parent=1 // loop_pre_header
      _
    $region3: #{tpu_custom_call.1} parent=1 // loop_header
      %s25 = sphi 0, %s29
      %p26 = scmp.ge.s32.totalorder %s25, 6
      %s35 = sphi 0, %s37
      %s38 = sphi 0, %s35
      %s39 = sphi 0, %s38
      %s55 = sphi 0, %s39
      %s61 = sphi 0, %s63
      %s64 = sphi 0, %s61
      %s65 = sphi 0, %s64
      %s81 = sphi 0, %s65
      %s85 = sphi 0, %s85
      %s87 = sphi 0, %s85
      %s88 = sphi 0, %s87
      %s102 = sphi 0, %s88
      %s106 = sphi 0, %s106
      %s108 = sphi 0, %s106
      %s109 = sphi 0, %s108
      %s123 = sphi 0, %s109
      %s127 = sphi 0, %s127
      %s129 = sphi 0, %s127
      %s130 = sphi 0, %s129
      %s144 = sphi 0, %s130
      %s148 = sphi 0, %s148
      %s150 = sphi 0, %s148
      %s151 = sphi 0, %s150
      %s165 = sphi 0, %s151
      %s169 = sphi 0, %s169
      %s171 = sphi 0, %s169
      %s172 = sphi 0, %s171
      %s186 = sphi 0, %s172
      %s190 = sphi 0, %s190
      %s192 = sphi 0, %s190
      %s193 = sphi 0, %s192
      %s207 = sphi 0, %s193
      %s211 = sphi 0, %s211
      %s213 = sphi 0, %s211
      %s214 = sphi 0, %s213
      %s228 = sphi 0, %s214
      %s232 = sphi 0, %s232
      %s234 = sphi 0, %s232
      %s235 = sphi 0, %s234
      %s249 = sphi 0, %s235
    $region4: #{tpu_custom_call.1} parent=1 // loop_header_branch
      %28 = sbr.rel (%p26) target = $region8
    $region5: #{tpu_custom_call.1} parent=1 // loop_body
      %s30 = ssub.s32 %s25, 1
      %s31 = ssub.s32 %s25, 2
      %s32 = sadd.s32 %s25, 1
      %s33 = ssub.s32 %s25, %s32
      %p34 = scmp.eq.s32.totalorder %s33, 0
      %s36 = sadd.s32 %s35, 1
      %s37 = scalar_select %p34, %s35, %s36
      %p40 = pneg %p34
      %p41 = scmp.eq.s32.totalorder %s25, 3
      %p42 = por %p40, %p41
      %p43 = scmp.ne.s32.totalorder %s35, %s38
      %p44 = scmp.eq.s32.totalorder %s25, 0
      %p45 = por %p43, %p44
      %p46 = scmp.ne.s32.totalorder %s35, %s38
      %p47 = scmp.eq.s32.totalorder %s30, 3
      %p48 = por %p46, %p47
      %p49 = scmp.ne.s32.totalorder %s38, %s39
      %p50 = scmp.eq.s32.totalorder %s30, 0
      %p51 = por %p49, %p50
      %p52 = scmp.ne.s32.totalorder %s38, %s39
      %p53 = scmp.eq.s32.totalorder %s31, 3
      %p54 = por %p52, %p53
      %p56 = scmp.ne.s32.totalorder %s39, %s55
      %p57 = scmp.eq.s32.totalorder %s31, 0
      %p58 = por %p56, %p57
      %s59 = ssub.s32 %s25, %s32
      %p60 = scmp.eq.s32.totalorder %s59, 0
      %s62 = sadd.s32 %s61, 1
      %s63 = scalar_select %p60, %s61, %s62
      %p66 = pneg %p60
      %p67 = scmp.eq.s32.totalorder %s25, 3
      %p68 = por %p66, %p67
      %p69 = scmp.ne.s32.totalorder %s61, %s64
      %p70 = scmp.eq.s32.totalorder %s25, 0
      %p71 = por %p69, %p70
      %p72 = scmp.ne.s32.totalorder %s61, %s64
      %p73 = scmp.eq.s32.totalorder %s30, 3
      %p74 = por %p72, %p73
      %p75 = scmp.ne.s32.totalorder %s64, %s65
      %p76 = scmp.eq.s32.totalorder %s30, 0
      %p77 = por %p75, %p76
      %p78 = scmp.ne.s32.totalorder %s64, %s65
      %p79 = scmp.eq.s32.totalorder %s31, 3
      %p80 = por %p78, %p79
      %p82 = scmp.ne.s32.totalorder %s65, %s81
      %p83 = scmp.eq.s32.totalorder %s31, 0
      %p84 = por %p82, %p83
      %s86 = sadd.s32 %s85, 1
      %p89 = scmp.eq.s32.totalorder %s25, 3
      %p90 = scmp.ne.s32.totalorder %s85, %s87
      %p91 = scmp.eq.s32.totalorder %s25, 0
      %p92 = por %p90, %p91
      %p93 = scmp.ne.s32.totalorder %s85, %s87
      %p94 = scmp.eq.s32.totalorder %s30, 3
      %p95 = por %p93, %p94
      %p96 = scmp.ne.s32.totalorder %s87, %s88
      %p97 = scmp.eq.s32.totalorder %s30, 0
      %p98 = por %p96, %p97
      %p99 = scmp.ne.s32.totalorder %s87, %s88
      %p100 = scmp.eq.s32.totalorder %s31, 3
      %p101 = por %p99, %p100
      %p103 = scmp.ne.s32.totalorder %s88, %s102
      %p104 = scmp.eq.s32.totalorder %s31, 0
      %p105 = por %p103, %p104
      %s107 = sadd.s32 %s106, 1
      %p110 = scmp.eq.s32.totalorder %s25, 3
      %p111 = scmp.ne.s32.totalorder %s106, %s108
      %p112 = scmp.eq.s32.totalorder %s25, 0
      %p113 = por %p111, %p112
      %p114 = scmp.ne.s32.totalorder %s106, %s108
      %p115 = scmp.eq.s32.totalorder %s30, 3
      %p116 = por %p114, %p115
      %p117 = scmp.ne.s32.totalorder %s108, %s109
      %p118 = scmp.eq.s32.totalorder %s30, 0
      %p119 = por %p117, %p118
      %p120 = scmp.ne.s32.totalorder %s108, %s109
      %p121 = scmp.eq.s32.totalorder %s31, 3
      %p122 = por %p120, %p121
      %p124 = scmp.ne.s32.totalorder %s109, %s123
      %p125 = scmp.eq.s32.totalorder %s31, 0
      %p126 = por %p124, %p125
      %s128 = sadd.s32 %s127, 1
      %p131 = scmp.eq.s32.totalorder %s25, 3
      %p132 = scmp.ne.s32.totalorder %s127, %s129
      %p133 = scmp.eq.s32.totalorder %s25, 0
      %p134 = por %p132, %p133
      %p135 = scmp.ne.s32.totalorder %s127, %s129
      %p136 = scmp.eq.s32.totalorder %s30, 3
      %p137 = por %p135, %p136
      %p138 = scmp.ne.s32.totalorder %s129, %s130
      %p139 = scmp.eq.s32.totalorder %s30, 0
      %p140 = por %p138, %p139
      %p141 = scmp.ne.s32.totalorder %s129, %s130
      %p142 = scmp.eq.s32.totalorder %s31, 3
      %p143 = por %p141, %p142
      %p145 = scmp.ne.s32.totalorder %s130, %s144
      %p146 = scmp.eq.s32.totalorder %s31, 0
      %p147 = por %p145, %p146
      %s149 = sadd.s32 %s148, 1
      %p152 = scmp.eq.s32.totalorder %s25, 3
      %p153 = scmp.ne.s32.totalorder %s148, %s150
      %p154 = scmp.eq.s32.totalorder %s25, 0
      %p155 = por %p153, %p154
      %p156 = scmp.ne.s32.totalorder %s148, %s150
      %p157 = scmp.eq.s32.totalorder %s30, 3
      %p158 = por %p156, %p157
      %p159 = scmp.ne.s32.totalorder %s150, %s151
      %p160 = scmp.eq.s32.totalorder %s30, 0
      %p161 = por %p159, %p160
      %p162 = scmp.ne.s32.totalorder %s150, %s151
      %p163 = scmp.eq.s32.totalorder %s31, 3
      %p164 = por %p162, %p163
      %p166 = scmp.ne.s32.totalorder %s151, %s165
      %p167 = scmp.eq.s32.totalorder %s31, 0
      %p168 = por %p166, %p167
      %s170 = sadd.s32 %s169, 1
      %p173 = scmp.eq.s32.totalorder %s25, 3
      %p174 = scmp.ne.s32.totalorder %s169, %s171
      %p175 = scmp.eq.s32.totalorder %s25, 0
      %p176 = por %p174, %p175
      %p177 = scmp.ne.s32.totalorder %s169, %s171
      %p178 = scmp.eq.s32.totalorder %s30, 3
      %p179 = por %p177, %p178
      %p180 = scmp.ne.s32.totalorder %s171, %s172
      %p181 = scmp.eq.s32.totalorder %s30, 0
      %p182 = por %p180, %p181
      %p183 = scmp.ne.s32.totalorder %s171, %s172
      %p184 = scmp.eq.s32.totalorder %s31, 3
      %p185 = por %p183, %p184
      %p187 = scmp.ne.s32.totalorder %s172, %s186
      %p188 = scmp.eq.s32.totalorder %s31, 0
      %p189 = por %p187, %p188
      %s191 = sadd.s32 %s190, 1
      %p194 = scmp.eq.s32.totalorder %s25, 3
      %p195 = scmp.ne.s32.totalorder %s190, %s192
      %p196 = scmp.eq.s32.totalorder %s25, 0
      %p197 = por %p195, %p196
      %p198 = scmp.ne.s32.totalorder %s190, %s192
      %p199 = scmp.eq.s32.totalorder %s30, 3
      %p200 = por %p198, %p199
      %p201 = scmp.ne.s32.totalorder %s192, %s193
      %p202 = scmp.eq.s32.totalorder %s30, 0
      %p203 = por %p201, %p202
      %p204 = scmp.ne.s32.totalorder %s192, %s193
      %p205 = scmp.eq.s32.totalorder %s31, 3
      %p206 = por %p204, %p205
      %p208 = scmp.ne.s32.totalorder %s193, %s207
      %p209 = scmp.eq.s32.totalorder %s31, 0
      %p210 = por %p208, %p209
      %s212 = sadd.s32 %s211, 1
      %p215 = scmp.eq.s32.totalorder %s25, 3
      %p216 = scmp.ne.s32.totalorder %s211, %s213
      %p217 = scmp.eq.s32.totalorder %s25, 0
      %p218 = por %p216, %p217
      %p219 = scmp.ne.s32.totalorder %s211, %s213
      %p220 = scmp.eq.s32.totalorder %s30, 3
      %p221 = por %p219, %p220
      %p222 = scmp.ne.s32.totalorder %s213, %s214
      %p223 = scmp.eq.s32.totalorder %s30, 0
      %p224 = por %p222, %p223
      %p225 = scmp.ne.s32.totalorder %s213, %s214
      %p226 = scmp.eq.s32.totalorder %s31, 3
      %p227 = por %p225, %p226
      %p229 = scmp.ne.s32.totalorder %s214, %s228
      %p230 = scmp.eq.s32.totalorder %s31, 0
      %p231 = por %p229, %p230
      %s233 = sadd.s32 %s232, 1
      %p236 = scmp.eq.s32.totalorder %s25, 3
      %p237 = scmp.ne.s32.totalorder %s232, %s234
      %p238 = scmp.eq.s32.totalorder %s25, 0
      %p239 = por %p237, %p238
      %p240 = scmp.ne.s32.totalorder %s232, %s234
      %p241 = scmp.eq.s32.totalorder %s30, 3
      %p242 = por %p240, %p241
      %p243 = scmp.ne.s32.totalorder %s234, %s235
      %p244 = scmp.eq.s32.totalorder %s30, 0
      %p245 = por %p243, %p244
      %p246 = scmp.ne.s32.totalorder %s234, %s235
      %p247 = scmp.eq.s32.totalorder %s31, 3
      %p248 = por %p246, %p247
      %p250 = scmp.ne.s32.totalorder %s235, %s249
      %p251 = scmp.eq.s32.totalorder %s31, 0
      %p252 = por %p250, %p251
      %p253 = scmp.le.s32.totalorder 1, %s25
      %p254 = scmp.lt.s32.totalorder %s25, 5
      %p255 = pnand %p253, %p254
      %p256 = pneg %p255
      // Predicated region
      $region9: #{tpu_custom_call.1} parent=5 // pred_check
        _
      $region10: #{tpu_custom_call.1} parent=5 // pred_check_branch
        %258 = sbr.rel (%p255) target = $region12
      $region11: #{tpu_custom_call.1} parent=5 // pred_region
        %s259 = ssub.s32 %s25, 1
        // Predicated region
        $region13: #{tpu_custom_call.1} parent=11 // pred_check
          %p260 = pneg %p98
        $region14: #{tpu_custom_call.1} parent=11 // pred_check_branch
          %262 = sbr.rel (%p260) target = $region16
        $region15: #{tpu_custom_call.1} parent=11 // pred_region
          %s264 = ssub.s32 32, 32
          %265 = vsyncadd [#allocation7], %s264
          %s267 = sshll.u32 [#allocation8], 4
          %s268 = int_to_ptr.vmem [resolvable:$true] %s267
          %270 = dma.hbm_to_vmem [thread:$0]  %s2, 32, %s268, [#allocation7]
        $region16: #{tpu_custom_call.1} parent=11 // pred_fallthru
          _
        // Predicated region
        $region17: #{tpu_custom_call.1} parent=11 // pred_check
          %p271 = pneg %p119
        $region18: #{tpu_custom_call.1} parent=11 // pred_check_branch
          %273 = sbr.rel (%p271) target = $region20
        $region19: #{tpu_custom_call.1} parent=11 // pred_region
          %s275 = ssub.s32 4096, 4096
          %276 = vsyncadd [#allocation10], %s275
          %s277 = sshll.u32 [#allocation9], 4
          %s278 = int_to_ptr.vmem [resolvable:$true] %s277
          %283 = dma.hbm_to_vmem [thread:$0]  %s3, 4096, %s278, [#allocation10], 128, 128, 8
        $region20: #{tpu_custom_call.1} parent=11 // pred_fallthru
          _
        // Predicated region
        $region21: #{tpu_custom_call.1} parent=11 // pred_check
          %p284 = pneg %p140
        $region22: #{tpu_custom_call.1} parent=11 // pred_check_branch
          %286 = sbr.rel (%p284) target = $region24
        $region23: #{tpu_custom_call.1} parent=11 // pred_region
          %s288 = ssub.s32 16, 16
          %289 = vsyncadd [#allocation10], %s288
          %s291 = sshll.u32 [#allocation11], 4
          %s292 = int_to_ptr.vmem [resolvable:$true] %s291
          %294 = dma.hbm_to_vmem [thread:$0]  %s4, 16, %s292, [#allocation10]
        $region24: #{tpu_custom_call.1} parent=11 // pred_fallthru
          _
        // Predicated region
        $region25: #{tpu_custom_call.1} parent=11 // pred_check
          %p295 = pneg %p161
        $region26: #{tpu_custom_call.1} parent=11 // pred_check_branch
          %297 = sbr.rel (%p295) target = $region28
        $region27: #{tpu_custom_call.1} parent=11 // pred_region
          _
        $region28: #{tpu_custom_call.1} parent=11 // pred_fallthru
          _
        // Predicated region
        $region29: #{tpu_custom_call.1} parent=11 // pred_check
          %p298 = pneg %p182
        $region30: #{tpu_custom_call.1} parent=11 // pred_check_branch
          %300 = sbr.rel (%p298) target = $region32
        $region31: #{tpu_custom_call.1} parent=11 // pred_region
          %s302 = ssub.s32 16, 16
          %303 = vsyncadd [#allocation13], %s302
          %s305 = sshll.u32 [#allocation12], 4
          %s306 = int_to_ptr.vmem [resolvable:$true] %s305
          %308 = dma.hbm_to_vmem [thread:$0]  %s6, 16, %s306, [#allocation13]
        $region32: #{tpu_custom_call.1} parent=11 // pred_fallthru
          _
        // Predicated region
        $region33: #{tpu_custom_call.1} parent=11 // pred_check
          %p309 = pneg %p203
        $region34: #{tpu_custom_call.1} parent=11 // pred_check_branch
          %311 = sbr.rel (%p309) target = $region36
        $region35: #{tpu_custom_call.1} parent=11 // pred_region
          %s313 = ssub.s32 1024, 1024
          %314 = vsyncadd [#allocation13], %s313
          %s315 = sshll.u32 [#allocation14], 4
          %s316 = int_to_ptr.vmem [resolvable:$true] %s315
          %321 = dma.hbm_to_vmem [thread:$0]  %s7, 1024, %s316, [#allocation13], 128, 128, 8
        $region36: #{tpu_custom_call.1} parent=11 // pred_fallthru
          _
        // Predicated region
        $region37: #{tpu_custom_call.1} parent=11 // pred_check
          %p322 = pneg %p224
        $region38: #{tpu_custom_call.1} parent=11 // pred_check_branch
          %324 = sbr.rel (%p322) target = $region40
        $region39: #{tpu_custom_call.1} parent=11 // pred_region
          %s326 = ssub.s32 16, 16
          %327 = vsyncadd [#allocation16], %s326
          %s329 = sshll.u32 [#allocation15], 4
          %s330 = int_to_ptr.vmem [resolvable:$true] %s329
          %332 = dma.hbm_to_vmem [thread:$0]  %s8, 16, %s330, [#allocation16]
        $region40: #{tpu_custom_call.1} parent=11 // pred_fallthru
          _
      $region12: #{tpu_custom_call.1} parent=5 // pred_fallthru
        _
      %p333 = scmp.lt.s32.totalorder %s25, 4
      // Predicated region
      $region41: #{tpu_custom_call.1} parent=5 // pred_check
        %p334 = pneg %p333
      $region42: #{tpu_custom_call.1} parent=5 // pred_check_branch
        %336 = sbr.rel (%p334) target = $region44
      $region43: #{tpu_custom_call.1} parent=5 // pred_region
        // Predicated region
        $region45: #{tpu_custom_call.1} parent=43 // pred_check
          %p337 = pneg %p45
        $region46: #{tpu_custom_call.1} parent=43 // pred_check_branch
          %339 = sbr.rel (%p337) target = $region48
        $region47: #{tpu_custom_call.1} parent=43 // pred_region
          %s340 = sand.u32 %s35, 1
          %s341 = scalar_lea.sflag [#allocation4], %s340
          %s342 = sand.u32 %s35, 1
          %s343 = smul.addr %s342, 49
          %s344 = scalar_lea.vmem [#allocation3], %s343
          %s345 = smul.u32 49, %s25
          %s347 = ssub.s32 784, 784
          %348 = vsyncadd %s341, %s347
          %s349 = smul.addr %s345, 16
          %s350 = scalar_lea.hbm %s0, %s349
          %s352 = sshll.u32 %s344, 4
          %s353 = int_to_ptr.vmem [resolvable:$true] %s352
          %355 = dma.hbm_to_vmem [thread:$0]  %s350, 784, %s353, %s341
        $region48: #{tpu_custom_call.1} parent=43 // pred_fallthru
          _
        // Predicated region
        $region49: #{tpu_custom_call.1} parent=43 // pred_check
          %p356 = pneg %p71
        $region50: #{tpu_custom_call.1} parent=43 // pred_check_branch
          %358 = sbr.rel (%p356) target = $region52
        $region51: #{tpu_custom_call.1} parent=43 // pred_region
          %s359 = sand.u32 %s25, 1
          %s360 = scalar_lea.sflag [#allocation7], %s359
          %s361 = sand.u32 %s61, 1
          %s362 = smul.addr %s361, 6272
          %s363 = scalar_lea.vmem [#allocation6], %s362
          %s364 = smul.u32 784, %s25
          %s366 = ssub.s32 100352, 100352
          %367 = vsyncadd %s360, %s366
          %s368 = smul.addr %s364, 2
          %s369 = smul.addr %s368, 64
          %s370 = scalar_lea.hbm %s1, %s369
          %s371 = sshll.u32 %s363, 4
          %s372 = int_to_ptr.vmem [resolvable:$true] %s371
          %377 = dma.hbm_to_vmem [thread:$0]  %s370, 100352, %s372, %s360, 128, 128, 8
        $region52: #{tpu_custom_call.1} parent=43 // pred_fallthru
          _
      $region44: #{tpu_custom_call.1} parent=5 // pred_fallthru
        _
      %p378 = scmp.le.s32.totalorder 1, %s25
      %p379 = scmp.lt.s32.totalorder %s25, 5
      %p380 = pnand %p378, %p379
      %p381 = pneg %p380
      // Predicated region
      $region53: #{tpu_custom_call.1} parent=5 // pred_check
        _
      $region54: #{tpu_custom_call.1} parent=5 // pred_check_branch
        %383 = sbr.rel (%p380) target = $region56
      $region55: #{tpu_custom_call.1} parent=5 // pred_region
        %s384 = ssub.s32 %s25, 1
        %s385 = sand.u32 %s38, 1
        %s386 = scalar_lea.sflag [#allocation4], %s385
        %s387 = sand.u32 %s38, 1
        %s388 = smul.addr %s387, 49
        %s389 = scalar_lea.vmem [#allocation3], %s388
        // Predicated region
        $region57: #{tpu_custom_call.1} parent=55 // pred_check
          %p390 = pneg %p51
        $region58: #{tpu_custom_call.1} parent=55 // pred_check_branch
          %392 = sbr.rel (%p390) target = $region60
        $region59: #{tpu_custom_call.1} parent=55 // pred_region
          %393 = dma.done %s386, 784
        $region60: #{tpu_custom_call.1} parent=55 // pred_fallthru
          _
        %s394 = sand.u32 %s30, 1
        %s395 = scalar_lea.sflag [#allocation7], %s394
        %s396 = sand.u32 %s64, 1
        %s397 = smul.addr %s396, 6272
        %s398 = scalar_lea.vmem [#allocation6], %s397
        // Predicated region
        $region61: #{tpu_custom_call.1} parent=55 // pred_check
          %p399 = pneg %p77
        $region62: #{tpu_custom_call.1} parent=55 // pred_check_branch
          %401 = sbr.rel (%p399) target = $region64
        $region63: #{tpu_custom_call.1} parent=55 // pred_region
          %402 = dma.done %s395, 100352
        $region64: #{tpu_custom_call.1} parent=55 // pred_fallthru
          _
        // Predicated region
        $region65: #{tpu_custom_call.1} parent=55 // pred_check
          %p403 = pneg %p98
        $region66: #{tpu_custom_call.1} parent=55 // pred_check_branch
          %405 = sbr.rel (%p403) target = $region68
        $region67: #{tpu_custom_call.1} parent=55 // pred_region
          %406 = dma.done [#allocation7], 32
        $region68: #{tpu_custom_call.1} parent=55 // pred_fallthru
          _
        // Predicated region
        $region69: #{tpu_custom_call.1} parent=55 // pred_check
          %p407 = pneg %p119
        $region70: #{tpu_custom_call.1} parent=55 // pred_check_branch
          %409 = sbr.rel (%p407) target = $region72
        $region71: #{tpu_custom_call.1} parent=55 // pred_region
          %410 = dma.done [#allocation10], 4096
        $region72: #{tpu_custom_call.1} parent=55 // pred_fallthru
          _
        // Predicated region
        $region73: #{tpu_custom_call.1} parent=55 // pred_check
          %p411 = pneg %p140
        $region74: #{tpu_custom_call.1} parent=55 // pred_check_branch
          %413 = sbr.rel (%p411) target = $region76
        $region75: #{tpu_custom_call.1} parent=55 // pred_region
          %414 = dma.done [#allocation10], 16
        $region76: #{tpu_custom_call.1} parent=55 // pred_fallthru
          _
        // Predicated region
        $region77: #{tpu_custom_call.1} parent=55 // pred_check
          %p415 = pneg %p182
        $region78: #{tpu_custom_call.1} parent=55 // pred_check_branch
          %417 = sbr.rel (%p415) target = $region80
        $region79: #{tpu_custom_call.1} parent=55 // pred_region
          %418 = dma.done [#allocation13], 16
        $region80: #{tpu_custom_call.1} parent=55 // pred_fallthru
          _
        // Predicated region
        $region81: #{tpu_custom_call.1} parent=55 // pred_check
          %p419 = pneg %p203
        $region82: #{tpu_custom_call.1} parent=55 // pred_check_branch
          %421 = sbr.rel (%p419) target = $region84
        $region83: #{tpu_custom_call.1} parent=55 // pred_region
          %422 = dma.done [#allocation13], 1024
        $region84: #{tpu_custom_call.1} parent=55 // pred_fallthru
          _
        // Predicated region
        $region85: #{tpu_custom_call.1} parent=55 // pred_check
          %p423 = pneg %p224
        $region86: #{tpu_custom_call.1} parent=55 // pred_check_branch
          %425 = sbr.rel (%p423) target = $region88
        $region87: #{tpu_custom_call.1} parent=55 // pred_region
          %426 = dma.done [#allocation16], 16
        $region88: #{tpu_custom_call.1} parent=55 // pred_fallthru
          _
        %s427 = sand.u32 %s38, 1
        %s428 = scalar_lea.sflag [#allocation4], %s427
        %s429 = sand.u32 %s38, 1
        %s430 = smul.addr %s429, 49
        %s431 = scalar_lea.vmem [#allocation3], %s430
        %p432 = pneg %p51
        %p433 = pneg %p48
        %s434 = sand.u32 %s30, 1
        %s435 = scalar_lea.sflag [#allocation7], %s434
        %s436 = sand.u32 %s64, 1
        %s437 = smul.addr %s436, 6272
        %s438 = scalar_lea.vmem [#allocation6], %s437
        %p439 = pneg %p77
        %p440 = pneg %p74
        %p441 = pneg %p98
        %p442 = pneg %p95
        %p443 = pneg %p119
        %p444 = pneg %p116
        %p445 = pneg %p140
        %p446 = pneg %p137
        %p447 = pneg %p161
        %p448 = pneg %p158
        %p449 = pneg %p182
        %p450 = pneg %p179
        %p451 = pneg %p203
        %p452 = pneg %p200
        %p453 = pneg %p224
        %p454 = pneg %p221
        %p455 = pneg %p245
        %p456 = pneg %p242
        %s457 = smul.u32 49, %s30
        %s458 = smul.u32 784, %s30
        %p460 = scmp.eq.s32.totalorder %s30, 0
        // Predicated region
        $region89: #{tpu_custom_call.1} parent=55 // pred_check
          %p461 = pneg %p460
        $region90: #{tpu_custom_call.1} parent=55 // pred_check_branch
          %463 = sbr.rel (%p461) target = $region92
        $region91: #{tpu_custom_call.1} parent=55 // pred_region
          %464 = vst [vmem:[#allocation2] sm:$0xf] 0.0
        $region92: #{tpu_custom_call.1} parent=55 // pred_fallthru
          _
        %v465 = vld [vmem:[#allocation2] sm:$0xf]
        %v466 = vld [vmem:[%s389] sm:$0xff]
        %v467 = vld [vmem:[%s389 + $0x8] sm:$0xff]
        %v468 = vld [vmem:[%s389 + $0x10] sm:$0xff]
        %v469 = vld [vmem:[%s389 + $0x18] sm:$0xff]
        %v470 = vld [vmem:[%s389 + $0x20] sm:$0xff]
        %v471 = vld [vmem:[%s389 + $0x28] sm:$0xff]
        %v472 = vld [vmem:[%s389 + $0x30] sm:$0x1]
        %v473 = vld [vmem:[%s398] sm:$0xff]
        %v474 = vld [vmem:[%s398 + $0x8] sm:$0xff]
        %v475 = vld [vmem:[%s398 + $0x10] sm:$0xff]
        %v476 = vld [vmem:[%s398 + $0x18] sm:$0xff]
        %v477 = vld [vmem:[%s398 + $0x20] sm:$0xff]
        %v478 = vld [vmem:[%s398 + $0x28] sm:$0xff]
        %v479 = vld [vmem:[%s398 + $0x30] sm:$0xff]
        %v480 = vld [vmem:[%s398 + $0x38] sm:$0xff]
        %v481 = vld [vmem:[%s398 + $0x40] sm:$0xff]
        %v482 = vld [vmem:[%s398 + $0x48] sm:$0xff]
        %v483 = vld [vmem:[%s398 + $0x50] sm:$0xff]
        %v484 = vld [vmem:[%s398 + $0x58] sm:$0xff]
        %v485 = vld [vmem:[%s398 + $0x60] sm:$0xff]
        %v486 = vld [vmem:[%s398 + $0x68] sm:$0xff]
        %v487 = vld [vmem:[%s398 + $0x70] sm:$0xff]
        %v488 = vld [vmem:[%s398 + $0x78] sm:$0xff]
        %v489 = vld [vmem:[%s398 + $0x80] sm:$0xff]
        %v490 = vld [vmem:[%s398 + $0x88] sm:$0xff]
        %v491 = vld [vmem:[%s398 + $0x90] sm:$0xff]
        %v492 = vld [vmem:[%s398 + $0x98] sm:$0xff]
        %v493 = vld [vmem:[%s398 + $0xa0] sm:$0xff]
        %v494 = vld [vmem:[%s398 + $0xa8] sm:$0xff]
        %v495 = vld [vmem:[%s398 + $0xb0] sm:$0xff]
        %v496 = vld [vmem:[%s398 + $0xb8] sm:$0xff]
        %v497 = vld [vmem:[%s398 + $0xc0] sm:$0xff]
        %v498 = vld [vmem:[%s398 + $0xc8] sm:$0xff]
        %v499 = vld [vmem:[%s398 + $0xd0] sm:$0xff]
        %v500 = vld [vmem:[%s398 + $0xd8] sm:$0xff]
        %v501 = vld [vmem:[%s398 + $0xe0] sm:$0xff]
        %v502 = vld [vmem:[%s398 + $0xe8] sm:$0xff]
        %v503 = vld [vmem:[%s398 + $0xf0] sm:$0xff]
        %v504 = vld [vmem:[%s398 + $0xf8] sm:$0xff]
        %v505 = vld [vmem:[%s398 + $0x100] sm:$0xff]
        %v506 = vld [vmem:[%s398 + $0x108] sm:$0xff]
        %v507 = vld [vmem:[%s398 + $0x110] sm:$0xff]
        %v508 = vld [vmem:[%s398 + $0x118] sm:$0xff]
        %v509 = vld [vmem:[%s398 + $0x120] sm:$0xff]
        %v510 = vld [vmem:[%s398 + $0x128] sm:$0xff]
        %v511 = vld [vmem:[%s398 + $0x130] sm:$0xff]
        %v512 = vld [vmem:[%s398 + $0x138] sm:$0xff]
        %v513 = vld [vmem:[%s398 + $0x140] sm:$0xff]
        %v514 = vld [vmem:[%s398 + $0x148] sm:$0xff]
        %v515 = vld [vmem:[%s398 + $0x150] sm:$0xff]
        %v516 = vld [vmem:[%s398 + $0x158] sm:$0xff]
        %v517 = vld [vmem:[%s398 + $0x160] sm:$0xff]
        %v518 = vld [vmem:[%s398 + $0x168] sm:$0xff]
        %v519 = vld [vmem:[%s398 + $0x170] sm:$0xff]
        %v520 = vld [vmem:[%s398 + $0x178] sm:$0xff]
        %v521 = vld [vmem:[%s398 + $0x180] sm:$0xff]
        %v522 = vld [vmem:[%s398 + $0x188] sm:$0xff]
        %v523 = vld [vmem:[%s398 + $0x190] sm:$0xff]
        %v524 = vld [vmem:[%s398 + $0x198] sm:$0xff]
        %v525 = vld [vmem:[%s398 + $0x1a0] sm:$0xff]
        %v526 = vld [vmem:[%s398 + $0x1a8] sm:$0xff]
        %v527 = vld [vmem:[%s398 + $0x1b0] sm:$0xff]
        %v528 = vld [vmem:[%s398 + $0x1b8] sm:$0xff]
        %v529 = vld [vmem:[%s398 + $0x1c0] sm:$0xff]
        %v530 = vld [vmem:[%s398 + $0x1c8] sm:$0xff]
        %v531 = vld [vmem:[%s398 + $0x1d0] sm:$0xff]
        %v532 = vld [vmem:[%s398 + $0x1d8] sm:$0xff]
        %v533 = vld [vmem:[%s398 + $0x1e0] sm:$0xff]
        %v534 = vld [vmem:[%s398 + $0x1e8] sm:$0xff]
        %v535 = vld [vmem:[%s398 + $0x1f0] sm:$0xff]
        %v536 = vld [vmem:[%s398 + $0x1f8] sm:$0xff]
        %v537 = vld [vmem:[%s398 + $0x200] sm:$0xff]
        %v538 = vld [vmem:[%s398 + $0x208] sm:$0xff]
        %v539 = vld [vmem:[%s398 + $0x210] sm:$0xff]
        %v540 = vld [vmem:[%s398 + $0x218] sm:$0xff]
        %v541 = vld [vmem:[%s398 + $0x220] sm:$0xff]
        %v542 = vld [vmem:[%s398 + $0x228] sm:$0xff]
        %v543 = vld [vmem:[%s398 + $0x230] sm:$0xff]
        %v544 = vld [vmem:[%s398 + $0x238] sm:$0xff]
        %v545 = vld [vmem:[%s398 + $0x240] sm:$0xff]
        %v546 = vld [vmem:[%s398 + $0x248] sm:$0xff]
        %v547 = vld [vmem:[%s398 + $0x250] sm:$0xff]
        %v548 = vld [vmem:[%s398 + $0x258] sm:$0xff]
        %v549 = vld [vmem:[%s398 + $0x260] sm:$0xff]
        %v550 = vld [vmem:[%s398 + $0x268] sm:$0xff]
        %v551 = vld [vmem:[%s398 + $0x270] sm:$0xff]
        %v552 = vld [vmem:[%s398 + $0x278] sm:$0xff]
        %v553 = vld [vmem:[%s398 + $0x280] sm:$0xff]
        %v554 = vld [vmem:[%s398 + $0x288] sm:$0xff]
        %v555 = vld [vmem:[%s398 + $0x290] sm:$0xff]
        %v556 = vld [vmem:[%s398 + $0x298] sm:$0xff]
        %v557 = vld [vmem:[%s398 + $0x2a0] sm:$0xff]
        %v558 = vld [vmem:[%s398 + $0x2a8] sm:$0xff]
        %v559 = vld [vmem:[%s398 + $0x2b0] sm:$0xff]
        %v560 = vld [vmem:[%s398 + $0x2b8] sm:$0xff]
        %v561 = vld [vmem:[%s398 + $0x2c0] sm:$0xff]
        %v562 = vld [vmem:[%s398 + $0x2c8] sm:$0xff]
        %v563 = vld [vmem:[%s398 + $0x2d0] sm:$0xff]
        %v564 = vld [vmem:[%s398 + $0x2d8] sm:$0xff]
        %v565 = vld [vmem:[%s398 + $0x2e0] sm:$0xff]
        %v566 = vld [vmem:[%s398 + $0x2e8] sm:$0xff]
        %v567 = vld [vmem:[%s398 + $0x2f0] sm:$0xff]
        %v568 = vld [vmem:[%s398 + $0x2f8] sm:$0xff]
        %v569 = vld [vmem:[%s398 + $0x300] sm:$0xff]
        %v570 = vld [vmem:[%s398 + $0x308] sm:$0xff]
        %v571 = vld [vmem:[%s398 + $0x310] sm:$0xff]
        %v572 = vld [vmem:[%s398 + $0x318] sm:$0xff]
        %v573 = vld [vmem:[%s398 + $0x320] sm:$0xff]
        %v574 = vld [vmem:[%s398 + $0x328] sm:$0xff]
        %v575 = vld [vmem:[%s398 + $0x330] sm:$0xff]
        %v576 = vld [vmem:[%s398 + $0x338] sm:$0xff]
        %v577 = vld [vmem:[%s398 + $0x340] sm:$0xff]
        %v578 = vld [vmem:[%s398 + $0x348] sm:$0xff]
        %v579 = vld [vmem:[%s398 + $0x350] sm:$0xff]
        %v580 = vld [vmem:[%s398 + $0x358] sm:$0xff]
        %v581 = vld [vmem:[%s398 + $0x360] sm:$0xff]
        %v582 = vld [vmem:[%s398 + $0x368] sm:$0xff]
        %v583 = vld [vmem:[%s398 + $0x370] sm:$0xff]
        %v584 = vld [vmem:[%s398 + $0x378] sm:$0xff]
        %v585 = vld [vmem:[%s398 + $0x380] sm:$0xff]
        %v586 = vld [vmem:[%s398 + $0x388] sm:$0xff]
        %v587 = vld [vmem:[%s398 + $0x390] sm:$0xff]
        %v588 = vld [vmem:[%s398 + $0x398] sm:$0xff]
        %v589 = vld [vmem:[%s398 + $0x3a0] sm:$0xff]
        %v590 = vld [vmem:[%s398 + $0x3a8] sm:$0xff]
        %v591 = vld [vmem:[%s398 + $0x3b0] sm:$0xff]
        %v592 = vld [vmem:[%s398 + $0x3b8] sm:$0xff]
        %v593 = vld [vmem:[%s398 + $0x3c0] sm:$0xff]
        %v594 = vld [vmem:[%s398 + $0x3c8] sm:$0xff]
        %v595 = vld [vmem:[%s398 + $0x3d0] sm:$0xff]
        %v596 = vld [vmem:[%s398 + $0x3d8] sm:$0xff]
        %v597 = vld [vmem:[%s398 + $0x3e0] sm:$0xff]
        %v598 = vld [vmem:[%s398 + $0x3e8] sm:$0xff]
        %v599 = vld [vmem:[%s398 + $0x3f0] sm:$0xff]
        %v600 = vld [vmem:[%s398 + $0x3f8] sm:$0xff]
        %v601 = vld [vmem:[%s398 + $0x400] sm:$0xff]
        %v602 = vld [vmem:[%s398 + $0x408] sm:$0xff]
        %v603 = vld [vmem:[%s398 + $0x410] sm:$0xff]
        %v604 = vld [vmem:[%s398 + $0x418] sm:$0xff]
        %v605 = vld [vmem:[%s398 + $0x420] sm:$0xff]
        %v606 = vld [vmem:[%s398 + $0x428] sm:$0xff]
        %v607 = vld [vmem:[%s398 + $0x430] sm:$0xff]
        %v608 = vld [vmem:[%s398 + $0x438] sm:$0xff]
        %v609 = vld [vmem:[%s398 + $0x440] sm:$0xff]
        %v610 = vld [vmem:[%s398 + $0x448] sm:$0xff]
        %v611 = vld [vmem:[%s398 + $0x450] sm:$0xff]
        %v612 = vld [vmem:[%s398 + $0x458] sm:$0xff]
        %v613 = vld [vmem:[%s398 + $0x460] sm:$0xff]
        %v614 = vld [vmem:[%s398 + $0x468] sm:$0xff]
        %v615 = vld [vmem:[%s398 + $0x470] sm:$0xff]
        %v616 = vld [vmem:[%s398 + $0x478] sm:$0xff]
        %v617 = vld [vmem:[%s398 + $0x480] sm:$0xff]
        %v618 = vld [vmem:[%s398 + $0x488] sm:$0xff]
        %v619 = vld [vmem:[%s398 + $0x490] sm:$0xff]
        %v620 = vld [vmem:[%s398 + $0x498] sm:$0xff]
        %v621 = vld [vmem:[%s398 + $0x4a0] sm:$0xff]
        %v622 = vld [vmem:[%s398 + $0x4a8] sm:$0xff]
        %v623 = vld [vmem:[%s398 + $0x4b0] sm:$0xff]
        %v624 = vld [vmem:[%s398 + $0x4b8] sm:$0xff]
        %v625 = vld [vmem:[%s398 + $0x4c0] sm:$0xff]
        %v626 = vld [vmem:[%s398 + $0x4c8] sm:$0xff]
        %v627 = vld [vmem:[%s398 + $0x4d0] sm:$0xff]
        %v628 = vld [vmem:[%s398 + $0x4d8] sm:$0xff]
        %v629 = vld [vmem:[%s398 + $0x4e0] sm:$0xff]
        %v630 = vld [vmem:[%s398 + $0x4e8] sm:$0xff]
        %v631 = vld [vmem:[%s398 + $0x4f0] sm:$0xff]
        %v632 = vld [vmem:[%s398 + $0x4f8] sm:$0xff]
        %v633 = vld [vmem:[%s398 + $0x500] sm:$0xff]
        %v634 = vld [vmem:[%s398 + $0x508] sm:$0xff]
        %v635 = vld [vmem:[%s398 + $0x510] sm:$0xff]
        %v636 = vld [vmem:[%s398 + $0x518] sm:$0xff]
        %v637 = vld [vmem:[%s398 + $0x520] sm:$0xff]
        %v638 = vld [vmem:[%s398 + $0x528] sm:$0xff]
        %v639 = vld [vmem:[%s398 + $0x530] sm:$0xff]
        %v640 = vld [vmem:[%s398 + $0x538] sm:$0xff]
        %v641 = vld [vmem:[%s398 + $0x540] sm:$0xff]
        %v642 = vld [vmem:[%s398 + $0x548] sm:$0xff]
        %v643 = vld [vmem:[%s398 + $0x550] sm:$0xff]
        %v644 = vld [vmem:[%s398 + $0x558] sm:$0xff]
        %v645 = vld [vmem:[%s398 + $0x560] sm:$0xff]
        %v646 = vld [vmem:[%s398 + $0x568] sm:$0xff]
        %v647 = vld [vmem:[%s398 + $0x570] sm:$0xff]
        %v648 = vld [vmem:[%s398 + $0x578] sm:$0xff]
        %v649 = vld [vmem:[%s398 + $0x580] sm:$0xff]
        %v650 = vld [vmem:[%s398 + $0x588] sm:$0xff]
        %v651 = vld [vmem:[%s398 + $0x590] sm:$0xff]
        %v652 = vld [vmem:[%s398 + $0x598] sm:$0xff]
        %v653 = vld [vmem:[%s398 + $0x5a0] sm:$0xff]
        %v654 = vld [vmem:[%s398 + $0x5a8] sm:$0xff]
        %v655 = vld [vmem:[%s398 + $0x5b0] sm:$0xff]
        %v656 = vld [vmem:[%s398 + $0x5b8] sm:$0xff]
        %v657 = vld [vmem:[%s398 + $0x5c0] sm:$0xff]
        %v658 = vld [vmem:[%s398 + $0x5c8] sm:$0xff]
        %v659 = vld [vmem:[%s398 + $0x5d0] sm:$0xff]
        %v660 = vld [vmem:[%s398 + $0x5d8] sm:$0xff]
        %v661 = vld [vmem:[%s398 + $0x5e0] sm:$0xff]
        %v662 = vld [vmem:[%s398 + $0x5e8] sm:$0xff]
        %v663 = vld [vmem:[%s398 + $0x5f0] sm:$0xff]
        %v664 = vld [vmem:[%s398 + $0x5f8] sm:$0xff]
        %v665 = vld [vmem:[%s398 + $0x600] sm:$0xff]
        %v666 = vld [vmem:[%s398 + $0x608] sm:$0xff]
        %v667 = vld [vmem:[%s398 + $0x610] sm:$0xff]
        %v668 = vld [vmem:[%s398 + $0x618] sm:$0xff]
        %v669 = vld [vmem:[%s398 + $0x620] sm:$0xff]
        %v670 = vld [vmem:[%s398 + $0x628] sm:$0xff]
        %v671 = vld [vmem:[%s398 + $0x630] sm:$0xff]
        %v672 = vld [vmem:[%s398 + $0x638] sm:$0xff]
        %v673 = vld [vmem:[%s398 + $0x640] sm:$0xff]
        %v674 = vld [vmem:[%s398 + $0x648] sm:$0xff]
        %v675 = vld [vmem:[%s398 + $0x650] sm:$0xff]
        %v676 = vld [vmem:[%s398 + $0x658] sm:$0xff]
        %v677 = vld [vmem:[%s398 + $0x660] sm:$0xff]
        %v678 = vld [vmem:[%s398 + $0x668] sm:$0xff]
        %v679 = vld [vmem:[%s398 + $0x670] sm:$0xff]
        %v680 = vld [vmem:[%s398 + $0x678] sm:$0xff]
        %v681 = vld [vmem:[%s398 + $0x680] sm:$0xff]
        %v682 = vld [vmem:[%s398 + $0x688] sm:$0xff]
        %v683 = vld [vmem:[%s398 + $0x690] sm:$0xff]
        %v684 = vld [vmem:[%s398 + $0x698] sm:$0xff]
        %v685 = vld [vmem:[%s398 + $0x6a0] sm:$0xff]
        %v686 = vld [vmem:[%s398 + $0x6a8] sm:$0xff]
        %v687 = vld [vmem:[%s398 + $0x6b0] sm:$0xff]
        %v688 = vld [vmem:[%s398 + $0x6b8] sm:$0xff]
        %v689 = vld [vmem:[%s398 + $0x6c0] sm:$0xff]
        %v690 = vld [vmem:[%s398 + $0x6c8] sm:$0xff]
        %v691 = vld [vmem:[%s398 + $0x6d0] sm:$0xff]
        %v692 = vld [vmem:[%s398 + $0x6d8] sm:$0xff]
        %v693 = vld [vmem:[%s398 + $0x6e0] sm:$0xff]
        %v694 = vld [vmem:[%s398 + $0x6e8] sm:$0xff]
        %v695 = vld [vmem:[%s398 + $0x6f0] sm:$0xff]
        %v696 = vld [vmem:[%s398 + $0x6f8] sm:$0xff]
        %v697 = vld [vmem:[%s398 + $0x700] sm:$0xff]
        %v698 = vld [vmem:[%s398 + $0x708] sm:$0xff]
        %v699 = vld [vmem:[%s398 + $0x710] sm:$0xff]
        %v700 = vld [vmem:[%s398 + $0x718] sm:$0xff]
        %v701 = vld [vmem:[%s398 + $0x720] sm:$0xff]
        %v702 = vld [vmem:[%s398 + $0x728] sm:$0xff]
        %v703 = vld [vmem:[%s398 + $0x730] sm:$0xff]
        %v704 = vld [vmem:[%s398 + $0x738] sm:$0xff]
        %v705 = vld [vmem:[%s398 + $0x740] sm:$0xff]
        %v706 = vld [vmem:[%s398 + $0x748] sm:$0xff]
        %v707 = vld [vmem:[%s398 + $0x750] sm:$0xff]
        %v708 = vld [vmem:[%s398 + $0x758] sm:$0xff]
        %v709 = vld [vmem:[%s398 + $0x760] sm:$0xff]
        %v710 = vld [vmem:[%s398 + $0x768] sm:$0xff]
        %v711 = vld [vmem:[%s398 + $0x770] sm:$0xff]
        %v712 = vld [vmem:[%s398 + $0x778] sm:$0xff]
        %v713 = vld [vmem:[%s398 + $0x780] sm:$0xff]
        %v714 = vld [vmem:[%s398 + $0x788] sm:$0xff]
        %v715 = vld [vmem:[%s398 + $0x790] sm:$0xff]
        %v716 = vld [vmem:[%s398 + $0x798] sm:$0xff]
        %v717 = vld [vmem:[%s398 + $0x7a0] sm:$0xff]
        %v718 = vld [vmem:[%s398 + $0x7a8] sm:$0xff]
        %v719 = vld [vmem:[%s398 + $0x7b0] sm:$0xff]
        %v720 = vld [vmem:[%s398 + $0x7b8] sm:$0xff]
        %v721 = vld [vmem:[%s398 + $0x7c0] sm:$0xff]
        %v722 = vld [vmem:[%s398 + $0x7c8] sm:$0xff]
        %v723 = vld [vmem:[%s398 + $0x7d0] sm:$0xff]
        %v724 = vld [vmem:[%s398 + $0x7d8] sm:$0xff]
        %v725 = vld [vmem:[%s398 + $0x7e0] sm:$0xff]
        %v726 = vld [vmem:[%s398 + $0x7e8] sm:$0xff]
        %v727 = vld [vmem:[%s398 + $0x7f0] sm:$0xff]
        %v728 = vld [vmem:[%s398 + $0x7f8] sm:$0xff]
        %v729 = vld [vmem:[%s398 + $0x800] sm:$0xff]
        %v730 = vld [vmem:[%s398 + $0x808] sm:$0xff]
        %v731 = vld [vmem:[%s398 + $0x810] sm:$0xff]
        %v732 = vld [vmem:[%s398 + $0x818] sm:$0xff]
        %v733 = vld [vmem:[%s398 + $0x820] sm:$0xff]
        %v734 = vld [vmem:[%s398 + $0x828] sm:$0xff]
        %v735 = vld [vmem:[%s398 + $0x830] sm:$0xff]
        %v736 = vld [vmem:[%s398 + $0x838] sm:$0xff]
        %v737 = vld [vmem:[%s398 + $0x840] sm:$0xff]
        %v738 = vld [vmem:[%s398 + $0x848] sm:$0xff]
        %v739 = vld [vmem:[%s398 + $0x850] sm:$0xff]
        %v740 = vld [vmem:[%s398 + $0x858] sm:$0xff]
        %v741 = vld [vmem:[%s398 + $0x860] sm:$0xff]
        %v742 = vld [vmem:[%s398 + $0x868] sm:$0xff]
        %v743 = vld [vmem:[%s398 + $0x870] sm:$0xff]
        %v744 = vld [vmem:[%s398 + $0x878] sm:$0xff]
        %v745 = vld [vmem:[%s398 + $0x880] sm:$0xff]
        %v746 = vld [vmem:[%s398 + $0x888] sm:$0xff]
        %v747 = vld [vmem:[%s398 + $0x890] sm:$0xff]
        %v748 = vld [vmem:[%s398 + $0x898] sm:$0xff]
        %v749 = vld [vmem:[%s398 + $0x8a0] sm:$0xff]
        %v750 = vld [vmem:[%s398 + $0x8a8] sm:$0xff]
        %v751 = vld [vmem:[%s398 + $0x8b0] sm:$0xff]
        %v752 = vld [vmem:[%s398 + $0x8b8] sm:$0xff]
        %v753 = vld [vmem:[%s398 + $0x8c0] sm:$0xff]
        %v754 = vld [vmem:[%s398 + $0x8c8] sm:$0xff]
        %v755 = vld [vmem:[%s398 + $0x8d0] sm:$0xff]
        %v756 = vld [vmem:[%s398 + $0x8d8] sm:$0xff]
        %v757 = vld [vmem:[%s398 + $0x8e0] sm:$0xff]
        %v758 = vld [vmem:[%s398 + $0x8e8] sm:$0xff]
        %v759 = vld [vmem:[%s398 + $0x8f0] sm:$0xff]
        %v760 = vld [vmem:[%s398 + $0x8f8] sm:$0xff]
        %v761 = vld [vmem:[%s398 + $0x900] sm:$0xff]
        %v762 = vld [vmem:[%s398 + $0x908] sm:$0xff]
        %v763 = vld [vmem:[%s398 + $0x910] sm:$0xff]
        %v764 = vld [vmem:[%s398 + $0x918] sm:$0xff]
        %v765 = vld [vmem:[%s398 + $0x920] sm:$0xff]
        %v766 = vld [vmem:[%s398 + $0x928] sm:$0xff]
        %v767 = vld [vmem:[%s398 + $0x930] sm:$0xff]
        %v768 = vld [vmem:[%s398 + $0x938] sm:$0xff]
        %v769 = vld [vmem:[%s398 + $0x940] sm:$0xff]
        %v770 = vld [vmem:[%s398 + $0x948] sm:$0xff]
        %v771 = vld [vmem:[%s398 + $0x950] sm:$0xff]
        %v772 = vld [vmem:[%s398 + $0x958] sm:$0xff]
        %v773 = vld [vmem:[%s398 + $0x960] sm:$0xff]
        %v774 = vld [vmem:[%s398 + $0x968] sm:$0xff]
        %v775 = vld [vmem:[%s398 + $0x970] sm:$0xff]
        %v776 = vld [vmem:[%s398 + $0x978] sm:$0xff]
        %v777 = vld [vmem:[%s398 + $0x980] sm:$0xff]
        %v778 = vld [vmem:[%s398 + $0x988] sm:$0xff]
        %v779 = vld [vmem:[%s398 + $0x990] sm:$0xff]
        %v780 = vld [vmem:[%s398 + $0x998] sm:$0xff]
        %v781 = vld [vmem:[%s398 + $0x9a0] sm:$0xff]
        %v782 = vld [vmem:[%s398 + $0x9a8] sm:$0xff]
        %v783 = vld [vmem:[%s398 + $0x9b0] sm:$0xff]
        %v784 = vld [vmem:[%s398 + $0x9b8] sm:$0xff]
        %v785 = vld [vmem:[%s398 + $0x9c0] sm:$0xff]
        %v786 = vld [vmem:[%s398 + $0x9c8] sm:$0xff]
        %v787 = vld [vmem:[%s398 + $0x9d0] sm:$0xff]
        %v788 = vld [vmem:[%s398 + $0x9d8] sm:$0xff]
        %v789 = vld [vmem:[%s398 + $0x9e0] sm:$0xff]
        %v790 = vld [vmem:[%s398 + $0x9e8] sm:$0xff]
        %v791 = vld [vmem:[%s398 + $0x9f0] sm:$0xff]
        %v792 = vld [vmem:[%s398 + $0x9f8] sm:$0xff]
        %v793 = vld [vmem:[%s398 + $0xa00] sm:$0xff]
        %v794 = vld [vmem:[%s398 + $0xa08] sm:$0xff]
        %v795 = vld [vmem:[%s398 + $0xa10] sm:$0xff]
        %v796 = vld [vmem:[%s398 + $0xa18] sm:$0xff]
        %v797 = vld [vmem:[%s398 + $0xa20] sm:$0xff]
        %v798 = vld [vmem:[%s398 + $0xa28] sm:$0xff]
        %v799 = vld [vmem:[%s398 + $0xa30] sm:$0xff]
        %v800 = vld [vmem:[%s398 + $0xa38] sm:$0xff]
        %v801 = vld [vmem:[%s398 + $0xa40] sm:$0xff]
        %v802 = vld [vmem:[%s398 + $0xa48] sm:$0xff]
        %v803 = vld [vmem:[%s398 + $0xa50] sm:$0xff]
        %v804 = vld [vmem:[%s398 + $0xa58] sm:$0xff]
        %v805 = vld [vmem:[%s398 + $0xa60] sm:$0xff]
        %v806 = vld [vmem:[%s398 + $0xa68] sm:$0xff]
        %v807 = vld [vmem:[%s398 + $0xa70] sm:$0xff]
        %v808 = vld [vmem:[%s398 + $0xa78] sm:$0xff]
        %v809 = vld [vmem:[%s398 + $0xa80] sm:$0xff]
        %v810 = vld [vmem:[%s398 + $0xa88] sm:$0xff]
        %v811 = vld [vmem:[%s398 + $0xa90] sm:$0xff]
        %v812 = vld [vmem:[%s398 + $0xa98] sm:$0xff]
        %v813 = vld [vmem:[%s398 + $0xaa0] sm:$0xff]
        %v814 = vld [vmem:[%s398 + $0xaa8] sm:$0xff]
        %v815 = vld [vmem:[%s398 + $0xab0] sm:$0xff]
        %v816 = vld [vmem:[%s398 + $0xab8] sm:$0xff]
        %v817 = vld [vmem:[%s398 + $0xac0] sm:$0xff]
        %v818 = vld [vmem:[%s398 + $0xac8] sm:$0xff]
        %v819 = vld [vmem:[%s398 + $0xad0] sm:$0xff]
        %v820 = vld [vmem:[%s398 + $0xad8] sm:$0xff]
        %v821 = vld [vmem:[%s398 + $0xae0] sm:$0xff]
        %v822 = vld [vmem:[%s398 + $0xae8] sm:$0xff]
        %v823 = vld [vmem:[%s398 + $0xaf0] sm:$0xff]
        %v824 = vld [vmem:[%s398 + $0xaf8] sm:$0xff]
        %v825 = vld [vmem:[%s398 + $0xb00] sm:$0xff]
        %v826 = vld [vmem:[%s398 + $0xb08] sm:$0xff]
        %v827 = vld [vmem:[%s398 + $0xb10] sm:$0xff]
        %v828 = vld [vmem:[%s398 + $0xb18] sm:$0xff]
        %v829 = vld [vmem:[%s398 + $0xb20] sm:$0xff]
        %v830 = vld [vmem:[%s398 + $0xb28] sm:$0xff]
        %v831 = vld [vmem:[%s398 + $0xb30] sm:$0xff]
        %v832 = vld [vmem:[%s398 + $0xb38] sm:$0xff]
        %v833 = vld [vmem:[%s398 + $0xb40] sm:$0xff]
        %v834 = vld [vmem:[%s398 + $0xb48] sm:$0xff]
        %v835 = vld [vmem:[%s398 + $0xb50] sm:$0xff]
        %v836 = vld [vmem:[%s398 + $0xb58] sm:$0xff]
        %v837 = vld [vmem:[%s398 + $0xb60] sm:$0xff]
        %v838 = vld [vmem:[%s398 + $0xb68] sm:$0xff]
        %v839 = vld [vmem:[%s398 + $0xb70] sm:$0xff]
        %v840 = vld [vmem:[%s398 + $0xb78] sm:$0xff]
        %v841 = vld [vmem:[%s398 + $0xb80] sm:$0xff]
        %v842 = vld [vmem:[%s398 + $0xb88] sm:$0xff]
        %v843 = vld [vmem:[%s398 + $0xb90] sm:$0xff]
        %v844 = vld [vmem:[%s398 + $0xb98] sm:$0xff]
        %v845 = vld [vmem:[%s398 + $0xba0] sm:$0xff]
        %v846 = vld [vmem:[%s398 + $0xba8] sm:$0xff]
        %v847 = vld [vmem:[%s398 + $0xbb0] sm:$0xff]
        %v848 = vld [vmem:[%s398 + $0xbb8] sm:$0xff]
        %v849 = vld [vmem:[%s398 + $0xbc0] sm:$0xff]
        %v850 = vld [vmem:[%s398 + $0xbc8] sm:$0xff]
        %v851 = vld [vmem:[%s398 + $0xbd0] sm:$0xff]
        %v852 = vld [vmem:[%s398 + $0xbd8] sm:$0xff]
        %v853 = vld [vmem:[%s398 + $0xbe0] sm:$0xff]
        %v854 = vld [vmem:[%s398 + $0xbe8] sm:$0xff]
        %v855 = vld [vmem:[%s398 + $0xbf0] sm:$0xff]
        %v856 = vld [vmem:[%s398 + $0xbf8] sm:$0xff]
        %v857 = vld [vmem:[%s398 + $0xc00] sm:$0xff]
        %v858 = vld [vmem:[%s398 + $0xc08] sm:$0xff]
        %v859 = vld [vmem:[%s398 + $0xc10] sm:$0xff]
        %v860 = vld [vmem:[%s398 + $0xc18] sm:$0xff]
        %v861 = vld [vmem:[%s398 + $0xc20] sm:$0xff]
        %v862 = vld [vmem:[%s398 + $0xc28] sm:$0xff]
        %v863 = vld [vmem:[%s398 + $0xc30] sm:$0xff]
        %v864 = vld [vmem:[%s398 + $0xc38] sm:$0xff]
        %v865 = vld [vmem:[%s398 + $0xc40] sm:$0xff]
        %v866 = vld [vmem:[%s398 + $0xc48] sm:$0xff]
        %v867 = vld [vmem:[%s398 + $0xc50] sm:$0xff]
        %v868 = vld [vmem:[%s398 + $0xc58] sm:$0xff]
        %v869 = vld [vmem:[%s398 + $0xc60] sm:$0xff]
        %v870 = vld [vmem:[%s398 + $0xc68] sm:$0xff]
        %v871 = vld [vmem:[%s398 + $0xc70] sm:$0xff]
        %v872 = vld [vmem:[%s398 + $0xc78] sm:$0xff]
        %v873 = vld [vmem:[%s398 + $0xc80] sm:$0xff]
        %v874 = vld [vmem:[%s398 + $0xc88] sm:$0xff]
        %v875 = vld [vmem:[%s398 + $0xc90] sm:$0xff]
        %v876 = vld [vmem:[%s398 + $0xc98] sm:$0xff]
        %v877 = vld [vmem:[%s398 + $0xca0] sm:$0xff]
        %v878 = vld [vmem:[%s398 + $0xca8] sm:$0xff]
        %v879 = vld [vmem:[%s398 + $0xcb0] sm:$0xff]
        %v880 = vld [vmem:[%s398 + $0xcb8] sm:$0xff]
        %v881 = vld [vmem:[%s398 + $0xcc0] sm:$0xff]
        %v882 = vld [vmem:[%s398 + $0xcc8] sm:$0xff]
        %v883 = vld [vmem:[%s398 + $0xcd0] sm:$0xff]
        %v884 = vld [vmem:[%s398 + $0xcd8] sm:$0xff]
        %v885 = vld [vmem:[%s398 + $0xce0] sm:$0xff]
        %v886 = vld [vmem:[%s398 + $0xce8] sm:$0xff]
        %v887 = vld [vmem:[%s398 + $0xcf0] sm:$0xff]
        %v888 = vld [vmem:[%s398 + $0xcf8] sm:$0xff]
        %v889 = vld [vmem:[%s398 + $0xd00] sm:$0xff]
        %v890 = vld [vmem:[%s398 + $0xd08] sm:$0xff]
        %v891 = vld [vmem:[%s398 + $0xd10] sm:$0xff]
        %v892 = vld [vmem:[%s398 + $0xd18] sm:$0xff]
        %v893 = vld [vmem:[%s398 + $0xd20] sm:$0xff]
        %v894 = vld [vmem:[%s398 + $0xd28] sm:$0xff]
        %v895 = vld [vmem:[%s398 + $0xd30] sm:$0xff]
        %v896 = vld [vmem:[%s398 + $0xd38] sm:$0xff]
        %v897 = vld [vmem:[%s398 + $0xd40] sm:$0xff]
        %v898 = vld [vmem:[%s398 + $0xd48] sm:$0xff]
        %v899 = vld [vmem:[%s398 + $0xd50] sm:$0xff]
        %v900 = vld [vmem:[%s398 + $0xd58] sm:$0xff]
        %v901 = vld [vmem:[%s398 + $0xd60] sm:$0xff]
        %v902 = vld [vmem:[%s398 + $0xd68] sm:$0xff]
        %v903 = vld [vmem:[%s398 + $0xd70] sm:$0xff]
        %v904 = vld [vmem:[%s398 + $0xd78] sm:$0xff]
        %v905 = vld [vmem:[%s398 + $0xd80] sm:$0xff]
        %v906 = vld [vmem:[%s398 + $0xd88] sm:$0xff]
        %v907 = vld [vmem:[%s398 + $0xd90] sm:$0xff]
        %v908 = vld [vmem:[%s398 + $0xd98] sm:$0xff]
        %v909 = vld [vmem:[%s398 + $0xda0] sm:$0xff]
        %v910 = vld [vmem:[%s398 + $0xda8] sm:$0xff]
        %v911 = vld [vmem:[%s398 + $0xdb0] sm:$0xff]
        %v912 = vld [vmem:[%s398 + $0xdb8] sm:$0xff]
        %v913 = vld [vmem:[%s398 + $0xdc0] sm:$0xff]
        %v914 = vld [vmem:[%s398 + $0xdc8] sm:$0xff]
        %v915 = vld [vmem:[%s398 + $0xdd0] sm:$0xff]
        %v916 = vld [vmem:[%s398 + $0xdd8] sm:$0xff]
        %v917 = vld [vmem:[%s398 + $0xde0] sm:$0xff]
        %v918 = vld [vmem:[%s398 + $0xde8] sm:$0xff]
        %v919 = vld [vmem:[%s398 + $0xdf0] sm:$0xff]
        %v920 = vld [vmem:[%s398 + $0xdf8] sm:$0xff]
        %v921 = vld [vmem:[%s398 + $0xe00] sm:$0xff]
        %v922 = vld [vmem:[%s398 + $0xe08] sm:$0xff]
        %v923 = vld [vmem:[%s398 + $0xe10] sm:$0xff]
        %v924 = vld [vmem:[%s398 + $0xe18] sm:$0xff]
        %v925 = vld [vmem:[%s398 + $0xe20] sm:$0xff]
        %v926 = vld [vmem:[%s398 + $0xe28] sm:$0xff]
        %v927 = vld [vmem:[%s398 + $0xe30] sm:$0xff]
        %v928 = vld [vmem:[%s398 + $0xe38] sm:$0xff]
        %v929 = vld [vmem:[%s398 + $0xe40] sm:$0xff]
        %v930 = vld [vmem:[%s398 + $0xe48] sm:$0xff]
        %v931 = vld [vmem:[%s398 + $0xe50] sm:$0xff]
        %v932 = vld [vmem:[%s398 + $0xe58] sm:$0xff]
        %v933 = vld [vmem:[%s398 + $0xe60] sm:$0xff]
        %v934 = vld [vmem:[%s398 + $0xe68] sm:$0xff]
        %v935 = vld [vmem:[%s398 + $0xe70] sm:$0xff]
        %v936 = vld [vmem:[%s398 + $0xe78] sm:$0xff]
        %v937 = vld [vmem:[%s398 + $0xe80] sm:$0xff]
        %v938 = vld [vmem:[%s398 + $0xe88] sm:$0xff]
        %v939 = vld [vmem:[%s398 + $0xe90] sm:$0xff]
        %v940 = vld [vmem:[%s398 + $0xe98] sm:$0xff]
        %v941 = vld [vmem:[%s398 + $0xea0] sm:$0xff]
        %v942 = vld [vmem:[%s398 + $0xea8] sm:$0xff]
        %v943 = vld [vmem:[%s398 + $0xeb0] sm:$0xff]
        %v944 = vld [vmem:[%s398 + $0xeb8] sm:$0xff]
        %v945 = vld [vmem:[%s398 + $0xec0] sm:$0xff]
        %v946 = vld [vmem:[%s398 + $0xec8] sm:$0xff]
        %v947 = vld [vmem:[%s398 + $0xed0] sm:$0xff]
        %v948 = vld [vmem:[%s398 + $0xed8] sm:$0xff]
        %v949 = vld [vmem:[%s398 + $0xee0] sm:$0xff]
        %v950 = vld [vmem:[%s398 + $0xee8] sm:$0xff]
        %v951 = vld [vmem:[%s398 + $0xef0] sm:$0xff]
        %v952 = vld [vmem:[%s398 + $0xef8] sm:$0xff]
        %v953 = vld [vmem:[%s398 + $0xf00] sm:$0xff]
        %v954 = vld [vmem:[%s398 + $0xf08] sm:$0xff]
        %v955 = vld [vmem:[%s398 + $0xf10] sm:$0xff]
        %v956 = vld [vmem:[%s398 + $0xf18] sm:$0xff]
        %v957 = vld [vmem:[%s398 + $0xf20] sm:$0xff]
        %v958 = vld [vmem:[%s398 + $0xf28] sm:$0xff]
        %v959 = vld [vmem:[%s398 + $0xf30] sm:$0xff]
        %v960 = vld [vmem:[%s398 + $0xf38] sm:$0xff]
        %v961 = vld [vmem:[%s398 + $0xf40] sm:$0xff]
        %v962 = vld [vmem:[%s398 + $0xf48] sm:$0xff]
        %v963 = vld [vmem:[%s398 + $0xf50] sm:$0xff]
        %v964 = vld [vmem:[%s398 + $0xf58] sm:$0xff]
        %v965 = vld [vmem:[%s398 + $0xf60] sm:$0xff]
        %v966 = vld [vmem:[%s398 + $0xf68] sm:$0xff]
        %v967 = vld [vmem:[%s398 + $0xf70] sm:$0xff]
        %v968 = vld [vmem:[%s398 + $0xf78] sm:$0xff]
        %v969 = vld [vmem:[%s398 + $0xf80] sm:$0xff]
        %v970 = vld [vmem:[%s398 + $0xf88] sm:$0xff]
        %v971 = vld [vmem:[%s398 + $0xf90] sm:$0xff]
        %v972 = vld [vmem:[%s398 + $0xf98] sm:$0xff]
        %v973 = vld [vmem:[%s398 + $0xfa0] sm:$0xff]
        %v974 = vld [vmem:[%s398 + $0xfa8] sm:$0xff]
        %v975 = vld [vmem:[%s398 + $0xfb0] sm:$0xff]
        %v976 = vld [vmem:[%s398 + $0xfb8] sm:$0xff]
        %v977 = vld [vmem:[%s398 + $0xfc0] sm:$0xff]
        %v978 = vld [vmem:[%s398 + $0xfc8] sm:$0xff]
        %v979 = vld [vmem:[%s398 + $0xfd0] sm:$0xff]
        %v980 = vld [vmem:[%s398 + $0xfd8] sm:$0xff]
        %v981 = vld [vmem:[%s398 + $0xfe0] sm:$0xff]
        %v982 = vld [vmem:[%s398 + $0xfe8] sm:$0xff]
        %v983 = vld [vmem:[%s398 + $0xff0] sm:$0xff]
        %v984 = vld [vmem:[%s398 + $0xff8] sm:$0xff]
        %v985 = vld [vmem:[%s398 + $0x1000] sm:$0xff]
        %v986 = vld [vmem:[%s398 + $0x1008] sm:$0xff]
        %v987 = vld [vmem:[%s398 + $0x1010] sm:$0xff]
        %v988 = vld [vmem:[%s398 + $0x1018] sm:$0xff]
        %v989 = vld [vmem:[%s398 + $0x1020] sm:$0xff]
        %v990 = vld [vmem:[%s398 + $0x1028] sm:$0xff]
        %v991 = vld [vmem:[%s398 + $0x1030] sm:$0xff]
        %v992 = vld [vmem:[%s398 + $0x1038] sm:$0xff]
        %v993 = vld [vmem:[%s398 + $0x1040] sm:$0xff]
        %v994 = vld [vmem:[%s398 + $0x1048] sm:$0xff]
        %v995 = vld [vmem:[%s398 + $0x1050] sm:$0xff]
        %v996 = vld [vmem:[%s398 + $0x1058] sm:$0xff]
        %v997 = vld [vmem:[%s398 + $0x1060] sm:$0xff]
        %v998 = vld [vmem:[%s398 + $0x1068] sm:$0xff]
        %v999 = vld [vmem:[%s398 + $0x1070] sm:$0xff]
        %v1000 = vld [vmem:[%s398 + $0x1078] sm:$0xff]
        %v1001 = vld [vmem:[%s398 + $0x1080] sm:$0xff]
        %v1002 = vld [vmem:[%s398 + $0x1088] sm:$0xff]
        %v1003 = vld [vmem:[%s398 + $0x1090] sm:$0xff]
        %v1004 = vld [vmem:[%s398 + $0x1098] sm:$0xff]
        %v1005 = vld [vmem:[%s398 + $0x10a0] sm:$0xff]
        %v1006 = vld [vmem:[%s398 + $0x10a8] sm:$0xff]
        %v1007 = vld [vmem:[%s398 + $0x10b0] sm:$0xff]
        %v1008 = vld [vmem:[%s398 + $0x10b8] sm:$0xff]
        %v1009 = vld [vmem:[%s398 + $0x10c0] sm:$0xff]
        %v1010 = vld [vmem:[%s398 + $0x10c8] sm:$0xff]
        %v1011 = vld [vmem:[%s398 + $0x10d0] sm:$0xff]
        %v1012 = vld [vmem:[%s398 + $0x10d8] sm:$0xff]
        %v1013 = vld [vmem:[%s398 + $0x10e0] sm:$0xff]
        %v1014 = vld [vmem:[%s398 + $0x10e8] sm:$0xff]
        %v1015 = vld [vmem:[%s398 + $0x10f0] sm:$0xff]
        %v1016 = vld [vmem:[%s398 + $0x10f8] sm:$0xff]
        %v1017 = vld [vmem:[%s398 + $0x1100] sm:$0xff]
        %v1018 = vld [vmem:[%s398 + $0x1108] sm:$0xff]
        %v1019 = vld [vmem:[%s398 + $0x1110] sm:$0xff]
        %v1020 = vld [vmem:[%s398 + $0x1118] sm:$0xff]
        %v1021 = vld [vmem:[%s398 + $0x1120] sm:$0xff]
        %v1022 = vld [vmem:[%s398 + $0x1128] sm:$0xff]
        %v1023 = vld [vmem:[%s398 + $0x1130] sm:$0xff]
        %v1024 = vld [vmem:[%s398 + $0x1138] sm:$0xff]
        %v1025 = vld [vmem:[%s398 + $0x1140] sm:$0xff]
        %v1026 = vld [vmem:[%s398 + $0x1148] sm:$0xff]
        %v1027 = vld [vmem:[%s398 + $0x1150] sm:$0xff]
        %v1028 = vld [vmem:[%s398 + $0x1158] sm:$0xff]
        %v1029 = vld [vmem:[%s398 + $0x1160] sm:$0xff]
        %v1030 = vld [vmem:[%s398 + $0x1168] sm:$0xff]
        %v1031 = vld [vmem:[%s398 + $0x1170] sm:$0xff]
        %v1032 = vld [vmem:[%s398 + $0x1178] sm:$0xff]
        %v1033 = vld [vmem:[%s398 + $0x1180] sm:$0xff]
        %v1034 = vld [vmem:[%s398 + $0x1188] sm:$0xff]
        %v1035 = vld [vmem:[%s398 + $0x1190] sm:$0xff]
        %v1036 = vld [vmem:[%s398 + $0x1198] sm:$0xff]
        %v1037 = vld [vmem:[%s398 + $0x11a0] sm:$0xff]
        %v1038 = vld [vmem:[%s398 + $0x11a8] sm:$0xff]
        %v1039 = vld [vmem:[%s398 + $0x11b0] sm:$0xff]
        %v1040 = vld [vmem:[%s398 + $0x11b8] sm:$0xff]
        %v1041 = vld [vmem:[%s398 + $0x11c0] sm:$0xff]
        %v1042 = vld [vmem:[%s398 + $0x11c8] sm:$0xff]
        %v1043 = vld [vmem:[%s398 + $0x11d0] sm:$0xff]
        %v1044 = vld [vmem:[%s398 + $0x11d8] sm:$0xff]
        %v1045 = vld [vmem:[%s398 + $0x11e0] sm:$0xff]
        %v1046 = vld [vmem:[%s398 + $0x11e8] sm:$0xff]
        %v1047 = vld [vmem:[%s398 + $0x11f0] sm:$0xff]
        %v1048 = vld [vmem:[%s398 + $0x11f8] sm:$0xff]
        %v1049 = vld [vmem:[%s398 + $0x1200] sm:$0xff]
        %v1050 = vld [vmem:[%s398 + $0x1208] sm:$0xff]
        %v1051 = vld [vmem:[%s398 + $0x1210] sm:$0xff]
        %v1052 = vld [vmem:[%s398 + $0x1218] sm:$0xff]
        %v1053 = vld [vmem:[%s398 + $0x1220] sm:$0xff]
        %v1054 = vld [vmem:[%s398 + $0x1228] sm:$0xff]
        %v1055 = vld [vmem:[%s398 + $0x1230] sm:$0xff]
        %v1056 = vld [vmem:[%s398 + $0x1238] sm:$0xff]
        %v1057 = vld [vmem:[%s398 + $0x1240] sm:$0xff]
        %v1058 = vld [vmem:[%s398 + $0x1248] sm:$0xff]
        %v1059 = vld [vmem:[%s398 + $0x1250] sm:$0xff]
        %v1060 = vld [vmem:[%s398 + $0x1258] sm:$0xff]
        %v1061 = vld [vmem:[%s398 + $0x1260] sm:$0xff]
        %v1062 = vld [vmem:[%s398 + $0x1268] sm:$0xff]
        %v1063 = vld [vmem:[%s398 + $0x1270] sm:$0xff]
        %v1064 = vld [vmem:[%s398 + $0x1278] sm:$0xff]
        %v1065 = vld [vmem:[%s398 + $0x1280] sm:$0xff]
        %v1066 = vld [vmem:[%s398 + $0x1288] sm:$0xff]
        %v1067 = vld [vmem:[%s398 + $0x1290] sm:$0xff]
        %v1068 = vld [vmem:[%s398 + $0x1298] sm:$0xff]
        %v1069 = vld [vmem:[%s398 + $0x12a0] sm:$0xff]
        %v1070 = vld [vmem:[%s398 + $0x12a8] sm:$0xff]
        %v1071 = vld [vmem:[%s398 + $0x12b0] sm:$0xff]
        %v1072 = vld [vmem:[%s398 + $0x12b8] sm:$0xff]
        %v1073 = vld [vmem:[%s398 + $0x12c0] sm:$0xff]
        %v1074 = vld [vmem:[%s398 + $0x12c8] sm:$0xff]
        %v1075 = vld [vmem:[%s398 + $0x12d0] sm:$0xff]
        %v1076 = vld [vmem:[%s398 + $0x12d8] sm:$0xff]
        %v1077 = vld [vmem:[%s398 + $0x12e0] sm:$0xff]
        %v1078 = vld [vmem:[%s398 + $0x12e8] sm:$0xff]
        %v1079 = vld [vmem:[%s398 + $0x12f0] sm:$0xff]
        %v1080 = vld [vmem:[%s398 + $0x12f8] sm:$0xff]
        %v1081 = vld [vmem:[%s398 + $0x1300] sm:$0xff]
        %v1082 = vld [vmem:[%s398 + $0x1308] sm:$0xff]
        %v1083 = vld [vmem:[%s398 + $0x1310] sm:$0xff]
        %v1084 = vld [vmem:[%s398 + $0x1318] sm:$0xff]
        %v1085 = vld [vmem:[%s398 + $0x1320] sm:$0xff]
        %v1086 = vld [vmem:[%s398 + $0x1328] sm:$0xff]
        %v1087 = vld [vmem:[%s398 + $0x1330] sm:$0xff]
        %v1088 = vld [vmem:[%s398 + $0x1338] sm:$0xff]
        %v1089 = vld [vmem:[%s398 + $0x1340] sm:$0xff]
        %v1090 = vld [vmem:[%s398 + $0x1348] sm:$0xff]
        %v1091 = vld [vmem:[%s398 + $0x1350] sm:$0xff]
        %v1092 = vld [vmem:[%s398 + $0x1358] sm:$0xff]
        %v1093 = vld [vmem:[%s398 + $0x1360] sm:$0xff]
        %v1094 = vld [vmem:[%s398 + $0x1368] sm:$0xff]
        %v1095 = vld [vmem:[%s398 + $0x1370] sm:$0xff]
        %v1096 = vld [vmem:[%s398 + $0x1378] sm:$0xff]
        %v1097 = vld [vmem:[%s398 + $0x1380] sm:$0xff]
        %v1098 = vld [vmem:[%s398 + $0x1388] sm:$0xff]
        %v1099 = vld [vmem:[%s398 + $0x1390] sm:$0xff]
        %v1100 = vld [vmem:[%s398 + $0x1398] sm:$0xff]
        %v1101 = vld [vmem:[%s398 + $0x13a0] sm:$0xff]
        %v1102 = vld [vmem:[%s398 + $0x13a8] sm:$0xff]
        %v1103 = vld [vmem:[%s398 + $0x13b0] sm:$0xff]
        %v1104 = vld [vmem:[%s398 + $0x13b8] sm:$0xff]
        %v1105 = vld [vmem:[%s398 + $0x13c0] sm:$0xff]
        %v1106 = vld [vmem:[%s398 + $0x13c8] sm:$0xff]
        %v1107 = vld [vmem:[%s398 + $0x13d0] sm:$0xff]
        %v1108 = vld [vmem:[%s398 + $0x13d8] sm:$0xff]
        %v1109 = vld [vmem:[%s398 + $0x13e0] sm:$0xff]
        %v1110 = vld [vmem:[%s398 + $0x13e8] sm:$0xff]
        %v1111 = vld [vmem:[%s398 + $0x13f0] sm:$0xff]
        %v1112 = vld [vmem:[%s398 + $0x13f8] sm:$0xff]
        %v1113 = vld [vmem:[%s398 + $0x1400] sm:$0xff]
        %v1114 = vld [vmem:[%s398 + $0x1408] sm:$0xff]
        %v1115 = vld [vmem:[%s398 + $0x1410] sm:$0xff]
        %v1116 = vld [vmem:[%s398 + $0x1418] sm:$0xff]
        %v1117 = vld [vmem:[%s398 + $0x1420] sm:$0xff]
        %v1118 = vld [vmem:[%s398 + $0x1428] sm:$0xff]
        %v1119 = vld [vmem:[%s398 + $0x1430] sm:$0xff]
        %v1120 = vld [vmem:[%s398 + $0x1438] sm:$0xff]
        %v1121 = vld [vmem:[%s398 + $0x1440] sm:$0xff]
        %v1122 = vld [vmem:[%s398 + $0x1448] sm:$0xff]
        %v1123 = vld [vmem:[%s398 + $0x1450] sm:$0xff]
        %v1124 = vld [vmem:[%s398 + $0x1458] sm:$0xff]
        %v1125 = vld [vmem:[%s398 + $0x1460] sm:$0xff]
        %v1126 = vld [vmem:[%s398 + $0x1468] sm:$0xff]
        %v1127 = vld [vmem:[%s398 + $0x1470] sm:$0xff]
        %v1128 = vld [vmem:[%s398 + $0x1478] sm:$0xff]
        %v1129 = vld [vmem:[%s398 + $0x1480] sm:$0xff]
        %v1130 = vld [vmem:[%s398 + $0x1488] sm:$0xff]
        %v1131 = vld [vmem:[%s398 + $0x1490] sm:$0xff]
        %v1132 = vld [vmem:[%s398 + $0x1498] sm:$0xff]
        %v1133 = vld [vmem:[%s398 + $0x14a0] sm:$0xff]
        %v1134 = vld [vmem:[%s398 + $0x14a8] sm:$0xff]
        %v1135 = vld [vmem:[%s398 + $0x14b0] sm:$0xff]
        %v1136 = vld [vmem:[%s398 + $0x14b8] sm:$0xff]
        %v1137 = vld [vmem:[%s398 + $0x14c0] sm:$0xff]
        %v1138 = vld [vmem:[%s398 + $0x14c8] sm:$0xff]
        %v1139 = vld [vmem:[%s398 + $0x14d0] sm:$0xff]
        %v1140 = vld [vmem:[%s398 + $0x14d8] sm:$0xff]
        %v1141 = vld [vmem:[%s398 + $0x14e0] sm:$0xff]
        %v1142 = vld [vmem:[%s398 + $0x14e8] sm:$0xff]
        %v1143 = vld [vmem:[%s398 + $0x14f0] sm:$0xff]
        %v1144 = vld [vmem:[%s398 + $0x14f8] sm:$0xff]
        %v1145 = vld [vmem:[%s398 + $0x1500] sm:$0xff]
        %v1146 = vld [vmem:[%s398 + $0x1508] sm:$0xff]
        %v1147 = vld [vmem:[%s398 + $0x1510] sm:$0xff]
        %v1148 = vld [vmem:[%s398 + $0x1518] sm:$0xff]
        %v1149 = vld [vmem:[%s398 + $0x1520] sm:$0xff]
        %v1150 = vld [vmem:[%s398 + $0x1528] sm:$0xff]
        %v1151 = vld [vmem:[%s398 + $0x1530] sm:$0xff]
        %v1152 = vld [vmem:[%s398 + $0x1538] sm:$0xff]
        %v1153 = vld [vmem:[%s398 + $0x1540] sm:$0xff]
        %v1154 = vld [vmem:[%s398 + $0x1548] sm:$0xff]
        %v1155 = vld [vmem:[%s398 + $0x1550] sm:$0xff]
        %v1156 = vld [vmem:[%s398 + $0x1558] sm:$0xff]
        %v1157 = vld [vmem:[%s398 + $0x1560] sm:$0xff]
        %v1158 = vld [vmem:[%s398 + $0x1568] sm:$0xff]
        %v1159 = vld [vmem:[%s398 + $0x1570] sm:$0xff]
        %v1160 = vld [vmem:[%s398 + $0x1578] sm:$0xff]
        %v1161 = vld [vmem:[%s398 + $0x1580] sm:$0xff]
        %v1162 = vld [vmem:[%s398 + $0x1588] sm:$0xff]
        %v1163 = vld [vmem:[%s398 + $0x1590] sm:$0xff]
        %v1164 = vld [vmem:[%s398 + $0x1598] sm:$0xff]
        %v1165 = vld [vmem:[%s398 + $0x15a0] sm:$0xff]
        %v1166 = vld [vmem:[%s398 + $0x15a8] sm:$0xff]
        %v1167 = vld [vmem:[%s398 + $0x15b0] sm:$0xff]
        %v1168 = vld [vmem:[%s398 + $0x15b8] sm:$0xff]
        %v1169 = vld [vmem:[%s398 + $0x15c0] sm:$0xff]
        %v1170 = vld [vmem:[%s398 + $0x15c8] sm:$0xff]
        %v1171 = vld [vmem:[%s398 + $0x15d0] sm:$0xff]
        %v1172 = vld [vmem:[%s398 + $0x15d8] sm:$0xff]
        %v1173 = vld [vmem:[%s398 + $0x15e0] sm:$0xff]
        %v1174 = vld [vmem:[%s398 + $0x15e8] sm:$0xff]
        %v1175 = vld [vmem:[%s398 + $0x15f0] sm:$0xff]
        %v1176 = vld [vmem:[%s398 + $0x15f8] sm:$0xff]
        %v1177 = vld [vmem:[%s398 + $0x1600] sm:$0xff]
        %v1178 = vld [vmem:[%s398 + $0x1608] sm:$0xff]
        %v1179 = vld [vmem:[%s398 + $0x1610] sm:$0xff]
        %v1180 = vld [vmem:[%s398 + $0x1618] sm:$0xff]
        %v1181 = vld [vmem:[%s398 + $0x1620] sm:$0xff]
        %v1182 = vld [vmem:[%s398 + $0x1628] sm:$0xff]
        %v1183 = vld [vmem:[%s398 + $0x1630] sm:$0xff]
        %v1184 = vld [vmem:[%s398 + $0x1638] sm:$0xff]
        %v1185 = vld [vmem:[%s398 + $0x1640] sm:$0xff]
        %v1186 = vld [vmem:[%s398 + $0x1648] sm:$0xff]
        %v1187 = vld [vmem:[%s398 + $0x1650] sm:$0xff]
        %v1188 = vld [vmem:[%s398 + $0x1658] sm:$0xff]
        %v1189 = vld [vmem:[%s398 + $0x1660] sm:$0xff]
        %v1190 = vld [vmem:[%s398 + $0x1668] sm:$0xff]
        %v1191 = vld [vmem:[%s398 + $0x1670] sm:$0xff]
        %v1192 = vld [vmem:[%s398 + $0x1678] sm:$0xff]
        %v1193 = vld [vmem:[%s398 + $0x1680] sm:$0xff]
        %v1194 = vld [vmem:[%s398 + $0x1688] sm:$0xff]
        %v1195 = vld [vmem:[%s398 + $0x1690] sm:$0xff]
        %v1196 = vld [vmem:[%s398 + $0x1698] sm:$0xff]
        %v1197 = vld [vmem:[%s398 + $0x16a0] sm:$0xff]
        %v1198 = vld [vmem:[%s398 + $0x16a8] sm:$0xff]
        %v1199 = vld [vmem:[%s398 + $0x16b0] sm:$0xff]
        %v1200 = vld [vmem:[%s398 + $0x16b8] sm:$0xff]
        %v1201 = vld [vmem:[%s398 + $0x16c0] sm:$0xff]
        %v1202 = vld [vmem:[%s398 + $0x16c8] sm:$0xff]
        %v1203 = vld [vmem:[%s398 + $0x16d0] sm:$0xff]
        %v1204 = vld [vmem:[%s398 + $0x16d8] sm:$0xff]
        %v1205 = vld [vmem:[%s398 + $0x16e0] sm:$0xff]
        %v1206 = vld [vmem:[%s398 + $0x16e8] sm:$0xff]
        %v1207 = vld [vmem:[%s398 + $0x16f0] sm:$0xff]
        %v1208 = vld [vmem:[%s398 + $0x16f8] sm:$0xff]
        %v1209 = vld [vmem:[%s398 + $0x1700] sm:$0xff]
        %v1210 = vld [vmem:[%s398 + $0x1708] sm:$0xff]
        %v1211 = vld [vmem:[%s398 + $0x1710] sm:$0xff]
        %v1212 = vld [vmem:[%s398 + $0x1718] sm:$0xff]
        %v1213 = vld [vmem:[%s398 + $0x1720] sm:$0xff]
        %v1214 = vld [vmem:[%s398 + $0x1728] sm:$0xff]
        %v1215 = vld [vmem:[%s398 + $0x1730] sm:$0xff]
        %v1216 = vld [vmem:[%s398 + $0x1738] sm:$0xff]
        %v1217 = vld [vmem:[%s398 + $0x1740] sm:$0xff]
        %v1218 = vld [vmem:[%s398 + $0x1748] sm:$0xff]
        %v1219 = vld [vmem:[%s398 + $0x1750] sm:$0xff]
        %v1220 = vld [vmem:[%s398 + $0x1758] sm:$0xff]
        %v1221 = vld [vmem:[%s398 + $0x1760] sm:$0xff]
        %v1222 = vld [vmem:[%s398 + $0x1768] sm:$0xff]
        %v1223 = vld [vmem:[%s398 + $0x1770] sm:$0xff]
        %v1224 = vld [vmem:[%s398 + $0x1778] sm:$0xff]
        %v1225 = vld [vmem:[%s398 + $0x1780] sm:$0xff]
        %v1226 = vld [vmem:[%s398 + $0x1788] sm:$0xff]
        %v1227 = vld [vmem:[%s398 + $0x1790] sm:$0xff]
        %v1228 = vld [vmem:[%s398 + $0x1798] sm:$0xff]
        %v1229 = vld [vmem:[%s398 + $0x17a0] sm:$0xff]
        %v1230 = vld [vmem:[%s398 + $0x17a8] sm:$0xff]
        %v1231 = vld [vmem:[%s398 + $0x17b0] sm:$0xff]
        %v1232 = vld [vmem:[%s398 + $0x17b8] sm:$0xff]
        %v1233 = vld [vmem:[%s398 + $0x17c0] sm:$0xff]
        %v1234 = vld [vmem:[%s398 + $0x17c8] sm:$0xff]
        %v1235 = vld [vmem:[%s398 + $0x17d0] sm:$0xff]
        %v1236 = vld [vmem:[%s398 + $0x17d8] sm:$0xff]
        %v1237 = vld [vmem:[%s398 + $0x17e0] sm:$0xff]
        %v1238 = vld [vmem:[%s398 + $0x17e8] sm:$0xff]
        %v1239 = vld [vmem:[%s398 + $0x17f0] sm:$0xff]
        %v1240 = vld [vmem:[%s398 + $0x17f8] sm:$0xff]
        %v1241 = vld [vmem:[%s398 + $0x1800] sm:$0xff]
        %v1242 = vld [vmem:[%s398 + $0x1808] sm:$0xff]
        %v1243 = vld [vmem:[%s398 + $0x1810] sm:$0xff]
        %v1244 = vld [vmem:[%s398 + $0x1818] sm:$0xff]
        %v1245 = vld [vmem:[%s398 + $0x1820] sm:$0xff]
        %v1246 = vld [vmem:[%s398 + $0x1828] sm:$0xff]
        %v1247 = vld [vmem:[%s398 + $0x1830] sm:$0xff]
        %v1248 = vld [vmem:[%s398 + $0x1838] sm:$0xff]
        %v1249 = vld [vmem:[%s398 + $0x1840] sm:$0xff]
        %v1250 = vld [vmem:[%s398 + $0x1848] sm:$0xff]
        %v1251 = vld [vmem:[%s398 + $0x1850] sm:$0xff]
        %v1252 = vld [vmem:[%s398 + $0x1858] sm:$0xff]
        %v1253 = vld [vmem:[%s398 + $0x1860] sm:$0xff]
        %v1254 = vld [vmem:[%s398 + $0x1868] sm:$0xff]
        %v1255 = vld [vmem:[%s398 + $0x1870] sm:$0xff]
        %v1256 = vld [vmem:[%s398 + $0x1878] sm:$0xff]
        %v1264 = vcombine.high %v466, %v466
        %v1266 = vunpack.c.l.s4 1966171168
        %v1267 = vunpack.c.0.s8 %v1266
        %v1268 = vlaneseq
        %v1269 = vshrl.u32 %v1268, 7
        %v1270 = vsub.s32 %v1267, %v1269
        %v1271 = vrot.slane %v466, %v1270
        %v1273 = vunpack.c.l.s4 1966171168
        %v1274 = vunpack.c.0.s8 %v1273
        %v1275 = vlaneseq
        %v1276 = vshrl.u32 %v1275, 7
        %v1277 = vsub.s32 %v1274, %v1276
        %v1278 = vrot.slane %v1264, %v1277
        %v1279 = vcombine.high %v1271, %v1271
        %v1280 = vcombine.high %v1278, %v1278
        %v1282 = vunpack.c.l.s4 1966171168
        %v1283 = vunpack.c.0.s8 %v1282
        %v1284 = vlaneseq
        %v1285 = vshrl.u32 %v1284, 7
        %v1286 = vsub.s32 %v1283, %v1285
        %v1287 = vrot.slane %v1271, %v1286
        %v1289 = vunpack.c.l.s4 1966171168
        %v1290 = vunpack.c.0.s8 %v1289
        %v1291 = vlaneseq
        %v1292 = vshrl.u32 %v1291, 7
        %v1293 = vsub.s32 %v1290, %v1292
        %v1294 = vrot.slane %v1278, %v1293
        %v1296 = vunpack.c.l.s4 1966171168
        %v1297 = vunpack.c.0.s8 %v1296
        %v1298 = vlaneseq
        %v1299 = vshrl.u32 %v1298, 7
        %v1300 = vsub.s32 %v1297, %v1299
        %v1301 = vrot.slane %v1279, %v1300
        %v1303 = vunpack.c.l.s4 1966171168
        %v1304 = vunpack.c.0.s8 %v1303
        %v1305 = vlaneseq
        %v1306 = vshrl.u32 %v1305, 7
        %v1307 = vsub.s32 %v1304, %v1306
        %v1308 = vrot.slane %v1280, %v1307
        %v1309 = vcombine.high %v1287, %v1287
        %v1310 = vcombine.high %v1294, %v1294
        %v1311 = vcombine.high %v1301, %v1301
        %v1312 = vcombine.high %v1308, %v1308
        %v1313 = vcombine.high %v467, %v467
        %v1315 = vunpack.c.l.s4 1966171168
        %v1316 = vunpack.c.0.s8 %v1315
        %v1317 = vlaneseq
        %v1318 = vshrl.u32 %v1317, 7
        %v1319 = vsub.s32 %v1316, %v1318
        %v1320 = vrot.slane %v467, %v1319
        %v1322 = vunpack.c.l.s4 1966171168
        %v1323 = vunpack.c.0.s8 %v1322
        %v1324 = vlaneseq
        %v1325 = vshrl.u32 %v1324, 7
        %v1326 = vsub.s32 %v1323, %v1325
        %v1327 = vrot.slane %v1313, %v1326
        %v1328 = vcombine.high %v1320, %v1320
        %v1329 = vcombine.high %v1327, %v1327
        %v1331 = vunpack.c.l.s4 1966171168
        %v1332 = vunpack.c.0.s8 %v1331
        %v1333 = vlaneseq
        %v1334 = vshrl.u32 %v1333, 7
        %v1335 = vsub.s32 %v1332, %v1334
        %v1336 = vrot.slane %v1320, %v1335
        %v1338 = vunpack.c.l.s4 1966171168
        %v1339 = vunpack.c.0.s8 %v1338
        %v1340 = vlaneseq
        %v1341 = vshrl.u32 %v1340, 7
        %v1342 = vsub.s32 %v1339, %v1341
        %v1343 = vrot.slane %v1327, %v1342
        %v1345 = vunpack.c.l.s4 1966171168
        %v1346 = vunpack.c.0.s8 %v1345
        %v1347 = vlaneseq
        %v1348 = vshrl.u32 %v1347, 7
        %v1349 = vsub.s32 %v1346, %v1348
        %v1350 = vrot.slane %v1328, %v1349
        %v1352 = vunpack.c.l.s4 1966171168
        %v1353 = vunpack.c.0.s8 %v1352
        %v1354 = vlaneseq
        %v1355 = vshrl.u32 %v1354, 7
        %v1356 = vsub.s32 %v1353, %v1355
        %v1357 = vrot.slane %v1329, %v1356
        %v1358 = vcombine.high %v1336, %v1336
        %v1359 = vcombine.high %v1343, %v1343
        %v1360 = vcombine.high %v1350, %v1350
        %v1361 = vcombine.high %v1357, %v1357
        %v1362 = vcombine.high %v468, %v468
        %v1364 = vunpack.c.l.s4 1966171168
        %v1365 = vunpack.c.0.s8 %v1364
        %v1366 = vlaneseq
        %v1367 = vshrl.u32 %v1366, 7
        %v1368 = vsub.s32 %v1365, %v1367
        %v1369 = vrot.slane %v468, %v1368
        %v1371 = vunpack.c.l.s4 1966171168
        %v1372 = vunpack.c.0.s8 %v1371
        %v1373 = vlaneseq
        %v1374 = vshrl.u32 %v1373, 7
        %v1375 = vsub.s32 %v1372, %v1374
        %v1376 = vrot.slane %v1362, %v1375
        %v1377 = vcombine.high %v1369, %v1369
        %v1378 = vcombine.high %v1376, %v1376
        %v1380 = vunpack.c.l.s4 1966171168
        %v1381 = vunpack.c.0.s8 %v1380
        %v1382 = vlaneseq
        %v1383 = vshrl.u32 %v1382, 7
        %v1384 = vsub.s32 %v1381, %v1383
        %v1385 = vrot.slane %v1369, %v1384
        %v1387 = vunpack.c.l.s4 1966171168
        %v1388 = vunpack.c.0.s8 %v1387
        %v1389 = vlaneseq
        %v1390 = vshrl.u32 %v1389, 7
        %v1391 = vsub.s32 %v1388, %v1390
        %v1392 = vrot.slane %v1376, %v1391
        %v1394 = vunpack.c.l.s4 1966171168
        %v1395 = vunpack.c.0.s8 %v1394
        %v1396 = vlaneseq
        %v1397 = vshrl.u32 %v1396, 7
        %v1398 = vsub.s32 %v1395, %v1397
        %v1399 = vrot.slane %v1377, %v1398
        %v1401 = vunpack.c.l.s4 1966171168
        %v1402 = vunpack.c.0.s8 %v1401
        %v1403 = vlaneseq
        %v1404 = vshrl.u32 %v1403, 7
        %v1405 = vsub.s32 %v1402, %v1404
        %v1406 = vrot.slane %v1378, %v1405
        %v1407 = vcombine.high %v1385, %v1385
        %v1408 = vcombine.high %v1392, %v1392
        %v1409 = vcombine.high %v1399, %v1399
        %v1410 = vcombine.high %v1406, %v1406
        %v1411 = vcombine.high %v469, %v469
        %v1413 = vunpack.c.l.s4 1966171168
        %v1414 = vunpack.c.0.s8 %v1413
        %v1415 = vlaneseq
        %v1416 = vshrl.u32 %v1415, 7
        %v1417 = vsub.s32 %v1414, %v1416
        %v1418 = vrot.slane %v469, %v1417
        %v1420 = vunpack.c.l.s4 1966171168
        %v1421 = vunpack.c.0.s8 %v1420
        %v1422 = vlaneseq
        %v1423 = vshrl.u32 %v1422, 7
        %v1424 = vsub.s32 %v1421, %v1423
        %v1425 = vrot.slane %v1411, %v1424
        %v1426 = vcombine.high %v1418, %v1418
        %v1427 = vcombine.high %v1425, %v1425
        %v1429 = vunpack.c.l.s4 1966171168
        %v1430 = vunpack.c.0.s8 %v1429
        %v1431 = vlaneseq
        %v1432 = vshrl.u32 %v1431, 7
        %v1433 = vsub.s32 %v1430, %v1432
        %v1434 = vrot.slane %v1418, %v1433
        %v1436 = vunpack.c.l.s4 1966171168
        %v1437 = vunpack.c.0.s8 %v1436
        %v1438 = vlaneseq
        %v1439 = vshrl.u32 %v1438, 7
        %v1440 = vsub.s32 %v1437, %v1439
        %v1441 = vrot.slane %v1425, %v1440
        %v1443 = vunpack.c.l.s4 1966171168
        %v1444 = vunpack.c.0.s8 %v1443
        %v1445 = vlaneseq
        %v1446 = vshrl.u32 %v1445, 7
        %v1447 = vsub.s32 %v1444, %v1446
        %v1448 = vrot.slane %v1426, %v1447
        %v1450 = vunpack.c.l.s4 1966171168
        %v1451 = vunpack.c.0.s8 %v1450
        %v1452 = vlaneseq
        %v1453 = vshrl.u32 %v1452, 7
        %v1454 = vsub.s32 %v1451, %v1453
        %v1455 = vrot.slane %v1427, %v1454
        %v1456 = vcombine.high %v1434, %v1434
        %v1457 = vcombine.high %v1441, %v1441
        %v1458 = vcombine.high %v1448, %v1448
        %v1459 = vcombine.high %v1455, %v1455
        %v1460 = vcombine.high %v470, %v470
        %v1462 = vunpack.c.l.s4 1966171168
        %v1463 = vunpack.c.0.s8 %v1462
        %v1464 = vlaneseq
        %v1465 = vshrl.u32 %v1464, 7
        %v1466 = vsub.s32 %v1463, %v1465
        %v1467 = vrot.slane %v470, %v1466
        %v1469 = vunpack.c.l.s4 1966171168
        %v1470 = vunpack.c.0.s8 %v1469
        %v1471 = vlaneseq
        %v1472 = vshrl.u32 %v1471, 7
        %v1473 = vsub.s32 %v1470, %v1472
        %v1474 = vrot.slane %v1460, %v1473
        %v1475 = vcombine.high %v1467, %v1467
        %v1476 = vcombine.high %v1474, %v1474
        %v1478 = vunpack.c.l.s4 1966171168
        %v1479 = vunpack.c.0.s8 %v1478
        %v1480 = vlaneseq
        %v1481 = vshrl.u32 %v1480, 7
        %v1482 = vsub.s32 %v1479, %v1481
        %v1483 = vrot.slane %v1467, %v1482
        %v1485 = vunpack.c.l.s4 1966171168
        %v1486 = vunpack.c.0.s8 %v1485
        %v1487 = vlaneseq
        %v1488 = vshrl.u32 %v1487, 7
        %v1489 = vsub.s32 %v1486, %v1488
        %v1490 = vrot.slane %v1474, %v1489
        %v1492 = vunpack.c.l.s4 1966171168
        %v1493 = vunpack.c.0.s8 %v1492
        %v1494 = vlaneseq
        %v1495 = vshrl.u32 %v1494, 7
        %v1496 = vsub.s32 %v1493, %v1495
        %v1497 = vrot.slane %v1475, %v1496
        %v1499 = vunpack.c.l.s4 1966171168
        %v1500 = vunpack.c.0.s8 %v1499
        %v1501 = vlaneseq
        %v1502 = vshrl.u32 %v1501, 7
        %v1503 = vsub.s32 %v1500, %v1502
        %v1504 = vrot.slane %v1476, %v1503
        %v1505 = vcombine.high %v1483, %v1483
        %v1506 = vcombine.high %v1490, %v1490
        %v1507 = vcombine.high %v1497, %v1497
        %v1508 = vcombine.high %v1504, %v1504
        %v1509 = vcombine.high %v471, %v471
        %v1511 = vunpack.c.l.s4 1966171168
        %v1512 = vunpack.c.0.s8 %v1511
        %v1513 = vlaneseq
        %v1514 = vshrl.u32 %v1513, 7
        %v1515 = vsub.s32 %v1512, %v1514
        %v1516 = vrot.slane %v471, %v1515
        %v1518 = vunpack.c.l.s4 1966171168
        %v1519 = vunpack.c.0.s8 %v1518
        %v1520 = vlaneseq
        %v1521 = vshrl.u32 %v1520, 7
        %v1522 = vsub.s32 %v1519, %v1521
        %v1523 = vrot.slane %v1509, %v1522
        %v1524 = vcombine.high %v1516, %v1516
        %v1525 = vcombine.high %v1523, %v1523
        %v1527 = vunpack.c.l.s4 1966171168
        %v1528 = vunpack.c.0.s8 %v1527
        %v1529 = vlaneseq
        %v1530 = vshrl.u32 %v1529, 7
        %v1531 = vsub.s32 %v1528, %v1530
        %v1532 = vrot.slane %v1516, %v1531
        %v1534 = vunpack.c.l.s4 1966171168
        %v1535 = vunpack.c.0.s8 %v1534
        %v1536 = vlaneseq
        %v1537 = vshrl.u32 %v1536, 7
        %v1538 = vsub.s32 %v1535, %v1537
        %v1539 = vrot.slane %v1523, %v1538
        %v1541 = vunpack.c.l.s4 1966171168
        %v1542 = vunpack.c.0.s8 %v1541
        %v1543 = vlaneseq
        %v1544 = vshrl.u32 %v1543, 7
        %v1545 = vsub.s32 %v1542, %v1544
        %v1546 = vrot.slane %v1524, %v1545
        %v1548 = vunpack.c.l.s4 1966171168
        %v1549 = vunpack.c.0.s8 %v1548
        %v1550 = vlaneseq
        %v1551 = vshrl.u32 %v1550, 7
        %v1552 = vsub.s32 %v1549, %v1551
        %v1553 = vrot.slane %v1525, %v1552
        %v1554 = vcombine.high %v1532, %v1532
        %v1555 = vcombine.high %v1539, %v1539
        %v1556 = vcombine.high %v1546, %v1546
        %v1557 = vcombine.high %v1553, %v1553
        %v1559 = vunpack.c.l.s4 1966171168
        %v1560 = vunpack.c.0.s8 %v1559
        %v1561 = vlaneseq
        %v1562 = vshrl.u32 %v1561, 7
        %v1563 = vsub.s32 %v1560, %v1562
        %v1564 = vrot.slane %v472, %v1563
        %v1566 = vunpack.c.l.s4 1966171168
        %v1567 = vunpack.c.0.s8 %v1566
        %v1568 = vlaneseq
        %v1569 = vshrl.u32 %v1568, 7
        %v1570 = vsub.s32 %v1567, %v1569
        %v1571 = vrot.slane %v1564, %v1570
        %v2405 = vunpack.c.l.b16 %v473
        %v2406 = vunpack.c.h.b16 %v473
        %v2407 = vunpack.c.l.b16 %v474
        %v2408 = vunpack.c.h.b16 %v474
        %v2409 = vunpack.c.l.b16 %v475
        %v2410 = vunpack.c.h.b16 %v475
        %v2411 = vunpack.c.l.b16 %v476
        %v2412 = vunpack.c.h.b16 %v476
        %v2413 = vunpack.c.l.b16 %v477
        %v2414 = vunpack.c.h.b16 %v477
        %v2415 = vunpack.c.l.b16 %v478
        %v2416 = vunpack.c.h.b16 %v478
        %v2417 = vunpack.c.l.b16 %v479
        %v2418 = vunpack.c.h.b16 %v479
        %v2419 = vunpack.c.l.b16 %v480
        %v2420 = vunpack.c.h.b16 %v480
        %v2421 = vunpack.c.l.b16 %v481
        %v2422 = vunpack.c.h.b16 %v481
        %v2423 = vunpack.c.l.b16 %v482
        %v2424 = vunpack.c.h.b16 %v482
        %v2425 = vunpack.c.l.b16 %v483
        %v2426 = vunpack.c.h.b16 %v483
        %v2427 = vunpack.c.l.b16 %v484
        %v2428 = vunpack.c.h.b16 %v484
        %v2429 = vunpack.c.l.b16 %v485
        %v2430 = vunpack.c.h.b16 %v485
        %v2431 = vunpack.c.l.b16 %v486
        %v2432 = vunpack.c.h.b16 %v486
        %v2433 = vunpack.c.l.b16 %v487
        %v2434 = vunpack.c.h.b16 %v487
        %v2435 = vunpack.c.l.b16 %v488
        %v2436 = vunpack.c.h.b16 %v488
        %v2437 = vunpack.c.l.b16 %v489
        %v2438 = vunpack.c.h.b16 %v489
        %v2439 = vunpack.c.l.b16 %v490
        %v2440 = vunpack.c.h.b16 %v490
        %v2441 = vunpack.c.l.b16 %v491
        %v2442 = vunpack.c.h.b16 %v491
        %v2443 = vunpack.c.l.b16 %v492
        %v2444 = vunpack.c.h.b16 %v492
        %v2445 = vunpack.c.l.b16 %v493
        %v2446 = vunpack.c.h.b16 %v493
        %v2447 = vunpack.c.l.b16 %v494
        %v2448 = vunpack.c.h.b16 %v494
        %v2449 = vunpack.c.l.b16 %v495
        %v2450 = vunpack.c.h.b16 %v495
        %v2451 = vunpack.c.l.b16 %v496
        %v2452 = vunpack.c.h.b16 %v496
        %v2453 = vunpack.c.l.b16 %v497
        %v2454 = vunpack.c.h.b16 %v497
        %v2455 = vunpack.c.l.b16 %v498
        %v2456 = vunpack.c.h.b16 %v498
        %v2457 = vunpack.c.l.b16 %v499
        %v2458 = vunpack.c.h.b16 %v499
        %v2459 = vunpack.c.l.b16 %v500
        %v2460 = vunpack.c.h.b16 %v500
        %v2461 = vunpack.c.l.b16 %v501
        %v2462 = vunpack.c.h.b16 %v501
        %v2463 = vunpack.c.l.b16 %v502
        %v2464 = vunpack.c.h.b16 %v502
        %v2465 = vunpack.c.l.b16 %v503
        %v2466 = vunpack.c.h.b16 %v503
        %v2467 = vunpack.c.l.b16 %v504
        %v2468 = vunpack.c.h.b16 %v504
        %v2469 = vunpack.c.l.b16 %v505
        %v2470 = vunpack.c.h.b16 %v505
        %v2471 = vunpack.c.l.b16 %v506
        %v2472 = vunpack.c.h.b16 %v506
        %v2473 = vunpack.c.l.b16 %v507
        %v2474 = vunpack.c.h.b16 %v507
        %v2475 = vunpack.c.l.b16 %v508
        %v2476 = vunpack.c.h.b16 %v508
        %v2477 = vunpack.c.l.b16 %v509
        %v2478 = vunpack.c.h.b16 %v509
        %v2479 = vunpack.c.l.b16 %v510
        %v2480 = vunpack.c.h.b16 %v510
        %v2481 = vunpack.c.l.b16 %v511
        %v2482 = vunpack.c.h.b16 %v511
        %v2483 = vunpack.c.l.b16 %v512
        %v2484 = vunpack.c.h.b16 %v512
        %v2485 = vunpack.c.l.b16 %v513
        %v2486 = vunpack.c.h.b16 %v513
        %v2487 = vunpack.c.l.b16 %v514
        %v2488 = vunpack.c.h.b16 %v514
        %v2489 = vunpack.c.l.b16 %v515
        %v2490 = vunpack.c.h.b16 %v515
        %v2491 = vunpack.c.l.b16 %v516
        %v2492 = vunpack.c.h.b16 %v516
        %v2493 = vunpack.c.l.b16 %v517
        %v2494 = vunpack.c.h.b16 %v517
        %v2495 = vunpack.c.l.b16 %v518
        %v2496 = vunpack.c.h.b16 %v518
        %v2497 = vunpack.c.l.b16 %v519
        %v2498 = vunpack.c.h.b16 %v519
        %v2499 = vunpack.c.l.b16 %v520
        %v2500 = vunpack.c.h.b16 %v520
        %v2501 = vunpack.c.l.b16 %v521
        %v2502 = vunpack.c.h.b16 %v521
        %v2503 = vunpack.c.l.b16 %v522
        %v2504 = vunpack.c.h.b16 %v522
        %v2505 = vunpack.c.l.b16 %v523
        %v2506 = vunpack.c.h.b16 %v523
        %v2507 = vunpack.c.l.b16 %v524
        %v2508 = vunpack.c.h.b16 %v524
        %v2509 = vunpack.c.l.b16 %v525
        %v2510 = vunpack.c.h.b16 %v525
        %v2511 = vunpack.c.l.b16 %v526
        %v2512 = vunpack.c.h.b16 %v526
        %v2513 = vunpack.c.l.b16 %v527
        %v2514 = vunpack.c.h.b16 %v527
        %v2515 = vunpack.c.l.b16 %v528
        %v2516 = vunpack.c.h.b16 %v528
        %v2517 = vunpack.c.l.b16 %v529
        %v2518 = vunpack.c.h.b16 %v529
        %v2519 = vunpack.c.l.b16 %v530
        %v2520 = vunpack.c.h.b16 %v530
        %v2521 = vunpack.c.l.b16 %v531
        %v2522 = vunpack.c.h.b16 %v531
        %v2523 = vunpack.c.l.b16 %v532
        %v2524 = vunpack.c.h.b16 %v532
        %v2525 = vunpack.c.l.b16 %v533
        %v2526 = vunpack.c.h.b16 %v533
        %v2527 = vunpack.c.l.b16 %v534
        %v2528 = vunpack.c.h.b16 %v534
        %v2529 = vunpack.c.l.b16 %v535
        %v2530 = vunpack.c.h.b16 %v535
        %v2531 = vunpack.c.l.b16 %v536
        %v2532 = vunpack.c.h.b16 %v536
        %v2533 = vunpack.c.l.b16 %v537
        %v2534 = vunpack.c.h.b16 %v537
        %v2535 = vunpack.c.l.b16 %v538
        %v2536 = vunpack.c.h.b16 %v538
        %v2537 = vunpack.c.l.b16 %v539
        %v2538 = vunpack.c.h.b16 %v539
        %v2539 = vunpack.c.l.b16 %v540
        %v2540 = vunpack.c.h.b16 %v540
        %v2541 = vunpack.c.l.b16 %v541
        %v2542 = vunpack.c.h.b16 %v541
        %v2543 = vunpack.c.l.b16 %v542
        %v2544 = vunpack.c.h.b16 %v542
        %v2545 = vunpack.c.l.b16 %v543
        %v2546 = vunpack.c.h.b16 %v543
        %v2547 = vunpack.c.l.b16 %v544
        %v2548 = vunpack.c.h.b16 %v544
        %v2549 = vunpack.c.l.b16 %v545
        %v2550 = vunpack.c.h.b16 %v545
        %v2551 = vunpack.c.l.b16 %v546
        %v2552 = vunpack.c.h.b16 %v546
        %v2553 = vunpack.c.l.b16 %v547
        %v2554 = vunpack.c.h.b16 %v547
        %v2555 = vunpack.c.l.b16 %v548
        %v2556 = vunpack.c.h.b16 %v548
        %v2557 = vunpack.c.l.b16 %v549
        %v2558 = vunpack.c.h.b16 %v549
        %v2559 = vunpack.c.l.b16 %v550
        %v2560 = vunpack.c.h.b16 %v550
        %v2561 = vunpack.c.l.b16 %v551
        %v2562 = vunpack.c.h.b16 %v551
        %v2563 = vunpack.c.l.b16 %v552
        %v2564 = vunpack.c.h.b16 %v552
        %v2565 = vunpack.c.l.b16 %v553
        %v2566 = vunpack.c.h.b16 %v553
        %v2567 = vunpack.c.l.b16 %v554
        %v2568 = vunpack.c.h.b16 %v554
        %v2569 = vunpack.c.l.b16 %v555
        %v2570 = vunpack.c.h.b16 %v555
        %v2571 = vunpack.c.l.b16 %v556
        %v2572 = vunpack.c.h.b16 %v556
        %v2573 = vunpack.c.l.b16 %v557
        %v2574 = vunpack.c.h.b16 %v557
        %v2575 = vunpack.c.l.b16 %v558
        %v2576 = vunpack.c.h.b16 %v558
        %v2577 = vunpack.c.l.b16 %v559
        %v2578 = vunpack.c.h.b16 %v559
        %v2579 = vunpack.c.l.b16 %v560
        %v2580 = vunpack.c.h.b16 %v560
        %v2581 = vunpack.c.l.b16 %v561
        %v2582 = vunpack.c.h.b16 %v561
        %v2583 = vunpack.c.l.b16 %v562
        %v2584 = vunpack.c.h.b16 %v562
        %v2585 = vunpack.c.l.b16 %v563
        %v2586 = vunpack.c.h.b16 %v563
        %v2587 = vunpack.c.l.b16 %v564
        %v2588 = vunpack.c.h.b16 %v564
        %v2589 = vunpack.c.l.b16 %v565
        %v2590 = vunpack.c.h.b16 %v565
        %v2591 = vunpack.c.l.b16 %v566
        %v2592 = vunpack.c.h.b16 %v566
        %v2593 = vunpack.c.l.b16 %v567
        %v2594 = vunpack.c.h.b16 %v567
        %v2595 = vunpack.c.l.b16 %v568
        %v2596 = vunpack.c.h.b16 %v568
        %v2597 = vunpack.c.l.b16 %v569
        %v2598 = vunpack.c.h.b16 %v569
        %v2599 = vunpack.c.l.b16 %v570
        %v2600 = vunpack.c.h.b16 %v570
        %v2601 = vunpack.c.l.b16 %v571
        %v2602 = vunpack.c.h.b16 %v571
        %v2603 = vunpack.c.l.b16 %v572
        %v2604 = vunpack.c.h.b16 %v572
        %v2605 = vunpack.c.l.b16 %v573
        %v2606 = vunpack.c.h.b16 %v573
        %v2607 = vunpack.c.l.b16 %v574
        %v2608 = vunpack.c.h.b16 %v574
        %v2609 = vunpack.c.l.b16 %v575
        %v2610 = vunpack.c.h.b16 %v575
        %v2611 = vunpack.c.l.b16 %v576
        %v2612 = vunpack.c.h.b16 %v576
        %v2613 = vunpack.c.l.b16 %v577
        %v2614 = vunpack.c.h.b16 %v577
        %v2615 = vunpack.c.l.b16 %v578
        %v2616 = vunpack.c.h.b16 %v578
        %v2617 = vunpack.c.l.b16 %v579
        %v2618 = vunpack.c.h.b16 %v579
        %v2619 = vunpack.c.l.b16 %v580
        %v2620 = vunpack.c.h.b16 %v580
        %v2621 = vunpack.c.l.b16 %v581
        %v2622 = vunpack.c.h.b16 %v581
        %v2623 = vunpack.c.l.b16 %v582
        %v2624 = vunpack.c.h.b16 %v582
        %v2625 = vunpack.c.l.b16 %v583
        %v2626 = vunpack.c.h.b16 %v583
        %v2627 = vunpack.c.l.b16 %v584
        %v2628 = vunpack.c.h.b16 %v584
        %v2629 = vunpack.c.l.b16 %v585
        %v2630 = vunpack.c.h.b16 %v585
        %v2631 = vunpack.c.l.b16 %v586
        %v2632 = vunpack.c.h.b16 %v586
        %v2633 = vunpack.c.l.b16 %v587
        %v2634 = vunpack.c.h.b16 %v587
        %v2635 = vunpack.c.l.b16 %v588
        %v2636 = vunpack.c.h.b16 %v588
        %v2637 = vunpack.c.l.b16 %v589
        %v2638 = vunpack.c.h.b16 %v589
        %v2639 = vunpack.c.l.b16 %v590
        %v2640 = vunpack.c.h.b16 %v590
        %v2641 = vunpack.c.l.b16 %v591
        %v2642 = vunpack.c.h.b16 %v591
        %v2643 = vunpack.c.l.b16 %v592
        %v2644 = vunpack.c.h.b16 %v592
        %v2645 = vunpack.c.l.b16 %v593
        %v2646 = vunpack.c.h.b16 %v593
        %v2647 = vunpack.c.l.b16 %v594
        %v2648 = vunpack.c.h.b16 %v594
        %v2649 = vunpack.c.l.b16 %v595
        %v2650 = vunpack.c.h.b16 %v595
        %v2651 = vunpack.c.l.b16 %v596
        %v2652 = vunpack.c.h.b16 %v596
        %v2653 = vunpack.c.l.b16 %v597
        %v2654 = vunpack.c.h.b16 %v597
        %v2655 = vunpack.c.l.b16 %v598
        %v2656 = vunpack.c.h.b16 %v598
        %v2657 = vunpack.c.l.b16 %v599
        %v2658 = vunpack.c.h.b16 %v599
        %v2659 = vunpack.c.l.b16 %v600
        %v2660 = vunpack.c.h.b16 %v600
        %v2661 = vunpack.c.l.b16 %v601
        %v2662 = vunpack.c.h.b16 %v601
        %v2663 = vunpack.c.l.b16 %v602
        %v2664 = vunpack.c.h.b16 %v602
        %v2665 = vunpack.c.l.b16 %v603
        %v2666 = vunpack.c.h.b16 %v603
        %v2667 = vunpack.c.l.b16 %v604
        %v2668 = vunpack.c.h.b16 %v604
        %v2669 = vunpack.c.l.b16 %v605
        %v2670 = vunpack.c.h.b16 %v605
        %v2671 = vunpack.c.l.b16 %v606
        %v2672 = vunpack.c.h.b16 %v606
        %v2673 = vunpack.c.l.b16 %v607
        %v2674 = vunpack.c.h.b16 %v607
        %v2675 = vunpack.c.l.b16 %v608
        %v2676 = vunpack.c.h.b16 %v608
        %v2677 = vunpack.c.l.b16 %v609
        %v2678 = vunpack.c.h.b16 %v609
        %v2679 = vunpack.c.l.b16 %v610
        %v2680 = vunpack.c.h.b16 %v610
        %v2681 = vunpack.c.l.b16 %v611
        %v2682 = vunpack.c.h.b16 %v611
        %v2683 = vunpack.c.l.b16 %v612
        %v2684 = vunpack.c.h.b16 %v612
        %v2685 = vunpack.c.l.b16 %v613
        %v2686 = vunpack.c.h.b16 %v613
        %v2687 = vunpack.c.l.b16 %v614
        %v2688 = vunpack.c.h.b16 %v614
        %v2689 = vunpack.c.l.b16 %v615
        %v2690 = vunpack.c.h.b16 %v615
        %v2691 = vunpack.c.l.b16 %v616
        %v2692 = vunpack.c.h.b16 %v616
        %v2693 = vunpack.c.l.b16 %v617
        %v2694 = vunpack.c.h.b16 %v617
        %v2695 = vunpack.c.l.b16 %v618
        %v2696 = vunpack.c.h.b16 %v618
        %v2697 = vunpack.c.l.b16 %v619
        %v2698 = vunpack.c.h.b16 %v619
        %v2699 = vunpack.c.l.b16 %v620
        %v2700 = vunpack.c.h.b16 %v620
        %v2701 = vunpack.c.l.b16 %v621
        %v2702 = vunpack.c.h.b16 %v621
        %v2703 = vunpack.c.l.b16 %v622
        %v2704 = vunpack.c.h.b16 %v622
        %v2705 = vunpack.c.l.b16 %v623
        %v2706 = vunpack.c.h.b16 %v623
        %v2707 = vunpack.c.l.b16 %v624
        %v2708 = vunpack.c.h.b16 %v624
        %v2709 = vunpack.c.l.b16 %v625
        %v2710 = vunpack.c.h.b16 %v625
        %v2711 = vunpack.c.l.b16 %v626
        %v2712 = vunpack.c.h.b16 %v626
        %v2713 = vunpack.c.l.b16 %v627
        %v2714 = vunpack.c.h.b16 %v627
        %v2715 = vunpack.c.l.b16 %v628
        %v2716 = vunpack.c.h.b16 %v628
        %v2717 = vunpack.c.l.b16 %v629
        %v2718 = vunpack.c.h.b16 %v629
        %v2719 = vunpack.c.l.b16 %v630
        %v2720 = vunpack.c.h.b16 %v630
        %v2721 = vunpack.c.l.b16 %v631
        %v2722 = vunpack.c.h.b16 %v631
        %v2723 = vunpack.c.l.b16 %v632
        %v2724 = vunpack.c.h.b16 %v632
        %v2725 = vunpack.c.l.b16 %v633
        %v2726 = vunpack.c.h.b16 %v633
        %v2727 = vunpack.c.l.b16 %v634
        %v2728 = vunpack.c.h.b16 %v634
        %v2729 = vunpack.c.l.b16 %v635
        %v2730 = vunpack.c.h.b16 %v635
        %v2731 = vunpack.c.l.b16 %v636
        %v2732 = vunpack.c.h.b16 %v636
        %v2733 = vunpack.c.l.b16 %v637
        %v2734 = vunpack.c.h.b16 %v637
        %v2735 = vunpack.c.l.b16 %v638
        %v2736 = vunpack.c.h.b16 %v638
        %v2737 = vunpack.c.l.b16 %v639
        %v2738 = vunpack.c.h.b16 %v639
        %v2739 = vunpack.c.l.b16 %v640
        %v2740 = vunpack.c.h.b16 %v640
        %v2741 = vunpack.c.l.b16 %v641
        %v2742 = vunpack.c.h.b16 %v641
        %v2743 = vunpack.c.l.b16 %v642
        %v2744 = vunpack.c.h.b16 %v642
        %v2745 = vunpack.c.l.b16 %v643
        %v2746 = vunpack.c.h.b16 %v643
        %v2747 = vunpack.c.l.b16 %v644
        %v2748 = vunpack.c.h.b16 %v644
        %v2749 = vunpack.c.l.b16 %v645
        %v2750 = vunpack.c.h.b16 %v645
        %v2751 = vunpack.c.l.b16 %v646
        %v2752 = vunpack.c.h.b16 %v646
        %v2753 = vunpack.c.l.b16 %v647
        %v2754 = vunpack.c.h.b16 %v647
        %v2755 = vunpack.c.l.b16 %v648
        %v2756 = vunpack.c.h.b16 %v648
        %v2757 = vunpack.c.l.b16 %v649
        %v2758 = vunpack.c.h.b16 %v649
        %v2759 = vunpack.c.l.b16 %v650
        %v2760 = vunpack.c.h.b16 %v650
        %v2761 = vunpack.c.l.b16 %v651
        %v2762 = vunpack.c.h.b16 %v651
        %v2763 = vunpack.c.l.b16 %v652
        %v2764 = vunpack.c.h.b16 %v652
        %v2765 = vunpack.c.l.b16 %v653
        %v2766 = vunpack.c.h.b16 %v653
        %v2767 = vunpack.c.l.b16 %v654
        %v2768 = vunpack.c.h.b16 %v654
        %v2769 = vunpack.c.l.b16 %v655
        %v2770 = vunpack.c.h.b16 %v655
        %v2771 = vunpack.c.l.b16 %v656
        %v2772 = vunpack.c.h.b16 %v656
        %v2773 = vunpack.c.l.b16 %v657
        %v2774 = vunpack.c.h.b16 %v657
        %v2775 = vunpack.c.l.b16 %v658
        %v2776 = vunpack.c.h.b16 %v658
        %v2777 = vunpack.c.l.b16 %v659
        %v2778 = vunpack.c.h.b16 %v659
        %v2779 = vunpack.c.l.b16 %v660
        %v2780 = vunpack.c.h.b16 %v660
        %v2781 = vunpack.c.l.b16 %v661
        %v2782 = vunpack.c.h.b16 %v661
        %v2783 = vunpack.c.l.b16 %v662
        %v2784 = vunpack.c.h.b16 %v662
        %v2785 = vunpack.c.l.b16 %v663
        %v2786 = vunpack.c.h.b16 %v663
        %v2787 = vunpack.c.l.b16 %v664
        %v2788 = vunpack.c.h.b16 %v664
        %v2789 = vunpack.c.l.b16 %v665
        %v2790 = vunpack.c.h.b16 %v665
        %v2791 = vunpack.c.l.b16 %v666
        %v2792 = vunpack.c.h.b16 %v666
        %v2793 = vunpack.c.l.b16 %v667
        %v2794 = vunpack.c.h.b16 %v667
        %v2795 = vunpack.c.l.b16 %v668
        %v2796 = vunpack.c.h.b16 %v668
        %v2797 = vunpack.c.l.b16 %v669
        %v2798 = vunpack.c.h.b16 %v669
        %v2799 = vunpack.c.l.b16 %v670
        %v2800 = vunpack.c.h.b16 %v670
        %v2801 = vunpack.c.l.b16 %v671
        %v2802 = vunpack.c.h.b16 %v671
        %v2803 = vunpack.c.l.b16 %v672
        %v2804 = vunpack.c.h.b16 %v672
        %v2805 = vunpack.c.l.b16 %v673
        %v2806 = vunpack.c.h.b16 %v673
        %v2807 = vunpack.c.l.b16 %v674
        %v2808 = vunpack.c.h.b16 %v674
        %v2809 = vunpack.c.l.b16 %v675
        %v2810 = vunpack.c.h.b16 %v675
        %v2811 = vunpack.c.l.b16 %v676
        %v2812 = vunpack.c.h.b16 %v676
        %v2813 = vunpack.c.l.b16 %v677
        %v2814 = vunpack.c.h.b16 %v677
        %v2815 = vunpack.c.l.b16 %v678
        %v2816 = vunpack.c.h.b16 %v678
        %v2817 = vunpack.c.l.b16 %v679
        %v2818 = vunpack.c.h.b16 %v679
        %v2819 = vunpack.c.l.b16 %v680
        %v2820 = vunpack.c.h.b16 %v680
        %v2821 = vunpack.c.l.b16 %v681
        %v2822 = vunpack.c.h.b16 %v681
        %v2823 = vunpack.c.l.b16 %v682
        %v2824 = vunpack.c.h.b16 %v682
        %v2825 = vunpack.c.l.b16 %v683
        %v2826 = vunpack.c.h.b16 %v683
        %v2827 = vunpack.c.l.b16 %v684
        %v2828 = vunpack.c.h.b16 %v684
        %v2829 = vunpack.c.l.b16 %v685
        %v2830 = vunpack.c.h.b16 %v685
        %v2831 = vunpack.c.l.b16 %v686
        %v2832 = vunpack.c.h.b16 %v686
        %v2833 = vunpack.c.l.b16 %v687
        %v2834 = vunpack.c.h.b16 %v687
        %v2835 = vunpack.c.l.b16 %v688
        %v2836 = vunpack.c.h.b16 %v688
        %v2837 = vunpack.c.l.b16 %v689
        %v2838 = vunpack.c.h.b16 %v689
        %v2839 = vunpack.c.l.b16 %v690
        %v2840 = vunpack.c.h.b16 %v690
        %v2841 = vunpack.c.l.b16 %v691
        %v2842 = vunpack.c.h.b16 %v691
        %v2843 = vunpack.c.l.b16 %v692
        %v2844 = vunpack.c.h.b16 %v692
        %v2845 = vunpack.c.l.b16 %v693
        %v2846 = vunpack.c.h.b16 %v693
        %v2847 = vunpack.c.l.b16 %v694
        %v2848 = vunpack.c.h.b16 %v694
        %v2849 = vunpack.c.l.b16 %v695
        %v2850 = vunpack.c.h.b16 %v695
        %v2851 = vunpack.c.l.b16 %v696
        %v2852 = vunpack.c.h.b16 %v696
        %v2853 = vunpack.c.l.b16 %v697
        %v2854 = vunpack.c.h.b16 %v697
        %v2855 = vunpack.c.l.b16 %v698
        %v2856 = vunpack.c.h.b16 %v698
        %v2857 = vunpack.c.l.b16 %v699
        %v2858 = vunpack.c.h.b16 %v699
        %v2859 = vunpack.c.l.b16 %v700
        %v2860 = vunpack.c.h.b16 %v700
        %v2861 = vunpack.c.l.b16 %v701
        %v2862 = vunpack.c.h.b16 %v701
        %v2863 = vunpack.c.l.b16 %v702
        %v2864 = vunpack.c.h.b16 %v702
        %v2865 = vunpack.c.l.b16 %v703
        %v2866 = vunpack.c.h.b16 %v703
        %v2867 = vunpack.c.l.b16 %v704
        %v2868 = vunpack.c.h.b16 %v704
        %v2869 = vunpack.c.l.b16 %v705
        %v2870 = vunpack.c.h.b16 %v705
        %v2871 = vunpack.c.l.b16 %v706
        %v2872 = vunpack.c.h.b16 %v706
        %v2873 = vunpack.c.l.b16 %v707
        %v2874 = vunpack.c.h.b16 %v707
        %v2875 = vunpack.c.l.b16 %v708
        %v2876 = vunpack.c.h.b16 %v708
        %v2877 = vunpack.c.l.b16 %v709
        %v2878 = vunpack.c.h.b16 %v709
        %v2879 = vunpack.c.l.b16 %v710
        %v2880 = vunpack.c.h.b16 %v710
        %v2881 = vunpack.c.l.b16 %v711
        %v2882 = vunpack.c.h.b16 %v711
        %v2883 = vunpack.c.l.b16 %v712
        %v2884 = vunpack.c.h.b16 %v712
        %v2885 = vunpack.c.l.b16 %v713
        %v2886 = vunpack.c.h.b16 %v713
        %v2887 = vunpack.c.l.b16 %v714
        %v2888 = vunpack.c.h.b16 %v714
        %v2889 = vunpack.c.l.b16 %v715
        %v2890 = vunpack.c.h.b16 %v715
        %v2891 = vunpack.c.l.b16 %v716
        %v2892 = vunpack.c.h.b16 %v716
        %v2893 = vunpack.c.l.b16 %v717
        %v2894 = vunpack.c.h.b16 %v717
        %v2895 = vunpack.c.l.b16 %v718
        %v2896 = vunpack.c.h.b16 %v718
        %v2897 = vunpack.c.l.b16 %v719
        %v2898 = vunpack.c.h.b16 %v719
        %v2899 = vunpack.c.l.b16 %v720
        %v2900 = vunpack.c.h.b16 %v720
        %v2901 = vunpack.c.l.b16 %v721
        %v2902 = vunpack.c.h.b16 %v721
        %v2903 = vunpack.c.l.b16 %v722
        %v2904 = vunpack.c.h.b16 %v722
        %v2905 = vunpack.c.l.b16 %v723
        %v2906 = vunpack.c.h.b16 %v723
        %v2907 = vunpack.c.l.b16 %v724
        %v2908 = vunpack.c.h.b16 %v724
        %v2909 = vunpack.c.l.b16 %v725
        %v2910 = vunpack.c.h.b16 %v725
        %v2911 = vunpack.c.l.b16 %v726
        %v2912 = vunpack.c.h.b16 %v726
        %v2913 = vunpack.c.l.b16 %v727
        %v2914 = vunpack.c.h.b16 %v727
        %v2915 = vunpack.c.l.b16 %v728
        %v2916 = vunpack.c.h.b16 %v728
        %v2917 = vunpack.c.l.b16 %v729
        %v2918 = vunpack.c.h.b16 %v729
        %v2919 = vunpack.c.l.b16 %v730
        %v2920 = vunpack.c.h.b16 %v730
        %v2921 = vunpack.c.l.b16 %v731
        %v2922 = vunpack.c.h.b16 %v731
        %v2923 = vunpack.c.l.b16 %v732
        %v2924 = vunpack.c.h.b16 %v732
        %v2925 = vunpack.c.l.b16 %v733
        %v2926 = vunpack.c.h.b16 %v733
        %v2927 = vunpack.c.l.b16 %v734
        %v2928 = vunpack.c.h.b16 %v734
        %v2929 = vunpack.c.l.b16 %v735
        %v2930 = vunpack.c.h.b16 %v735
        %v2931 = vunpack.c.l.b16 %v736
        %v2932 = vunpack.c.h.b16 %v736
        %v2933 = vunpack.c.l.b16 %v737
        %v2934 = vunpack.c.h.b16 %v737
        %v2935 = vunpack.c.l.b16 %v738
        %v2936 = vunpack.c.h.b16 %v738
        %v2937 = vunpack.c.l.b16 %v739
        %v2938 = vunpack.c.h.b16 %v739
        %v2939 = vunpack.c.l.b16 %v740
        %v2940 = vunpack.c.h.b16 %v740
        %v2941 = vunpack.c.l.b16 %v741
        %v2942 = vunpack.c.h.b16 %v741
        %v2943 = vunpack.c.l.b16 %v742
        %v2944 = vunpack.c.h.b16 %v742
        %v2945 = vunpack.c.l.b16 %v743
        %v2946 = vunpack.c.h.b16 %v743
        %v2947 = vunpack.c.l.b16 %v744
        %v2948 = vunpack.c.h.b16 %v744
        %v2949 = vunpack.c.l.b16 %v745
        %v2950 = vunpack.c.h.b16 %v745
        %v2951 = vunpack.c.l.b16 %v746
        %v2952 = vunpack.c.h.b16 %v746
        %v2953 = vunpack.c.l.b16 %v747
        %v2954 = vunpack.c.h.b16 %v747
        %v2955 = vunpack.c.l.b16 %v748
        %v2956 = vunpack.c.h.b16 %v748
        %v2957 = vunpack.c.l.b16 %v749
        %v2958 = vunpack.c.h.b16 %v749
        %v2959 = vunpack.c.l.b16 %v750
        %v2960 = vunpack.c.h.b16 %v750
        %v2961 = vunpack.c.l.b16 %v751
        %v2962 = vunpack.c.h.b16 %v751
        %v2963 = vunpack.c.l.b16 %v752
        %v2964 = vunpack.c.h.b16 %v752
        %v2965 = vunpack.c.l.b16 %v753
        %v2966 = vunpack.c.h.b16 %v753
        %v2967 = vunpack.c.l.b16 %v754
        %v2968 = vunpack.c.h.b16 %v754
        %v2969 = vunpack.c.l.b16 %v755
        %v2970 = vunpack.c.h.b16 %v755
        %v2971 = vunpack.c.l.b16 %v756
        %v2972 = vunpack.c.h.b16 %v756
        %v2973 = vunpack.c.l.b16 %v757
        %v2974 = vunpack.c.h.b16 %v757
        %v2975 = vunpack.c.l.b16 %v758
        %v2976 = vunpack.c.h.b16 %v758
        %v2977 = vunpack.c.l.b16 %v759
        %v2978 = vunpack.c.h.b16 %v759
        %v2979 = vunpack.c.l.b16 %v760
        %v2980 = vunpack.c.h.b16 %v760
        %v2981 = vunpack.c.l.b16 %v761
        %v2982 = vunpack.c.h.b16 %v761
        %v2983 = vunpack.c.l.b16 %v762
        %v2984 = vunpack.c.h.b16 %v762
        %v2985 = vunpack.c.l.b16 %v763
        %v2986 = vunpack.c.h.b16 %v763
        %v2987 = vunpack.c.l.b16 %v764
        %v2988 = vunpack.c.h.b16 %v764
        %v2989 = vunpack.c.l.b16 %v765
        %v2990 = vunpack.c.h.b16 %v765
        %v2991 = vunpack.c.l.b16 %v766
        %v2992 = vunpack.c.h.b16 %v766
        %v2993 = vunpack.c.l.b16 %v767
        %v2994 = vunpack.c.h.b16 %v767
        %v2995 = vunpack.c.l.b16 %v768
        %v2996 = vunpack.c.h.b16 %v768
        %v2997 = vunpack.c.l.b16 %v769
        %v2998 = vunpack.c.h.b16 %v769
        %v2999 = vunpack.c.l.b16 %v770
        %v3000 = vunpack.c.h.b16 %v770
        %v3001 = vunpack.c.l.b16 %v771
        %v3002 = vunpack.c.h.b16 %v771
        %v3003 = vunpack.c.l.b16 %v772
        %v3004 = vunpack.c.h.b16 %v772
        %v3005 = vunpack.c.l.b16 %v773
        %v3006 = vunpack.c.h.b16 %v773
        %v3007 = vunpack.c.l.b16 %v774
        %v3008 = vunpack.c.h.b16 %v774
        %v3009 = vunpack.c.l.b16 %v775
        %v3010 = vunpack.c.h.b16 %v775
        %v3011 = vunpack.c.l.b16 %v776
        %v3012 = vunpack.c.h.b16 %v776
        %v3013 = vunpack.c.l.b16 %v777
        %v3014 = vunpack.c.h.b16 %v777
        %v3015 = vunpack.c.l.b16 %v778
        %v3016 = vunpack.c.h.b16 %v778
        %v3017 = vunpack.c.l.b16 %v779
        %v3018 = vunpack.c.h.b16 %v779
        %v3019 = vunpack.c.l.b16 %v780
        %v3020 = vunpack.c.h.b16 %v780
        %v3021 = vunpack.c.l.b16 %v781
        %v3022 = vunpack.c.h.b16 %v781
        %v3023 = vunpack.c.l.b16 %v782
        %v3024 = vunpack.c.h.b16 %v782
        %v3025 = vunpack.c.l.b16 %v783
        %v3026 = vunpack.c.h.b16 %v783
        %v3027 = vunpack.c.l.b16 %v784
        %v3028 = vunpack.c.h.b16 %v784
        %v3029 = vunpack.c.l.b16 %v785
        %v3030 = vunpack.c.h.b16 %v785
        %v3031 = vunpack.c.l.b16 %v786
        %v3032 = vunpack.c.h.b16 %v786
        %v3033 = vunpack.c.l.b16 %v787
        %v3034 = vunpack.c.h.b16 %v787
        %v3035 = vunpack.c.l.b16 %v788
        %v3036 = vunpack.c.h.b16 %v788
        %v3037 = vunpack.c.l.b16 %v789
        %v3038 = vunpack.c.h.b16 %v789
        %v3039 = vunpack.c.l.b16 %v790
        %v3040 = vunpack.c.h.b16 %v790
        %v3041 = vunpack.c.l.b16 %v791
        %v3042 = vunpack.c.h.b16 %v791
        %v3043 = vunpack.c.l.b16 %v792
        %v3044 = vunpack.c.h.b16 %v792
        %v3045 = vunpack.c.l.b16 %v793
        %v3046 = vunpack.c.h.b16 %v793
        %v3047 = vunpack.c.l.b16 %v794
        %v3048 = vunpack.c.h.b16 %v794
        %v3049 = vunpack.c.l.b16 %v795
        %v3050 = vunpack.c.h.b16 %v795
        %v3051 = vunpack.c.l.b16 %v796
        %v3052 = vunpack.c.h.b16 %v796
        %v3053 = vunpack.c.l.b16 %v797
        %v3054 = vunpack.c.h.b16 %v797
        %v3055 = vunpack.c.l.b16 %v798
        %v3056 = vunpack.c.h.b16 %v798
        %v3057 = vunpack.c.l.b16 %v799
        %v3058 = vunpack.c.h.b16 %v799
        %v3059 = vunpack.c.l.b16 %v800
        %v3060 = vunpack.c.h.b16 %v800
        %v3061 = vunpack.c.l.b16 %v801
        %v3062 = vunpack.c.h.b16 %v801
        %v3063 = vunpack.c.l.b16 %v802
        %v3064 = vunpack.c.h.b16 %v802
        %v3065 = vunpack.c.l.b16 %v803
        %v3066 = vunpack.c.h.b16 %v803
        %v3067 = vunpack.c.l.b16 %v804
        %v3068 = vunpack.c.h.b16 %v804
        %v3069 = vunpack.c.l.b16 %v805
        %v3070 = vunpack.c.h.b16 %v805
        %v3071 = vunpack.c.l.b16 %v806
        %v3072 = vunpack.c.h.b16 %v806
        %v3073 = vunpack.c.l.b16 %v807
        %v3074 = vunpack.c.h.b16 %v807
        %v3075 = vunpack.c.l.b16 %v808
        %v3076 = vunpack.c.h.b16 %v808
        %v3077 = vunpack.c.l.b16 %v809
        %v3078 = vunpack.c.h.b16 %v809
        %v3079 = vunpack.c.l.b16 %v810
        %v3080 = vunpack.c.h.b16 %v810
        %v3081 = vunpack.c.l.b16 %v811
        %v3082 = vunpack.c.h.b16 %v811
        %v3083 = vunpack.c.l.b16 %v812
        %v3084 = vunpack.c.h.b16 %v812
        %v3085 = vunpack.c.l.b16 %v813
        %v3086 = vunpack.c.h.b16 %v813
        %v3087 = vunpack.c.l.b16 %v814
        %v3088 = vunpack.c.h.b16 %v814
        %v3089 = vunpack.c.l.b16 %v815
        %v3090 = vunpack.c.h.b16 %v815
        %v3091 = vunpack.c.l.b16 %v816
        %v3092 = vunpack.c.h.b16 %v816
        %v3093 = vunpack.c.l.b16 %v817
        %v3094 = vunpack.c.h.b16 %v817
        %v3095 = vunpack.c.l.b16 %v818
        %v3096 = vunpack.c.h.b16 %v818
        %v3097 = vunpack.c.l.b16 %v819
        %v3098 = vunpack.c.h.b16 %v819
        %v3099 = vunpack.c.l.b16 %v820
        %v3100 = vunpack.c.h.b16 %v820
        %v3101 = vunpack.c.l.b16 %v821
        %v3102 = vunpack.c.h.b16 %v821
        %v3103 = vunpack.c.l.b16 %v822
        %v3104 = vunpack.c.h.b16 %v822
        %v3105 = vunpack.c.l.b16 %v823
        %v3106 = vunpack.c.h.b16 %v823
        %v3107 = vunpack.c.l.b16 %v824
        %v3108 = vunpack.c.h.b16 %v824
        %v3109 = vunpack.c.l.b16 %v825
        %v3110 = vunpack.c.h.b16 %v825
        %v3111 = vunpack.c.l.b16 %v826
        %v3112 = vunpack.c.h.b16 %v826
        %v3113 = vunpack.c.l.b16 %v827
        %v3114 = vunpack.c.h.b16 %v827
        %v3115 = vunpack.c.l.b16 %v828
        %v3116 = vunpack.c.h.b16 %v828
        %v3117 = vunpack.c.l.b16 %v829
        %v3118 = vunpack.c.h.b16 %v829
        %v3119 = vunpack.c.l.b16 %v830
        %v3120 = vunpack.c.h.b16 %v830
        %v3121 = vunpack.c.l.b16 %v831
        %v3122 = vunpack.c.h.b16 %v831
        %v3123 = vunpack.c.l.b16 %v832
        %v3124 = vunpack.c.h.b16 %v832
        %v3125 = vunpack.c.l.b16 %v833
        %v3126 = vunpack.c.h.b16 %v833
        %v3127 = vunpack.c.l.b16 %v834
        %v3128 = vunpack.c.h.b16 %v834
        %v3129 = vunpack.c.l.b16 %v835
        %v3130 = vunpack.c.h.b16 %v835
        %v3131 = vunpack.c.l.b16 %v836
        %v3132 = vunpack.c.h.b16 %v836
        %v3133 = vunpack.c.l.b16 %v837
        %v3134 = vunpack.c.h.b16 %v837
        %v3135 = vunpack.c.l.b16 %v838
        %v3136 = vunpack.c.h.b16 %v838
        %v3137 = vunpack.c.l.b16 %v839
        %v3138 = vunpack.c.h.b16 %v839
        %v3139 = vunpack.c.l.b16 %v840
        %v3140 = vunpack.c.h.b16 %v840
        %v3141 = vunpack.c.l.b16 %v841
        %v3142 = vunpack.c.h.b16 %v841
        %v3143 = vunpack.c.l.b16 %v842
        %v3144 = vunpack.c.h.b16 %v842
        %v3145 = vunpack.c.l.b16 %v843
        %v3146 = vunpack.c.h.b16 %v843
        %v3147 = vunpack.c.l.b16 %v844
        %v3148 = vunpack.c.h.b16 %v844
        %v3149 = vunpack.c.l.b16 %v845
        %v3150 = vunpack.c.h.b16 %v845
        %v3151 = vunpack.c.l.b16 %v846
        %v3152 = vunpack.c.h.b16 %v846
        %v3153 = vunpack.c.l.b16 %v847
        %v3154 = vunpack.c.h.b16 %v847
        %v3155 = vunpack.c.l.b16 %v848
        %v3156 = vunpack.c.h.b16 %v848
        %v3157 = vunpack.c.l.b16 %v849
        %v3158 = vunpack.c.h.b16 %v849
        %v3159 = vunpack.c.l.b16 %v850
        %v3160 = vunpack.c.h.b16 %v850
        %v3161 = vunpack.c.l.b16 %v851
        %v3162 = vunpack.c.h.b16 %v851
        %v3163 = vunpack.c.l.b16 %v852
        %v3164 = vunpack.c.h.b16 %v852
        %v3165 = vunpack.c.l.b16 %v853
        %v3166 = vunpack.c.h.b16 %v853
        %v3167 = vunpack.c.l.b16 %v854
        %v3168 = vunpack.c.h.b16 %v854
        %v3169 = vunpack.c.l.b16 %v855
        %v3170 = vunpack.c.h.b16 %v855
        %v3171 = vunpack.c.l.b16 %v856
        %v3172 = vunpack.c.h.b16 %v856
        %v3173 = vunpack.c.l.b16 %v857
        %v3174 = vunpack.c.h.b16 %v857
        %v3175 = vunpack.c.l.b16 %v858
        %v3176 = vunpack.c.h.b16 %v858
        %v3177 = vunpack.c.l.b16 %v859
        %v3178 = vunpack.c.h.b16 %v859
        %v3179 = vunpack.c.l.b16 %v860
        %v3180 = vunpack.c.h.b16 %v860
        %v3181 = vunpack.c.l.b16 %v861
        %v3182 = vunpack.c.h.b16 %v861
        %v3183 = vunpack.c.l.b16 %v862
        %v3184 = vunpack.c.h.b16 %v862
        %v3185 = vunpack.c.l.b16 %v863
        %v3186 = vunpack.c.h.b16 %v863
        %v3187 = vunpack.c.l.b16 %v864
        %v3188 = vunpack.c.h.b16 %v864
        %v3189 = vunpack.c.l.b16 %v865
        %v3190 = vunpack.c.h.b16 %v865
        %v3191 = vunpack.c.l.b16 %v866
        %v3192 = vunpack.c.h.b16 %v866
        %v3193 = vunpack.c.l.b16 %v867
        %v3194 = vunpack.c.h.b16 %v867
        %v3195 = vunpack.c.l.b16 %v868
        %v3196 = vunpack.c.h.b16 %v868
        %v3197 = vunpack.c.l.b16 %v869
        %v3198 = vunpack.c.h.b16 %v869
        %v3199 = vunpack.c.l.b16 %v870
        %v3200 = vunpack.c.h.b16 %v870
        %v3201 = vunpack.c.l.b16 %v871
        %v3202 = vunpack.c.h.b16 %v871
        %v3203 = vunpack.c.l.b16 %v872
        %v3204 = vunpack.c.h.b16 %v872
        %v3205 = vunpack.c.l.b16 %v873
        %v3206 = vunpack.c.h.b16 %v873
        %v3207 = vunpack.c.l.b16 %v874
        %v3208 = vunpack.c.h.b16 %v874
        %v3209 = vunpack.c.l.b16 %v875
        %v3210 = vunpack.c.h.b16 %v875
        %v3211 = vunpack.c.l.b16 %v876
        %v3212 = vunpack.c.h.b16 %v876
        %v3213 = vunpack.c.l.b16 %v877
        %v3214 = vunpack.c.h.b16 %v877
        %v3215 = vunpack.c.l.b16 %v878
        %v3216 = vunpack.c.h.b16 %v878
        %v3217 = vunpack.c.l.b16 %v879
        %v3218 = vunpack.c.h.b16 %v879
        %v3219 = vunpack.c.l.b16 %v880
        %v3220 = vunpack.c.h.b16 %v880
        %v3221 = vunpack.c.l.b16 %v881
        %v3222 = vunpack.c.h.b16 %v881
        %v3223 = vunpack.c.l.b16 %v882
        %v3224 = vunpack.c.h.b16 %v882
        %v3225 = vunpack.c.l.b16 %v883
        %v3226 = vunpack.c.h.b16 %v883
        %v3227 = vunpack.c.l.b16 %v884
        %v3228 = vunpack.c.h.b16 %v884
        %v3229 = vunpack.c.l.b16 %v885
        %v3230 = vunpack.c.h.b16 %v885
        %v3231 = vunpack.c.l.b16 %v886
        %v3232 = vunpack.c.h.b16 %v886
        %v3233 = vunpack.c.l.b16 %v887
        %v3234 = vunpack.c.h.b16 %v887
        %v3235 = vunpack.c.l.b16 %v888
        %v3236 = vunpack.c.h.b16 %v888
        %v3237 = vunpack.c.l.b16 %v889
        %v3238 = vunpack.c.h.b16 %v889
        %v3239 = vunpack.c.l.b16 %v890
        %v3240 = vunpack.c.h.b16 %v890
        %v3241 = vunpack.c.l.b16 %v891
        %v3242 = vunpack.c.h.b16 %v891
        %v3243 = vunpack.c.l.b16 %v892
        %v3244 = vunpack.c.h.b16 %v892
        %v3245 = vunpack.c.l.b16 %v893
        %v3246 = vunpack.c.h.b16 %v893
        %v3247 = vunpack.c.l.b16 %v894
        %v3248 = vunpack.c.h.b16 %v894
        %v3249 = vunpack.c.l.b16 %v895
        %v3250 = vunpack.c.h.b16 %v895
        %v3251 = vunpack.c.l.b16 %v896
        %v3252 = vunpack.c.h.b16 %v896
        %v3253 = vunpack.c.l.b16 %v897
        %v3254 = vunpack.c.h.b16 %v897
        %v3255 = vunpack.c.l.b16 %v898
        %v3256 = vunpack.c.h.b16 %v898
        %v3257 = vunpack.c.l.b16 %v899
        %v3258 = vunpack.c.h.b16 %v899
        %v3259 = vunpack.c.l.b16 %v900
        %v3260 = vunpack.c.h.b16 %v900
        %v3261 = vunpack.c.l.b16 %v901
        %v3262 = vunpack.c.h.b16 %v901
        %v3263 = vunpack.c.l.b16 %v902
        %v3264 = vunpack.c.h.b16 %v902
        %v3265 = vunpack.c.l.b16 %v903
        %v3266 = vunpack.c.h.b16 %v903
        %v3267 = vunpack.c.l.b16 %v904
        %v3268 = vunpack.c.h.b16 %v904
        %v3269 = vunpack.c.l.b16 %v905
        %v3270 = vunpack.c.h.b16 %v905
        %v3271 = vunpack.c.l.b16 %v906
        %v3272 = vunpack.c.h.b16 %v906
        %v3273 = vunpack.c.l.b16 %v907
        %v3274 = vunpack.c.h.b16 %v907
        %v3275 = vunpack.c.l.b16 %v908
        %v3276 = vunpack.c.h.b16 %v908
        %v3277 = vunpack.c.l.b16 %v909
        %v3278 = vunpack.c.h.b16 %v909
        %v3279 = vunpack.c.l.b16 %v910
        %v3280 = vunpack.c.h.b16 %v910
        %v3281 = vunpack.c.l.b16 %v911
        %v3282 = vunpack.c.h.b16 %v911
        %v3283 = vunpack.c.l.b16 %v912
        %v3284 = vunpack.c.h.b16 %v912
        %v3285 = vunpack.c.l.b16 %v913
        %v3286 = vunpack.c.h.b16 %v913
        %v3287 = vunpack.c.l.b16 %v914
        %v3288 = vunpack.c.h.b16 %v914
        %v3289 = vunpack.c.l.b16 %v915
        %v3290 = vunpack.c.h.b16 %v915
        %v3291 = vunpack.c.l.b16 %v916
        %v3292 = vunpack.c.h.b16 %v916
        %v3293 = vunpack.c.l.b16 %v917
        %v3294 = vunpack.c.h.b16 %v917
        %v3295 = vunpack.c.l.b16 %v918
        %v3296 = vunpack.c.h.b16 %v918
        %v3297 = vunpack.c.l.b16 %v919
        %v3298 = vunpack.c.h.b16 %v919
        %v3299 = vunpack.c.l.b16 %v920
        %v3300 = vunpack.c.h.b16 %v920
        %v3301 = vunpack.c.l.b16 %v921
        %v3302 = vunpack.c.h.b16 %v921
        %v3303 = vunpack.c.l.b16 %v922
        %v3304 = vunpack.c.h.b16 %v922
        %v3305 = vunpack.c.l.b16 %v923
        %v3306 = vunpack.c.h.b16 %v923
        %v3307 = vunpack.c.l.b16 %v924
        %v3308 = vunpack.c.h.b16 %v924
        %v3309 = vunpack.c.l.b16 %v925
        %v3310 = vunpack.c.h.b16 %v925
        %v3311 = vunpack.c.l.b16 %v926
        %v3312 = vunpack.c.h.b16 %v926
        %v3313 = vunpack.c.l.b16 %v927
        %v3314 = vunpack.c.h.b16 %v927
        %v3315 = vunpack.c.l.b16 %v928
        %v3316 = vunpack.c.h.b16 %v928
        %v3317 = vunpack.c.l.b16 %v929
        %v3318 = vunpack.c.h.b16 %v929
        %v3319 = vunpack.c.l.b16 %v930
        %v3320 = vunpack.c.h.b16 %v930
        %v3321 = vunpack.c.l.b16 %v931
        %v3322 = vunpack.c.h.b16 %v931
        %v3323 = vunpack.c.l.b16 %v932
        %v3324 = vunpack.c.h.b16 %v932
        %v3325 = vunpack.c.l.b16 %v933
        %v3326 = vunpack.c.h.b16 %v933
        %v3327 = vunpack.c.l.b16 %v934
        %v3328 = vunpack.c.h.b16 %v934
        %v3329 = vunpack.c.l.b16 %v935
        %v3330 = vunpack.c.h.b16 %v935
        %v3331 = vunpack.c.l.b16 %v936
        %v3332 = vunpack.c.h.b16 %v936
        %v3333 = vunpack.c.l.b16 %v937
        %v3334 = vunpack.c.h.b16 %v937
        %v3335 = vunpack.c.l.b16 %v938
        %v3336 = vunpack.c.h.b16 %v938
        %v3337 = vunpack.c.l.b16 %v939
        %v3338 = vunpack.c.h.b16 %v939
        %v3339 = vunpack.c.l.b16 %v940
        %v3340 = vunpack.c.h.b16 %v940
        %v3341 = vunpack.c.l.b16 %v941
        %v3342 = vunpack.c.h.b16 %v941
        %v3343 = vunpack.c.l.b16 %v942
        %v3344 = vunpack.c.h.b16 %v942
        %v3345 = vunpack.c.l.b16 %v943
        %v3346 = vunpack.c.h.b16 %v943
        %v3347 = vunpack.c.l.b16 %v944
        %v3348 = vunpack.c.h.b16 %v944
        %v3349 = vunpack.c.l.b16 %v945
        %v3350 = vunpack.c.h.b16 %v945
        %v3351 = vunpack.c.l.b16 %v946
        %v3352 = vunpack.c.h.b16 %v946
        %v3353 = vunpack.c.l.b16 %v947
        %v3354 = vunpack.c.h.b16 %v947
        %v3355 = vunpack.c.l.b16 %v948
        %v3356 = vunpack.c.h.b16 %v948
        %v3357 = vunpack.c.l.b16 %v949
        %v3358 = vunpack.c.h.b16 %v949
        %v3359 = vunpack.c.l.b16 %v950
        %v3360 = vunpack.c.h.b16 %v950
        %v3361 = vunpack.c.l.b16 %v951
        %v3362 = vunpack.c.h.b16 %v951
        %v3363 = vunpack.c.l.b16 %v952
        %v3364 = vunpack.c.h.b16 %v952
        %v3365 = vunpack.c.l.b16 %v953
        %v3366 = vunpack.c.h.b16 %v953
        %v3367 = vunpack.c.l.b16 %v954
        %v3368 = vunpack.c.h.b16 %v954
        %v3369 = vunpack.c.l.b16 %v955
        %v3370 = vunpack.c.h.b16 %v955
        %v3371 = vunpack.c.l.b16 %v956
        %v3372 = vunpack.c.h.b16 %v956
        %v3373 = vunpack.c.l.b16 %v957
        %v3374 = vunpack.c.h.b16 %v957
        %v3375 = vunpack.c.l.b16 %v958
        %v3376 = vunpack.c.h.b16 %v958
        %v3377 = vunpack.c.l.b16 %v959
        %v3378 = vunpack.c.h.b16 %v959
        %v3379 = vunpack.c.l.b16 %v960
        %v3380 = vunpack.c.h.b16 %v960
        %v3381 = vunpack.c.l.b16 %v961
        %v3382 = vunpack.c.h.b16 %v961
        %v3383 = vunpack.c.l.b16 %v962
        %v3384 = vunpack.c.h.b16 %v962
        %v3385 = vunpack.c.l.b16 %v963
        %v3386 = vunpack.c.h.b16 %v963
        %v3387 = vunpack.c.l.b16 %v964
        %v3388 = vunpack.c.h.b16 %v964
        %v3389 = vunpack.c.l.b16 %v965
        %v3390 = vunpack.c.h.b16 %v965
        %v3391 = vunpack.c.l.b16 %v966
        %v3392 = vunpack.c.h.b16 %v966
        %v3393 = vunpack.c.l.b16 %v967
        %v3394 = vunpack.c.h.b16 %v967
        %v3395 = vunpack.c.l.b16 %v968
        %v3396 = vunpack.c.h.b16 %v968
        %v3397 = vunpack.c.l.b16 %v969
        %v3398 = vunpack.c.h.b16 %v969
        %v3399 = vunpack.c.l.b16 %v970
        %v3400 = vunpack.c.h.b16 %v970
        %v3401 = vunpack.c.l.b16 %v971
        %v3402 = vunpack.c.h.b16 %v971
        %v3403 = vunpack.c.l.b16 %v972
        %v3404 = vunpack.c.h.b16 %v972
        %v3405 = vunpack.c.l.b16 %v973
        %v3406 = vunpack.c.h.b16 %v973
        %v3407 = vunpack.c.l.b16 %v974
        %v3408 = vunpack.c.h.b16 %v974
        %v3409 = vunpack.c.l.b16 %v975
        %v3410 = vunpack.c.h.b16 %v975
        %v3411 = vunpack.c.l.b16 %v976
        %v3412 = vunpack.c.h.b16 %v976
        %v3413 = vunpack.c.l.b16 %v977
        %v3414 = vunpack.c.h.b16 %v977
        %v3415 = vunpack.c.l.b16 %v978
        %v3416 = vunpack.c.h.b16 %v978
        %v3417 = vunpack.c.l.b16 %v979
        %v3418 = vunpack.c.h.b16 %v979
        %v3419 = vunpack.c.l.b16 %v980
        %v3420 = vunpack.c.h.b16 %v980
        %v3421 = vunpack.c.l.b16 %v981
        %v3422 = vunpack.c.h.b16 %v981
        %v3423 = vunpack.c.l.b16 %v982
        %v3424 = vunpack.c.h.b16 %v982
        %v3425 = vunpack.c.l.b16 %v983
        %v3426 = vunpack.c.h.b16 %v983
        %v3427 = vunpack.c.l.b16 %v984
        %v3428 = vunpack.c.h.b16 %v984
        %v3429 = vunpack.c.l.b16 %v985
        %v3430 = vunpack.c.h.b16 %v985
        %v3431 = vunpack.c.l.b16 %v986
        %v3432 = vunpack.c.h.b16 %v986
        %v3433 = vunpack.c.l.b16 %v987
        %v3434 = vunpack.c.h.b16 %v987
        %v3435 = vunpack.c.l.b16 %v988
        %v3436 = vunpack.c.h.b16 %v988
        %v3437 = vunpack.c.l.b16 %v989
        %v3438 = vunpack.c.h.b16 %v989
        %v3439 = vunpack.c.l.b16 %v990
        %v3440 = vunpack.c.h.b16 %v990
        %v3441 = vunpack.c.l.b16 %v991
        %v3442 = vunpack.c.h.b16 %v991
        %v3443 = vunpack.c.l.b16 %v992
        %v3444 = vunpack.c.h.b16 %v992
        %v3445 = vunpack.c.l.b16 %v993
        %v3446 = vunpack.c.h.b16 %v993
        %v3447 = vunpack.c.l.b16 %v994
        %v3448 = vunpack.c.h.b16 %v994
        %v3449 = vunpack.c.l.b16 %v995
        %v3450 = vunpack.c.h.b16 %v995
        %v3451 = vunpack.c.l.b16 %v996
        %v3452 = vunpack.c.h.b16 %v996
        %v3453 = vunpack.c.l.b16 %v997
        %v3454 = vunpack.c.h.b16 %v997
        %v3455 = vunpack.c.l.b16 %v998
        %v3456 = vunpack.c.h.b16 %v998
        %v3457 = vunpack.c.l.b16 %v999
        %v3458 = vunpack.c.h.b16 %v999
        %v3459 = vunpack.c.l.b16 %v1000
        %v3460 = vunpack.c.h.b16 %v1000
        %v3461 = vunpack.c.l.b16 %v1001
        %v3462 = vunpack.c.h.b16 %v1001
        %v3463 = vunpack.c.l.b16 %v1002
        %v3464 = vunpack.c.h.b16 %v1002
        %v3465 = vunpack.c.l.b16 %v1003
        %v3466 = vunpack.c.h.b16 %v1003
        %v3467 = vunpack.c.l.b16 %v1004
        %v3468 = vunpack.c.h.b16 %v1004
        %v3469 = vunpack.c.l.b16 %v1005
        %v3470 = vunpack.c.h.b16 %v1005
        %v3471 = vunpack.c.l.b16 %v1006
        %v3472 = vunpack.c.h.b16 %v1006
        %v3473 = vunpack.c.l.b16 %v1007
        %v3474 = vunpack.c.h.b16 %v1007
        %v3475 = vunpack.c.l.b16 %v1008
        %v3476 = vunpack.c.h.b16 %v1008
        %v3477 = vunpack.c.l.b16 %v1009
        %v3478 = vunpack.c.h.b16 %v1009
        %v3479 = vunpack.c.l.b16 %v1010
        %v3480 = vunpack.c.h.b16 %v1010
        %v3481 = vunpack.c.l.b16 %v1011
        %v3482 = vunpack.c.h.b16 %v1011
        %v3483 = vunpack.c.l.b16 %v1012
        %v3484 = vunpack.c.h.b16 %v1012
        %v3485 = vunpack.c.l.b16 %v1013
        %v3486 = vunpack.c.h.b16 %v1013
        %v3487 = vunpack.c.l.b16 %v1014
        %v3488 = vunpack.c.h.b16 %v1014
        %v3489 = vunpack.c.l.b16 %v1015
        %v3490 = vunpack.c.h.b16 %v1015
        %v3491 = vunpack.c.l.b16 %v1016
        %v3492 = vunpack.c.h.b16 %v1016
        %v3493 = vunpack.c.l.b16 %v1017
        %v3494 = vunpack.c.h.b16 %v1017
        %v3495 = vunpack.c.l.b16 %v1018
        %v3496 = vunpack.c.h.b16 %v1018
        %v3497 = vunpack.c.l.b16 %v1019
        %v3498 = vunpack.c.h.b16 %v1019
        %v3499 = vunpack.c.l.b16 %v1020
        %v3500 = vunpack.c.h.b16 %v1020
        %v3501 = vunpack.c.l.b16 %v1021
        %v3502 = vunpack.c.h.b16 %v1021
        %v3503 = vunpack.c.l.b16 %v1022
        %v3504 = vunpack.c.h.b16 %v1022
        %v3505 = vunpack.c.l.b16 %v1023
        %v3506 = vunpack.c.h.b16 %v1023
        %v3507 = vunpack.c.l.b16 %v1024
        %v3508 = vunpack.c.h.b16 %v1024
        %v3509 = vunpack.c.l.b16 %v1025
        %v3510 = vunpack.c.h.b16 %v1025
        %v3511 = vunpack.c.l.b16 %v1026
        %v3512 = vunpack.c.h.b16 %v1026
        %v3513 = vunpack.c.l.b16 %v1027
        %v3514 = vunpack.c.h.b16 %v1027
        %v3515 = vunpack.c.l.b16 %v1028
        %v3516 = vunpack.c.h.b16 %v1028
        %v3517 = vunpack.c.l.b16 %v1029
        %v3518 = vunpack.c.h.b16 %v1029
        %v3519 = vunpack.c.l.b16 %v1030
        %v3520 = vunpack.c.h.b16 %v1030
        %v3521 = vunpack.c.l.b16 %v1031
        %v3522 = vunpack.c.h.b16 %v1031
        %v3523 = vunpack.c.l.b16 %v1032
        %v3524 = vunpack.c.h.b16 %v1032
        %v3525 = vunpack.c.l.b16 %v1033
        %v3526 = vunpack.c.h.b16 %v1033
        %v3527 = vunpack.c.l.b16 %v1034
        %v3528 = vunpack.c.h.b16 %v1034
        %v3529 = vunpack.c.l.b16 %v1035
        %v3530 = vunpack.c.h.b16 %v1035
        %v3531 = vunpack.c.l.b16 %v1036
        %v3532 = vunpack.c.h.b16 %v1036
        %v3533 = vunpack.c.l.b16 %v1037
        %v3534 = vunpack.c.h.b16 %v1037
        %v3535 = vunpack.c.l.b16 %v1038
        %v3536 = vunpack.c.h.b16 %v1038
        %v3537 = vunpack.c.l.b16 %v1039
        %v3538 = vunpack.c.h.b16 %v1039
        %v3539 = vunpack.c.l.b16 %v1040
        %v3540 = vunpack.c.h.b16 %v1040
        %v3541 = vunpack.c.l.b16 %v1041
        %v3542 = vunpack.c.h.b16 %v1041
        %v3543 = vunpack.c.l.b16 %v1042
        %v3544 = vunpack.c.h.b16 %v1042
        %v3545 = vunpack.c.l.b16 %v1043
        %v3546 = vunpack.c.h.b16 %v1043
        %v3547 = vunpack.c.l.b16 %v1044
        %v3548 = vunpack.c.h.b16 %v1044
        %v3549 = vunpack.c.l.b16 %v1045
        %v3550 = vunpack.c.h.b16 %v1045
        %v3551 = vunpack.c.l.b16 %v1046
        %v3552 = vunpack.c.h.b16 %v1046
        %v3553 = vunpack.c.l.b16 %v1047
        %v3554 = vunpack.c.h.b16 %v1047
        %v3555 = vunpack.c.l.b16 %v1048
        %v3556 = vunpack.c.h.b16 %v1048
        %v3557 = vunpack.c.l.b16 %v1049
        %v3558 = vunpack.c.h.b16 %v1049
        %v3559 = vunpack.c.l.b16 %v1050
        %v3560 = vunpack.c.h.b16 %v1050
        %v3561 = vunpack.c.l.b16 %v1051
        %v3562 = vunpack.c.h.b16 %v1051
        %v3563 = vunpack.c.l.b16 %v1052
        %v3564 = vunpack.c.h.b16 %v1052
        %v3565 = vunpack.c.l.b16 %v1053
        %v3566 = vunpack.c.h.b16 %v1053
        %v3567 = vunpack.c.l.b16 %v1054
        %v3568 = vunpack.c.h.b16 %v1054
        %v3569 = vunpack.c.l.b16 %v1055
        %v3570 = vunpack.c.h.b16 %v1055
        %v3571 = vunpack.c.l.b16 %v1056
        %v3572 = vunpack.c.h.b16 %v1056
        %v3573 = vunpack.c.l.b16 %v1057
        %v3574 = vunpack.c.h.b16 %v1057
        %v3575 = vunpack.c.l.b16 %v1058
        %v3576 = vunpack.c.h.b16 %v1058
        %v3577 = vunpack.c.l.b16 %v1059
        %v3578 = vunpack.c.h.b16 %v1059
        %v3579 = vunpack.c.l.b16 %v1060
        %v3580 = vunpack.c.h.b16 %v1060
        %v3581 = vunpack.c.l.b16 %v1061
        %v3582 = vunpack.c.h.b16 %v1061
        %v3583 = vunpack.c.l.b16 %v1062
        %v3584 = vunpack.c.h.b16 %v1062
        %v3585 = vunpack.c.l.b16 %v1063
        %v3586 = vunpack.c.h.b16 %v1063
        %v3587 = vunpack.c.l.b16 %v1064
        %v3588 = vunpack.c.h.b16 %v1064
        %v3589 = vunpack.c.l.b16 %v1065
        %v3590 = vunpack.c.h.b16 %v1065
        %v3591 = vunpack.c.l.b16 %v1066
        %v3592 = vunpack.c.h.b16 %v1066
        %v3593 = vunpack.c.l.b16 %v1067
        %v3594 = vunpack.c.h.b16 %v1067
        %v3595 = vunpack.c.l.b16 %v1068
        %v3596 = vunpack.c.h.b16 %v1068
        %v3597 = vunpack.c.l.b16 %v1069
        %v3598 = vunpack.c.h.b16 %v1069
        %v3599 = vunpack.c.l.b16 %v1070
        %v3600 = vunpack.c.h.b16 %v1070
        %v3601 = vunpack.c.l.b16 %v1071
        %v3602 = vunpack.c.h.b16 %v1071
        %v3603 = vunpack.c.l.b16 %v1072
        %v3604 = vunpack.c.h.b16 %v1072
        %v3605 = vunpack.c.l.b16 %v1073
        %v3606 = vunpack.c.h.b16 %v1073
        %v3607 = vunpack.c.l.b16 %v1074
        %v3608 = vunpack.c.h.b16 %v1074
        %v3609 = vunpack.c.l.b16 %v1075
        %v3610 = vunpack.c.h.b16 %v1075
        %v3611 = vunpack.c.l.b16 %v1076
        %v3612 = vunpack.c.h.b16 %v1076
        %v3613 = vunpack.c.l.b16 %v1077
        %v3614 = vunpack.c.h.b16 %v1077
        %v3615 = vunpack.c.l.b16 %v1078
        %v3616 = vunpack.c.h.b16 %v1078
        %v3617 = vunpack.c.l.b16 %v1079
        %v3618 = vunpack.c.h.b16 %v1079
        %v3619 = vunpack.c.l.b16 %v1080
        %v3620 = vunpack.c.h.b16 %v1080
        %v3621 = vunpack.c.l.b16 %v1081
        %v3622 = vunpack.c.h.b16 %v1081
        %v3623 = vunpack.c.l.b16 %v1082
        %v3624 = vunpack.c.h.b16 %v1082
        %v3625 = vunpack.c.l.b16 %v1083
        %v3626 = vunpack.c.h.b16 %v1083
        %v3627 = vunpack.c.l.b16 %v1084
        %v3628 = vunpack.c.h.b16 %v1084
        %v3629 = vunpack.c.l.b16 %v1085
        %v3630 = vunpack.c.h.b16 %v1085
        %v3631 = vunpack.c.l.b16 %v1086
        %v3632 = vunpack.c.h.b16 %v1086
        %v3633 = vunpack.c.l.b16 %v1087
        %v3634 = vunpack.c.h.b16 %v1087
        %v3635 = vunpack.c.l.b16 %v1088
        %v3636 = vunpack.c.h.b16 %v1088
        %v3637 = vunpack.c.l.b16 %v1089
        %v3638 = vunpack.c.h.b16 %v1089
        %v3639 = vunpack.c.l.b16 %v1090
        %v3640 = vunpack.c.h.b16 %v1090
        %v3641 = vunpack.c.l.b16 %v1091
        %v3642 = vunpack.c.h.b16 %v1091
        %v3643 = vunpack.c.l.b16 %v1092
        %v3644 = vunpack.c.h.b16 %v1092
        %v3645 = vunpack.c.l.b16 %v1093
        %v3646 = vunpack.c.h.b16 %v1093
        %v3647 = vunpack.c.l.b16 %v1094
        %v3648 = vunpack.c.h.b16 %v1094
        %v3649 = vunpack.c.l.b16 %v1095
        %v3650 = vunpack.c.h.b16 %v1095
        %v3651 = vunpack.c.l.b16 %v1096
        %v3652 = vunpack.c.h.b16 %v1096
        %v3653 = vunpack.c.l.b16 %v1097
        %v3654 = vunpack.c.h.b16 %v1097
        %v3655 = vunpack.c.l.b16 %v1098
        %v3656 = vunpack.c.h.b16 %v1098
        %v3657 = vunpack.c.l.b16 %v1099
        %v3658 = vunpack.c.h.b16 %v1099
        %v3659 = vunpack.c.l.b16 %v1100
        %v3660 = vunpack.c.h.b16 %v1100
        %v3661 = vunpack.c.l.b16 %v1101
        %v3662 = vunpack.c.h.b16 %v1101
        %v3663 = vunpack.c.l.b16 %v1102
        %v3664 = vunpack.c.h.b16 %v1102
        %v3665 = vunpack.c.l.b16 %v1103
        %v3666 = vunpack.c.h.b16 %v1103
        %v3667 = vunpack.c.l.b16 %v1104
        %v3668 = vunpack.c.h.b16 %v1104
        %v3669 = vunpack.c.l.b16 %v1105
        %v3670 = vunpack.c.h.b16 %v1105
        %v3671 = vunpack.c.l.b16 %v1106
        %v3672 = vunpack.c.h.b16 %v1106
        %v3673 = vunpack.c.l.b16 %v1107
        %v3674 = vunpack.c.h.b16 %v1107
        %v3675 = vunpack.c.l.b16 %v1108
        %v3676 = vunpack.c.h.b16 %v1108
        %v3677 = vunpack.c.l.b16 %v1109
        %v3678 = vunpack.c.h.b16 %v1109
        %v3679 = vunpack.c.l.b16 %v1110
        %v3680 = vunpack.c.h.b16 %v1110
        %v3681 = vunpack.c.l.b16 %v1111
        %v3682 = vunpack.c.h.b16 %v1111
        %v3683 = vunpack.c.l.b16 %v1112
        %v3684 = vunpack.c.h.b16 %v1112
        %v3685 = vunpack.c.l.b16 %v1113
        %v3686 = vunpack.c.h.b16 %v1113
        %v3687 = vunpack.c.l.b16 %v1114
        %v3688 = vunpack.c.h.b16 %v1114
        %v3689 = vunpack.c.l.b16 %v1115
        %v3690 = vunpack.c.h.b16 %v1115
        %v3691 = vunpack.c.l.b16 %v1116
        %v3692 = vunpack.c.h.b16 %v1116
        %v3693 = vunpack.c.l.b16 %v1117
        %v3694 = vunpack.c.h.b16 %v1117
        %v3695 = vunpack.c.l.b16 %v1118
        %v3696 = vunpack.c.h.b16 %v1118
        %v3697 = vunpack.c.l.b16 %v1119
        %v3698 = vunpack.c.h.b16 %v1119
        %v3699 = vunpack.c.l.b16 %v1120
        %v3700 = vunpack.c.h.b16 %v1120
        %v3701 = vunpack.c.l.b16 %v1121
        %v3702 = vunpack.c.h.b16 %v1121
        %v3703 = vunpack.c.l.b16 %v1122
        %v3704 = vunpack.c.h.b16 %v1122
        %v3705 = vunpack.c.l.b16 %v1123
        %v3706 = vunpack.c.h.b16 %v1123
        %v3707 = vunpack.c.l.b16 %v1124
        %v3708 = vunpack.c.h.b16 %v1124
        %v3709 = vunpack.c.l.b16 %v1125
        %v3710 = vunpack.c.h.b16 %v1125
        %v3711 = vunpack.c.l.b16 %v1126
        %v3712 = vunpack.c.h.b16 %v1126
        %v3713 = vunpack.c.l.b16 %v1127
        %v3714 = vunpack.c.h.b16 %v1127
        %v3715 = vunpack.c.l.b16 %v1128
        %v3716 = vunpack.c.h.b16 %v1128
        %v3717 = vunpack.c.l.b16 %v1129
        %v3718 = vunpack.c.h.b16 %v1129
        %v3719 = vunpack.c.l.b16 %v1130
        %v3720 = vunpack.c.h.b16 %v1130
        %v3721 = vunpack.c.l.b16 %v1131
        %v3722 = vunpack.c.h.b16 %v1131
        %v3723 = vunpack.c.l.b16 %v1132
        %v3724 = vunpack.c.h.b16 %v1132
        %v3725 = vunpack.c.l.b16 %v1133
        %v3726 = vunpack.c.h.b16 %v1133
        %v3727 = vunpack.c.l.b16 %v1134
        %v3728 = vunpack.c.h.b16 %v1134
        %v3729 = vunpack.c.l.b16 %v1135
        %v3730 = vunpack.c.h.b16 %v1135
        %v3731 = vunpack.c.l.b16 %v1136
        %v3732 = vunpack.c.h.b16 %v1136
        %v3733 = vunpack.c.l.b16 %v1137
        %v3734 = vunpack.c.h.b16 %v1137
        %v3735 = vunpack.c.l.b16 %v1138
        %v3736 = vunpack.c.h.b16 %v1138
        %v3737 = vunpack.c.l.b16 %v1139
        %v3738 = vunpack.c.h.b16 %v1139
        %v3739 = vunpack.c.l.b16 %v1140
        %v3740 = vunpack.c.h.b16 %v1140
        %v3741 = vunpack.c.l.b16 %v1141
        %v3742 = vunpack.c.h.b16 %v1141
        %v3743 = vunpack.c.l.b16 %v1142
        %v3744 = vunpack.c.h.b16 %v1142
        %v3745 = vunpack.c.l.b16 %v1143
        %v3746 = vunpack.c.h.b16 %v1143
        %v3747 = vunpack.c.l.b16 %v1144
        %v3748 = vunpack.c.h.b16 %v1144
        %v3749 = vunpack.c.l.b16 %v1145
        %v3750 = vunpack.c.h.b16 %v1145
        %v3751 = vunpack.c.l.b16 %v1146
        %v3752 = vunpack.c.h.b16 %v1146
        %v3753 = vunpack.c.l.b16 %v1147
        %v3754 = vunpack.c.h.b16 %v1147
        %v3755 = vunpack.c.l.b16 %v1148
        %v3756 = vunpack.c.h.b16 %v1148
        %v3757 = vunpack.c.l.b16 %v1149
        %v3758 = vunpack.c.h.b16 %v1149
        %v3759 = vunpack.c.l.b16 %v1150
        %v3760 = vunpack.c.h.b16 %v1150
        %v3761 = vunpack.c.l.b16 %v1151
        %v3762 = vunpack.c.h.b16 %v1151
        %v3763 = vunpack.c.l.b16 %v1152
        %v3764 = vunpack.c.h.b16 %v1152
        %v3765 = vunpack.c.l.b16 %v1153
        %v3766 = vunpack.c.h.b16 %v1153
        %v3767 = vunpack.c.l.b16 %v1154
        %v3768 = vunpack.c.h.b16 %v1154
        %v3769 = vunpack.c.l.b16 %v1155
        %v3770 = vunpack.c.h.b16 %v1155
        %v3771 = vunpack.c.l.b16 %v1156
        %v3772 = vunpack.c.h.b16 %v1156
        %v3773 = vunpack.c.l.b16 %v1157
        %v3774 = vunpack.c.h.b16 %v1157
        %v3775 = vunpack.c.l.b16 %v1158
        %v3776 = vunpack.c.h.b16 %v1158
        %v3777 = vunpack.c.l.b16 %v1159
        %v3778 = vunpack.c.h.b16 %v1159
        %v3779 = vunpack.c.l.b16 %v1160
        %v3780 = vunpack.c.h.b16 %v1160
        %v3781 = vunpack.c.l.b16 %v1161
        %v3782 = vunpack.c.h.b16 %v1161
        %v3783 = vunpack.c.l.b16 %v1162
        %v3784 = vunpack.c.h.b16 %v1162
        %v3785 = vunpack.c.l.b16 %v1163
        %v3786 = vunpack.c.h.b16 %v1163
        %v3787 = vunpack.c.l.b16 %v1164
        %v3788 = vunpack.c.h.b16 %v1164
        %v3789 = vunpack.c.l.b16 %v1165
        %v3790 = vunpack.c.h.b16 %v1165
        %v3791 = vunpack.c.l.b16 %v1166
        %v3792 = vunpack.c.h.b16 %v1166
        %v3793 = vunpack.c.l.b16 %v1167
        %v3794 = vunpack.c.h.b16 %v1167
        %v3795 = vunpack.c.l.b16 %v1168
        %v3796 = vunpack.c.h.b16 %v1168
        %v3797 = vunpack.c.l.b16 %v1169
        %v3798 = vunpack.c.h.b16 %v1169
        %v3799 = vunpack.c.l.b16 %v1170
        %v3800 = vunpack.c.h.b16 %v1170
        %v3801 = vunpack.c.l.b16 %v1171
        %v3802 = vunpack.c.h.b16 %v1171
        %v3803 = vunpack.c.l.b16 %v1172
        %v3804 = vunpack.c.h.b16 %v1172
        %v3805 = vunpack.c.l.b16 %v1173
        %v3806 = vunpack.c.h.b16 %v1173
        %v3807 = vunpack.c.l.b16 %v1174
        %v3808 = vunpack.c.h.b16 %v1174
        %v3809 = vunpack.c.l.b16 %v1175
        %v3810 = vunpack.c.h.b16 %v1175
        %v3811 = vunpack.c.l.b16 %v1176
        %v3812 = vunpack.c.h.b16 %v1176
        %v3813 = vunpack.c.l.b16 %v1177
        %v3814 = vunpack.c.h.b16 %v1177
        %v3815 = vunpack.c.l.b16 %v1178
        %v3816 = vunpack.c.h.b16 %v1178
        %v3817 = vunpack.c.l.b16 %v1179
        %v3818 = vunpack.c.h.b16 %v1179
        %v3819 = vunpack.c.l.b16 %v1180
        %v3820 = vunpack.c.h.b16 %v1180
        %v3821 = vunpack.c.l.b16 %v1181
        %v3822 = vunpack.c.h.b16 %v1181
        %v3823 = vunpack.c.l.b16 %v1182
        %v3824 = vunpack.c.h.b16 %v1182
        %v3825 = vunpack.c.l.b16 %v1183
        %v3826 = vunpack.c.h.b16 %v1183
        %v3827 = vunpack.c.l.b16 %v1184
        %v3828 = vunpack.c.h.b16 %v1184
        %v3829 = vunpack.c.l.b16 %v1185
        %v3830 = vunpack.c.h.b16 %v1185
        %v3831 = vunpack.c.l.b16 %v1186
        %v3832 = vunpack.c.h.b16 %v1186
        %v3833 = vunpack.c.l.b16 %v1187
        %v3834 = vunpack.c.h.b16 %v1187
        %v3835 = vunpack.c.l.b16 %v1188
        %v3836 = vunpack.c.h.b16 %v1188
        %v3837 = vunpack.c.l.b16 %v1189
        %v3838 = vunpack.c.h.b16 %v1189
        %v3839 = vunpack.c.l.b16 %v1190
        %v3840 = vunpack.c.h.b16 %v1190
        %v3841 = vunpack.c.l.b16 %v1191
        %v3842 = vunpack.c.h.b16 %v1191
        %v3843 = vunpack.c.l.b16 %v1192
        %v3844 = vunpack.c.h.b16 %v1192
        %v3845 = vunpack.c.l.b16 %v1193
        %v3846 = vunpack.c.h.b16 %v1193
        %v3847 = vunpack.c.l.b16 %v1194
        %v3848 = vunpack.c.h.b16 %v1194
        %v3849 = vunpack.c.l.b16 %v1195
        %v3850 = vunpack.c.h.b16 %v1195
        %v3851 = vunpack.c.l.b16 %v1196
        %v3852 = vunpack.c.h.b16 %v1196
        %v3853 = vunpack.c.l.b16 %v1197
        %v3854 = vunpack.c.h.b16 %v1197
        %v3855 = vunpack.c.l.b16 %v1198
        %v3856 = vunpack.c.h.b16 %v1198
        %v3857 = vunpack.c.l.b16 %v1199
        %v3858 = vunpack.c.h.b16 %v1199
        %v3859 = vunpack.c.l.b16 %v1200
        %v3860 = vunpack.c.h.b16 %v1200
        %v3861 = vunpack.c.l.b16 %v1201
        %v3862 = vunpack.c.h.b16 %v1201
        %v3863 = vunpack.c.l.b16 %v1202
        %v3864 = vunpack.c.h.b16 %v1202
        %v3865 = vunpack.c.l.b16 %v1203
        %v3866 = vunpack.c.h.b16 %v1203
        %v3867 = vunpack.c.l.b16 %v1204
        %v3868 = vunpack.c.h.b16 %v1204
        %v3869 = vunpack.c.l.b16 %v1205
        %v3870 = vunpack.c.h.b16 %v1205
        %v3871 = vunpack.c.l.b16 %v1206
        %v3872 = vunpack.c.h.b16 %v1206
        %v3873 = vunpack.c.l.b16 %v1207
        %v3874 = vunpack.c.h.b16 %v1207
        %v3875 = vunpack.c.l.b16 %v1208
        %v3876 = vunpack.c.h.b16 %v1208
        %v3877 = vunpack.c.l.b16 %v1209
        %v3878 = vunpack.c.h.b16 %v1209
        %v3879 = vunpack.c.l.b16 %v1210
        %v3880 = vunpack.c.h.b16 %v1210
        %v3881 = vunpack.c.l.b16 %v1211
        %v3882 = vunpack.c.h.b16 %v1211
        %v3883 = vunpack.c.l.b16 %v1212
        %v3884 = vunpack.c.h.b16 %v1212
        %v3885 = vunpack.c.l.b16 %v1213
        %v3886 = vunpack.c.h.b16 %v1213
        %v3887 = vunpack.c.l.b16 %v1214
        %v3888 = vunpack.c.h.b16 %v1214
        %v3889 = vunpack.c.l.b16 %v1215
        %v3890 = vunpack.c.h.b16 %v1215
        %v3891 = vunpack.c.l.b16 %v1216
        %v3892 = vunpack.c.h.b16 %v1216
        %v3893 = vunpack.c.l.b16 %v1217
        %v3894 = vunpack.c.h.b16 %v1217
        %v3895 = vunpack.c.l.b16 %v1218
        %v3896 = vunpack.c.h.b16 %v1218
        %v3897 = vunpack.c.l.b16 %v1219
        %v3898 = vunpack.c.h.b16 %v1219
        %v3899 = vunpack.c.l.b16 %v1220
        %v3900 = vunpack.c.h.b16 %v1220
        %v3901 = vunpack.c.l.b16 %v1221
        %v3902 = vunpack.c.h.b16 %v1221
        %v3903 = vunpack.c.l.b16 %v1222
        %v3904 = vunpack.c.h.b16 %v1222
        %v3905 = vunpack.c.l.b16 %v1223
        %v3906 = vunpack.c.h.b16 %v1223
        %v3907 = vunpack.c.l.b16 %v1224
        %v3908 = vunpack.c.h.b16 %v1224
        %v3909 = vunpack.c.l.b16 %v1225
        %v3910 = vunpack.c.h.b16 %v1225
        %v3911 = vunpack.c.l.b16 %v1226
        %v3912 = vunpack.c.h.b16 %v1226
        %v3913 = vunpack.c.l.b16 %v1227
        %v3914 = vunpack.c.h.b16 %v1227
        %v3915 = vunpack.c.l.b16 %v1228
        %v3916 = vunpack.c.h.b16 %v1228
        %v3917 = vunpack.c.l.b16 %v1229
        %v3918 = vunpack.c.h.b16 %v1229
        %v3919 = vunpack.c.l.b16 %v1230
        %v3920 = vunpack.c.h.b16 %v1230
        %v3921 = vunpack.c.l.b16 %v1231
        %v3922 = vunpack.c.h.b16 %v1231
        %v3923 = vunpack.c.l.b16 %v1232
        %v3924 = vunpack.c.h.b16 %v1232
        %v3925 = vunpack.c.l.b16 %v1233
        %v3926 = vunpack.c.h.b16 %v1233
        %v3927 = vunpack.c.l.b16 %v1234
        %v3928 = vunpack.c.h.b16 %v1234
        %v3929 = vunpack.c.l.b16 %v1235
        %v3930 = vunpack.c.h.b16 %v1235
        %v3931 = vunpack.c.l.b16 %v1236
        %v3932 = vunpack.c.h.b16 %v1236
        %v3933 = vunpack.c.l.b16 %v1237
        %v3934 = vunpack.c.h.b16 %v1237
        %v3935 = vunpack.c.l.b16 %v1238
        %v3936 = vunpack.c.h.b16 %v1238
        %v3937 = vunpack.c.l.b16 %v1239
        %v3938 = vunpack.c.h.b16 %v1239
        %v3939 = vunpack.c.l.b16 %v1240
        %v3940 = vunpack.c.h.b16 %v1240
        %v3941 = vunpack.c.l.b16 %v1241
        %v3942 = vunpack.c.h.b16 %v1241
        %v3943 = vunpack.c.l.b16 %v1242
        %v3944 = vunpack.c.h.b16 %v1242
        %v3945 = vunpack.c.l.b16 %v1243
        %v3946 = vunpack.c.h.b16 %v1243
        %v3947 = vunpack.c.l.b16 %v1244
        %v3948 = vunpack.c.h.b16 %v1244
        %v3949 = vunpack.c.l.b16 %v1245
        %v3950 = vunpack.c.h.b16 %v1245
        %v3951 = vunpack.c.l.b16 %v1246
        %v3952 = vunpack.c.h.b16 %v1246
        %v3953 = vunpack.c.l.b16 %v1247
        %v3954 = vunpack.c.h.b16 %v1247
        %v3955 = vunpack.c.l.b16 %v1248
        %v3956 = vunpack.c.h.b16 %v1248
        %v3957 = vunpack.c.l.b16 %v1249
        %v3958 = vunpack.c.h.b16 %v1249
        %v3959 = vunpack.c.l.b16 %v1250
        %v3960 = vunpack.c.h.b16 %v1250
        %v3961 = vunpack.c.l.b16 %v1251
        %v3962 = vunpack.c.h.b16 %v1251
        %v3963 = vunpack.c.l.b16 %v1252
        %v3964 = vunpack.c.h.b16 %v1252
        %v3965 = vunpack.c.l.b16 %v1253
        %v3966 = vunpack.c.h.b16 %v1253
        %v3967 = vunpack.c.l.b16 %v1254
        %v3968 = vunpack.c.h.b16 %v1254
        %v3969 = vunpack.c.l.b16 %v1255
        %v3970 = vunpack.c.h.b16 %v1255
        %v3971 = vunpack.c.l.b16 %v1256
        %v3972 = vunpack.c.h.b16 %v1256
        %v3973 = vpack.c.b16 %v2407, %v2405
        %v3974 = vpack.c.b16 %v2408, %v2406
        %v3975 = vpack.c.b16 %v2411, %v2409
        %v3976 = vpack.c.b16 %v2412, %v2410
        %v3977 = vpack.c.b16 %v2415, %v2413
        %v3978 = vpack.c.b16 %v2416, %v2414
        %v3979 = vpack.c.b16 %v2419, %v2417
        %v3980 = vpack.c.b16 %v2420, %v2418
        %v3981 = vpack.c.b16 %v2423, %v2421
        %v3982 = vpack.c.b16 %v2424, %v2422
        %v3983 = vpack.c.b16 %v2427, %v2425
        %v3984 = vpack.c.b16 %v2428, %v2426
        %v3985 = vpack.c.b16 %v2431, %v2429
        %v3986 = vpack.c.b16 %v2432, %v2430
        %v3987 = vpack.c.b16 %v2435, %v2433
        %v3988 = vpack.c.b16 %v2436, %v2434
        %v3989 = vpack.c.b16 %v2439, %v2437
        %v3990 = vpack.c.b16 %v2440, %v2438
        %v3991 = vpack.c.b16 %v2443, %v2441
        %v3992 = vpack.c.b16 %v2444, %v2442
        %v3993 = vpack.c.b16 %v2447, %v2445
        %v3994 = vpack.c.b16 %v2448, %v2446
        %v3995 = vpack.c.b16 %v2451, %v2449
        %v3996 = vpack.c.b16 %v2452, %v2450
        %v3997 = vpack.c.b16 %v2455, %v2453
        %v3998 = vpack.c.b16 %v2456, %v2454
        %v3999 = vpack.c.b16 %v2459, %v2457
        %v4000 = vpack.c.b16 %v2460, %v2458
        %v4001 = vpack.c.b16 %v2463, %v2461
        %v4002 = vpack.c.b16 %v2464, %v2462
        %v4003 = vpack.c.b16 %v2467, %v2465
        %v4004 = vpack.c.b16 %v2468, %v2466
        %v4005 = vpack.c.b16 %v2471, %v2469
        %v4006 = vpack.c.b16 %v2472, %v2470
        %v4007 = vpack.c.b16 %v2475, %v2473
        %v4008 = vpack.c.b16 %v2476, %v2474
        %v4009 = vpack.c.b16 %v2479, %v2477
        %v4010 = vpack.c.b16 %v2480, %v2478
        %v4011 = vpack.c.b16 %v2483, %v2481
        %v4012 = vpack.c.b16 %v2484, %v2482
        %v4013 = vpack.c.b16 %v2487, %v2485
        %v4014 = vpack.c.b16 %v2488, %v2486
        %v4015 = vpack.c.b16 %v2491, %v2489
        %v4016 = vpack.c.b16 %v2492, %v2490
        %v4017 = vpack.c.b16 %v2495, %v2493
        %v4018 = vpack.c.b16 %v2496, %v2494
        %v4019 = vpack.c.b16 %v2499, %v2497
        %v4020 = vpack.c.b16 %v2500, %v2498
        %v4021 = vpack.c.b16 %v2503, %v2501
        %v4022 = vpack.c.b16 %v2504, %v2502
        %v4023 = vpack.c.b16 %v2507, %v2505
        %v4024 = vpack.c.b16 %v2508, %v2506
        %v4025 = vpack.c.b16 %v2511, %v2509
        %v4026 = vpack.c.b16 %v2512, %v2510
        %v4027 = vpack.c.b16 %v2515, %v2513
        %v4028 = vpack.c.b16 %v2516, %v2514
        %v4029 = vpack.c.b16 %v2519, %v2517
        %v4030 = vpack.c.b16 %v2520, %v2518
        %v4031 = vpack.c.b16 %v2523, %v2521
        %v4032 = vpack.c.b16 %v2524, %v2522
        %v4033 = vpack.c.b16 %v2527, %v2525
        %v4034 = vpack.c.b16 %v2528, %v2526
        %v4035 = vpack.c.b16 %v2531, %v2529
        %v4036 = vpack.c.b16 %v2532, %v2530
        %v4037 = vpack.c.b16 %v2535, %v2533
        %v4038 = vpack.c.b16 %v2536, %v2534
        %v4039 = vpack.c.b16 %v2539, %v2537
        %v4040 = vpack.c.b16 %v2540, %v2538
        %v4041 = vpack.c.b16 %v2543, %v2541
        %v4042 = vpack.c.b16 %v2544, %v2542
        %v4043 = vpack.c.b16 %v2547, %v2545
        %v4044 = vpack.c.b16 %v2548, %v2546
        %v4045 = vpack.c.b16 %v2551, %v2549
        %v4046 = vpack.c.b16 %v2552, %v2550
        %v4047 = vpack.c.b16 %v2555, %v2553
        %v4048 = vpack.c.b16 %v2556, %v2554
        %v4049 = vpack.c.b16 %v2559, %v2557
        %v4050 = vpack.c.b16 %v2560, %v2558
        %v4051 = vpack.c.b16 %v2563, %v2561
        %v4052 = vpack.c.b16 %v2564, %v2562
        %v4053 = vpack.c.b16 %v2567, %v2565
        %v4054 = vpack.c.b16 %v2568, %v2566
        %v4055 = vpack.c.b16 %v2571, %v2569
        %v4056 = vpack.c.b16 %v2572, %v2570
        %v4057 = vpack.c.b16 %v2575, %v2573
        %v4058 = vpack.c.b16 %v2576, %v2574
        %v4059 = vpack.c.b16 %v2579, %v2577
        %v4060 = vpack.c.b16 %v2580, %v2578
        %v4061 = vpack.c.b16 %v2583, %v2581
        %v4062 = vpack.c.b16 %v2584, %v2582
        %v4063 = vpack.c.b16 %v2587, %v2585
        %v4064 = vpack.c.b16 %v2588, %v2586
        %v4065 = vpack.c.b16 %v2591, %v2589
        %v4066 = vpack.c.b16 %v2592, %v2590
        %v4067 = vpack.c.b16 %v2595, %v2593
        %v4068 = vpack.c.b16 %v2596, %v2594
        %v4069 = vpack.c.b16 %v2599, %v2597
        %v4070 = vpack.c.b16 %v2600, %v2598
        %v4071 = vpack.c.b16 %v2603, %v2601
        %v4072 = vpack.c.b16 %v2604, %v2602
        %v4073 = vpack.c.b16 %v2607, %v2605
        %v4074 = vpack.c.b16 %v2608, %v2606
        %v4075 = vpack.c.b16 %v2611, %v2609
        %v4076 = vpack.c.b16 %v2612, %v2610
        %v4077 = vpack.c.b16 %v2615, %v2613
        %v4078 = vpack.c.b16 %v2616, %v2614
        %v4079 = vpack.c.b16 %v2619, %v2617
        %v4080 = vpack.c.b16 %v2620, %v2618
        %v4081 = vpack.c.b16 %v2623, %v2621
        %v4082 = vpack.c.b16 %v2624, %v2622
        %v4083 = vpack.c.b16 %v2627, %v2625
        %v4084 = vpack.c.b16 %v2628, %v2626
        %v4085 = vpack.c.b16 %v2631, %v2629
        %v4086 = vpack.c.b16 %v2632, %v2630
        %v4087 = vpack.c.b16 %v2635, %v2633
        %v4088 = vpack.c.b16 %v2636, %v2634
        %v4089 = vpack.c.b16 %v2639, %v2637
        %v4090 = vpack.c.b16 %v2640, %v2638
        %v4091 = vpack.c.b16 %v2643, %v2641
        %v4092 = vpack.c.b16 %v2644, %v2642
        %v4093 = vpack.c.b16 %v2647, %v2645
        %v4094 = vpack.c.b16 %v2648, %v2646
        %v4095 = vpack.c.b16 %v2651, %v2649
        %v4096 = vpack.c.b16 %v2652, %v2650
        %v4097 = vpack.c.b16 %v2655, %v2653
        %v4098 = vpack.c.b16 %v2656, %v2654
        %v4099 = vpack.c.b16 %v2659, %v2657
        %v4100 = vpack.c.b16 %v2660, %v2658
        %v4101 = vpack.c.b16 %v2663, %v2661
        %v4102 = vpack.c.b16 %v2664, %v2662
        %v4103 = vpack.c.b16 %v2667, %v2665
        %v4104 = vpack.c.b16 %v2668, %v2666
        %v4105 = vpack.c.b16 %v2671, %v2669
        %v4106 = vpack.c.b16 %v2672, %v2670
        %v4107 = vpack.c.b16 %v2675, %v2673
        %v4108 = vpack.c.b16 %v2676, %v2674
        %v4109 = vpack.c.b16 %v2679, %v2677
        %v4110 = vpack.c.b16 %v2680, %v2678
        %v4111 = vpack.c.b16 %v2683, %v2681
        %v4112 = vpack.c.b16 %v2684, %v2682
        %v4113 = vpack.c.b16 %v2687, %v2685
        %v4114 = vpack.c.b16 %v2688, %v2686
        %v4115 = vpack.c.b16 %v2691, %v2689
        %v4116 = vpack.c.b16 %v2692, %v2690
        %v4117 = vpack.c.b16 %v2695, %v2693
        %v4118 = vpack.c.b16 %v2696, %v2694
        %v4119 = vpack.c.b16 %v2699, %v2697
        %v4120 = vpack.c.b16 %v2700, %v2698
        %v4121 = vpack.c.b16 %v2703, %v2701
        %v4122 = vpack.c.b16 %v2704, %v2702
        %v4123 = vpack.c.b16 %v2707, %v2705
        %v4124 = vpack.c.b16 %v2708, %v2706
        %v4125 = vpack.c.b16 %v2711, %v2709
        %v4126 = vpack.c.b16 %v2712, %v2710
        %v4127 = vpack.c.b16 %v2715, %v2713
        %v4128 = vpack.c.b16 %v2716, %v2714
        %v4129 = vpack.c.b16 %v2719, %v2717
        %v4130 = vpack.c.b16 %v2720, %v2718
        %v4131 = vpack.c.b16 %v2723, %v2721
        %v4132 = vpack.c.b16 %v2724, %v2722
        %v4133 = vpack.c.b16 %v2727, %v2725
        %v4134 = vpack.c.b16 %v2728, %v2726
        %v4135 = vpack.c.b16 %v2731, %v2729
        %v4136 = vpack.c.b16 %v2732, %v2730
        %v4137 = vpack.c.b16 %v2735, %v2733
        %v4138 = vpack.c.b16 %v2736, %v2734
        %v4139 = vpack.c.b16 %v2739, %v2737
        %v4140 = vpack.c.b16 %v2740, %v2738
        %v4141 = vpack.c.b16 %v2743, %v2741
        %v4142 = vpack.c.b16 %v2744, %v2742
        %v4143 = vpack.c.b16 %v2747, %v2745
        %v4144 = vpack.c.b16 %v2748, %v2746
        %v4145 = vpack.c.b16 %v2751, %v2749
        %v4146 = vpack.c.b16 %v2752, %v2750
        %v4147 = vpack.c.b16 %v2755, %v2753
        %v4148 = vpack.c.b16 %v2756, %v2754
        %v4149 = vpack.c.b16 %v2759, %v2757
        %v4150 = vpack.c.b16 %v2760, %v2758
        %v4151 = vpack.c.b16 %v2763, %v2761
        %v4152 = vpack.c.b16 %v2764, %v2762
        %v4153 = vpack.c.b16 %v2767, %v2765
        %v4154 = vpack.c.b16 %v2768, %v2766
        %v4155 = vpack.c.b16 %v2771, %v2769
        %v4156 = vpack.c.b16 %v2772, %v2770
        %v4157 = vpack.c.b16 %v2775, %v2773
        %v4158 = vpack.c.b16 %v2776, %v2774
        %v4159 = vpack.c.b16 %v2779, %v2777
        %v4160 = vpack.c.b16 %v2780, %v2778
        %v4161 = vpack.c.b16 %v2783, %v2781
        %v4162 = vpack.c.b16 %v2784, %v2782
        %v4163 = vpack.c.b16 %v2787, %v2785
        %v4164 = vpack.c.b16 %v2788, %v2786
        %v4165 = vpack.c.b16 %v2791, %v2789
        %v4166 = vpack.c.b16 %v2792, %v2790
        %v4167 = vpack.c.b16 %v2795, %v2793
        %v4168 = vpack.c.b16 %v2796, %v2794
        %v4169 = vpack.c.b16 %v2799, %v2797
        %v4170 = vpack.c.b16 %v2800, %v2798
        %v4171 = vpack.c.b16 %v2803, %v2801
        %v4172 = vpack.c.b16 %v2804, %v2802
        %v4173 = vpack.c.b16 %v2807, %v2805
        %v4174 = vpack.c.b16 %v2808, %v2806
        %v4175 = vpack.c.b16 %v2811, %v2809
        %v4176 = vpack.c.b16 %v2812, %v2810
        %v4177 = vpack.c.b16 %v2815, %v2813
        %v4178 = vpack.c.b16 %v2816, %v2814
        %v4179 = vpack.c.b16 %v2819, %v2817
        %v4180 = vpack.c.b16 %v2820, %v2818
        %v4181 = vpack.c.b16 %v2823, %v2821
        %v4182 = vpack.c.b16 %v2824, %v2822
        %v4183 = vpack.c.b16 %v2827, %v2825
        %v4184 = vpack.c.b16 %v2828, %v2826
        %v4185 = vpack.c.b16 %v2831, %v2829
        %v4186 = vpack.c.b16 %v2832, %v2830
        %v4187 = vpack.c.b16 %v2835, %v2833
        %v4188 = vpack.c.b16 %v2836, %v2834
        %v4189 = vpack.c.b16 %v2839, %v2837
        %v4190 = vpack.c.b16 %v2840, %v2838
        %v4191 = vpack.c.b16 %v2843, %v2841
        %v4192 = vpack.c.b16 %v2844, %v2842
        %v4193 = vpack.c.b16 %v2847, %v2845
        %v4194 = vpack.c.b16 %v2848, %v2846
        %v4195 = vpack.c.b16 %v2851, %v2849
        %v4196 = vpack.c.b16 %v2852, %v2850
        %v4197 = vpack.c.b16 %v2855, %v2853
        %v4198 = vpack.c.b16 %v2856, %v2854
        %v4199 = vpack.c.b16 %v2859, %v2857
        %v4200 = vpack.c.b16 %v2860, %v2858
        %v4201 = vpack.c.b16 %v2863, %v2861
        %v4202 = vpack.c.b16 %v2864, %v2862
        %v4203 = vpack.c.b16 %v2867, %v2865
        %v4204 = vpack.c.b16 %v2868, %v2866
        %v4205 = vpack.c.b16 %v2871, %v2869
        %v4206 = vpack.c.b16 %v2872, %v2870
        %v4207 = vpack.c.b16 %v2875, %v2873
        %v4208 = vpack.c.b16 %v2876, %v2874
        %v4209 = vpack.c.b16 %v2879, %v2877
        %v4210 = vpack.c.b16 %v2880, %v2878
        %v4211 = vpack.c.b16 %v2883, %v2881
        %v4212 = vpack.c.b16 %v2884, %v2882
        %v4213 = vpack.c.b16 %v2887, %v2885
        %v4214 = vpack.c.b16 %v2888, %v2886
        %v4215 = vpack.c.b16 %v2891, %v2889
        %v4216 = vpack.c.b16 %v2892, %v2890
        %v4217 = vpack.c.b16 %v2895, %v2893
        %v4218 = vpack.c.b16 %v2896, %v2894
        %v4219 = vpack.c.b16 %v2899, %v2897
        %v4220 = vpack.c.b16 %v2900, %v2898
        %v4221 = vpack.c.b16 %v2903, %v2901
        %v4222 = vpack.c.b16 %v2904, %v2902
        %v4223 = vpack.c.b16 %v2907, %v2905
        %v4224 = vpack.c.b16 %v2908, %v2906
        %v4225 = vpack.c.b16 %v2911, %v2909
        %v4226 = vpack.c.b16 %v2912, %v2910
        %v4227 = vpack.c.b16 %v2915, %v2913
        %v4228 = vpack.c.b16 %v2916, %v2914
        %v4229 = vpack.c.b16 %v2919, %v2917
        %v4230 = vpack.c.b16 %v2920, %v2918
        %v4231 = vpack.c.b16 %v2923, %v2921
        %v4232 = vpack.c.b16 %v2924, %v2922
        %v4233 = vpack.c.b16 %v2927, %v2925
        %v4234 = vpack.c.b16 %v2928, %v2926
        %v4235 = vpack.c.b16 %v2931, %v2929
        %v4236 = vpack.c.b16 %v2932, %v2930
        %v4237 = vpack.c.b16 %v2935, %v2933
        %v4238 = vpack.c.b16 %v2936, %v2934
        %v4239 = vpack.c.b16 %v2939, %v2937
        %v4240 = vpack.c.b16 %v2940, %v2938
        %v4241 = vpack.c.b16 %v2943, %v2941
        %v4242 = vpack.c.b16 %v2944, %v2942
        %v4243 = vpack.c.b16 %v2947, %v2945
        %v4244 = vpack.c.b16 %v2948, %v2946
        %v4245 = vpack.c.b16 %v2951, %v2949
        %v4246 = vpack.c.b16 %v2952, %v2950
        %v4247 = vpack.c.b16 %v2955, %v2953
        %v4248 = vpack.c.b16 %v2956, %v2954
        %v4249 = vpack.c.b16 %v2959, %v2957
        %v4250 = vpack.c.b16 %v2960, %v2958
        %v4251 = vpack.c.b16 %v2963, %v2961
        %v4252 = vpack.c.b16 %v2964, %v2962
        %v4253 = vpack.c.b16 %v2967, %v2965
        %v4254 = vpack.c.b16 %v2968, %v2966
        %v4255 = vpack.c.b16 %v2971, %v2969
        %v4256 = vpack.c.b16 %v2972, %v2970
        %v4257 = vpack.c.b16 %v2975, %v2973
        %v4258 = vpack.c.b16 %v2976, %v2974
        %v4259 = vpack.c.b16 %v2979, %v2977
        %v4260 = vpack.c.b16 %v2980, %v2978
        %v4261 = vpack.c.b16 %v2983, %v2981
        %v4262 = vpack.c.b16 %v2984, %v2982
        %v4263 = vpack.c.b16 %v2987, %v2985
        %v4264 = vpack.c.b16 %v2988, %v2986
        %v4265 = vpack.c.b16 %v2991, %v2989
        %v4266 = vpack.c.b16 %v2992, %v2990
        %v4267 = vpack.c.b16 %v2995, %v2993
        %v4268 = vpack.c.b16 %v2996, %v2994
        %v4269 = vpack.c.b16 %v2999, %v2997
        %v4270 = vpack.c.b16 %v3000, %v2998
        %v4271 = vpack.c.b16 %v3003, %v3001
        %v4272 = vpack.c.b16 %v3004, %v3002
        %v4273 = vpack.c.b16 %v3007, %v3005
        %v4274 = vpack.c.b16 %v3008, %v3006
        %v4275 = vpack.c.b16 %v3011, %v3009
        %v4276 = vpack.c.b16 %v3012, %v3010
        %v4277 = vpack.c.b16 %v3015, %v3013
        %v4278 = vpack.c.b16 %v3016, %v3014
        %v4279 = vpack.c.b16 %v3019, %v3017
        %v4280 = vpack.c.b16 %v3020, %v3018
        %v4281 = vpack.c.b16 %v3023, %v3021
        %v4282 = vpack.c.b16 %v3024, %v3022
        %v4283 = vpack.c.b16 %v3027, %v3025
        %v4284 = vpack.c.b16 %v3028, %v3026
        %v4285 = vpack.c.b16 %v3031, %v3029
        %v4286 = vpack.c.b16 %v3032, %v3030
        %v4287 = vpack.c.b16 %v3035, %v3033
        %v4288 = vpack.c.b16 %v3036, %v3034
        %v4289 = vpack.c.b16 %v3039, %v3037
        %v4290 = vpack.c.b16 %v3040, %v3038
        %v4291 = vpack.c.b16 %v3043, %v3041
        %v4292 = vpack.c.b16 %v3044, %v3042
        %v4293 = vpack.c.b16 %v3047, %v3045
        %v4294 = vpack.c.b16 %v3048, %v3046
        %v4295 = vpack.c.b16 %v3051, %v3049
        %v4296 = vpack.c.b16 %v3052, %v3050
        %v4297 = vpack.c.b16 %v3055, %v3053
        %v4298 = vpack.c.b16 %v3056, %v3054
        %v4299 = vpack.c.b16 %v3059, %v3057
        %v4300 = vpack.c.b16 %v3060, %v3058
        %v4301 = vpack.c.b16 %v3063, %v3061
        %v4302 = vpack.c.b16 %v3064, %v3062
        %v4303 = vpack.c.b16 %v3067, %v3065
        %v4304 = vpack.c.b16 %v3068, %v3066
        %v4305 = vpack.c.b16 %v3071, %v3069
        %v4306 = vpack.c.b16 %v3072, %v3070
        %v4307 = vpack.c.b16 %v3075, %v3073
        %v4308 = vpack.c.b16 %v3076, %v3074
        %v4309 = vpack.c.b16 %v3079, %v3077
        %v4310 = vpack.c.b16 %v3080, %v3078
        %v4311 = vpack.c.b16 %v3083, %v3081
        %v4312 = vpack.c.b16 %v3084, %v3082
        %v4313 = vpack.c.b16 %v3087, %v3085
        %v4314 = vpack.c.b16 %v3088, %v3086
        %v4315 = vpack.c.b16 %v3091, %v3089
        %v4316 = vpack.c.b16 %v3092, %v3090
        %v4317 = vpack.c.b16 %v3095, %v3093
        %v4318 = vpack.c.b16 %v3096, %v3094
        %v4319 = vpack.c.b16 %v3099, %v3097
        %v4320 = vpack.c.b16 %v3100, %v3098
        %v4321 = vpack.c.b16 %v3103, %v3101
        %v4322 = vpack.c.b16 %v3104, %v3102
        %v4323 = vpack.c.b16 %v3107, %v3105
        %v4324 = vpack.c.b16 %v3108, %v3106
        %v4325 = vpack.c.b16 %v3111, %v3109
        %v4326 = vpack.c.b16 %v3112, %v3110
        %v4327 = vpack.c.b16 %v3115, %v3113
        %v4328 = vpack.c.b16 %v3116, %v3114
        %v4329 = vpack.c.b16 %v3119, %v3117
        %v4330 = vpack.c.b16 %v3120, %v3118
        %v4331 = vpack.c.b16 %v3123, %v3121
        %v4332 = vpack.c.b16 %v3124, %v3122
        %v4333 = vpack.c.b16 %v3127, %v3125
        %v4334 = vpack.c.b16 %v3128, %v3126
        %v4335 = vpack.c.b16 %v3131, %v3129
        %v4336 = vpack.c.b16 %v3132, %v3130
        %v4337 = vpack.c.b16 %v3135, %v3133
        %v4338 = vpack.c.b16 %v3136, %v3134
        %v4339 = vpack.c.b16 %v3139, %v3137
        %v4340 = vpack.c.b16 %v3140, %v3138
        %v4341 = vpack.c.b16 %v3143, %v3141
        %v4342 = vpack.c.b16 %v3144, %v3142
        %v4343 = vpack.c.b16 %v3147, %v3145
        %v4344 = vpack.c.b16 %v3148, %v3146
        %v4345 = vpack.c.b16 %v3151, %v3149
        %v4346 = vpack.c.b16 %v3152, %v3150
        %v4347 = vpack.c.b16 %v3155, %v3153
        %v4348 = vpack.c.b16 %v3156, %v3154
        %v4349 = vpack.c.b16 %v3159, %v3157
        %v4350 = vpack.c.b16 %v3160, %v3158
        %v4351 = vpack.c.b16 %v3163, %v3161
        %v4352 = vpack.c.b16 %v3164, %v3162
        %v4353 = vpack.c.b16 %v3167, %v3165
        %v4354 = vpack.c.b16 %v3168, %v3166
        %v4355 = vpack.c.b16 %v3171, %v3169
        %v4356 = vpack.c.b16 %v3172, %v3170
        %v4357 = vpack.c.b16 %v3175, %v3173
        %v4358 = vpack.c.b16 %v3176, %v3174
        %v4359 = vpack.c.b16 %v3179, %v3177
        %v4360 = vpack.c.b16 %v3180, %v3178
        %v4361 = vpack.c.b16 %v3183, %v3181
        %v4362 = vpack.c.b16 %v3184, %v3182
        %v4363 = vpack.c.b16 %v3187, %v3185
        %v4364 = vpack.c.b16 %v3188, %v3186
        %v4365 = vpack.c.b16 %v3191, %v3189
        %v4366 = vpack.c.b16 %v3192, %v3190
        %v4367 = vpack.c.b16 %v3195, %v3193
        %v4368 = vpack.c.b16 %v3196, %v3194
        %v4369 = vpack.c.b16 %v3199, %v3197
        %v4370 = vpack.c.b16 %v3200, %v3198
        %v4371 = vpack.c.b16 %v3203, %v3201
        %v4372 = vpack.c.b16 %v3204, %v3202
        %v4373 = vpack.c.b16 %v3207, %v3205
        %v4374 = vpack.c.b16 %v3208, %v3206
        %v4375 = vpack.c.b16 %v3211, %v3209
        %v4376 = vpack.c.b16 %v3212, %v3210
        %v4377 = vpack.c.b16 %v3215, %v3213
        %v4378 = vpack.c.b16 %v3216, %v3214
        %v4379 = vpack.c.b16 %v3219, %v3217
        %v4380 = vpack.c.b16 %v3220, %v3218
        %v4381 = vpack.c.b16 %v3223, %v3221
        %v4382 = vpack.c.b16 %v3224, %v3222
        %v4383 = vpack.c.b16 %v3227, %v3225
        %v4384 = vpack.c.b16 %v3228, %v3226
        %v4385 = vpack.c.b16 %v3231, %v3229
        %v4386 = vpack.c.b16 %v3232, %v3230
        %v4387 = vpack.c.b16 %v3235, %v3233
        %v4388 = vpack.c.b16 %v3236, %v3234
        %v4389 = vpack.c.b16 %v3239, %v3237
        %v4390 = vpack.c.b16 %v3240, %v3238
        %v4391 = vpack.c.b16 %v3243, %v3241
        %v4392 = vpack.c.b16 %v3244, %v3242
        %v4393 = vpack.c.b16 %v3247, %v3245
        %v4394 = vpack.c.b16 %v3248, %v3246
        %v4395 = vpack.c.b16 %v3251, %v3249
        %v4396 = vpack.c.b16 %v3252, %v3250
        %v4397 = vpack.c.b16 %v3255, %v3253
        %v4398 = vpack.c.b16 %v3256, %v3254
        %v4399 = vpack.c.b16 %v3259, %v3257
        %v4400 = vpack.c.b16 %v3260, %v3258
        %v4401 = vpack.c.b16 %v3263, %v3261
        %v4402 = vpack.c.b16 %v3264, %v3262
        %v4403 = vpack.c.b16 %v3267, %v3265
        %v4404 = vpack.c.b16 %v3268, %v3266
        %v4405 = vpack.c.b16 %v3271, %v3269
        %v4406 = vpack.c.b16 %v3272, %v3270
        %v4407 = vpack.c.b16 %v3275, %v3273
        %v4408 = vpack.c.b16 %v3276, %v3274
        %v4409 = vpack.c.b16 %v3279, %v3277
        %v4410 = vpack.c.b16 %v3280, %v3278
        %v4411 = vpack.c.b16 %v3283, %v3281
        %v4412 = vpack.c.b16 %v3284, %v3282
        %v4413 = vpack.c.b16 %v3287, %v3285
        %v4414 = vpack.c.b16 %v3288, %v3286
        %v4415 = vpack.c.b16 %v3291, %v3289
        %v4416 = vpack.c.b16 %v3292, %v3290
        %v4417 = vpack.c.b16 %v3295, %v3293
        %v4418 = vpack.c.b16 %v3296, %v3294
        %v4419 = vpack.c.b16 %v3299, %v3297
        %v4420 = vpack.c.b16 %v3300, %v3298
        %v4421 = vpack.c.b16 %v3303, %v3301
        %v4422 = vpack.c.b16 %v3304, %v3302
        %v4423 = vpack.c.b16 %v3307, %v3305
        %v4424 = vpack.c.b16 %v3308, %v3306
        %v4425 = vpack.c.b16 %v3311, %v3309
        %v4426 = vpack.c.b16 %v3312, %v3310
        %v4427 = vpack.c.b16 %v3315, %v3313
        %v4428 = vpack.c.b16 %v3316, %v3314
        %v4429 = vpack.c.b16 %v3319, %v3317
        %v4430 = vpack.c.b16 %v3320, %v3318
        %v4431 = vpack.c.b16 %v3323, %v3321
        %v4432 = vpack.c.b16 %v3324, %v3322
        %v4433 = vpack.c.b16 %v3327, %v3325
        %v4434 = vpack.c.b16 %v3328, %v3326
        %v4435 = vpack.c.b16 %v3331, %v3329
        %v4436 = vpack.c.b16 %v3332, %v3330
        %v4437 = vpack.c.b16 %v3335, %v3333
        %v4438 = vpack.c.b16 %v3336, %v3334
        %v4439 = vpack.c.b16 %v3339, %v3337
        %v4440 = vpack.c.b16 %v3340, %v3338
        %v4441 = vpack.c.b16 %v3343, %v3341
        %v4442 = vpack.c.b16 %v3344, %v3342
        %v4443 = vpack.c.b16 %v3347, %v3345
        %v4444 = vpack.c.b16 %v3348, %v3346
        %v4445 = vpack.c.b16 %v3351, %v3349
        %v4446 = vpack.c.b16 %v3352, %v3350
        %v4447 = vpack.c.b16 %v3355, %v3353
        %v4448 = vpack.c.b16 %v3356, %v3354
        %v4449 = vpack.c.b16 %v3359, %v3357
        %v4450 = vpack.c.b16 %v3360, %v3358
        %v4451 = vpack.c.b16 %v3363, %v3361
        %v4452 = vpack.c.b16 %v3364, %v3362
        %v4453 = vpack.c.b16 %v3367, %v3365
        %v4454 = vpack.c.b16 %v3368, %v3366
        %v4455 = vpack.c.b16 %v3371, %v3369
        %v4456 = vpack.c.b16 %v3372, %v3370
        %v4457 = vpack.c.b16 %v3375, %v3373
        %v4458 = vpack.c.b16 %v3376, %v3374
        %v4459 = vpack.c.b16 %v3379, %v3377
        %v4460 = vpack.c.b16 %v3380, %v3378
        %v4461 = vpack.c.b16 %v3383, %v3381
        %v4462 = vpack.c.b16 %v3384, %v3382
        %v4463 = vpack.c.b16 %v3387, %v3385
        %v4464 = vpack.c.b16 %v3388, %v3386
        %v4465 = vpack.c.b16 %v3391, %v3389
        %v4466 = vpack.c.b16 %v3392, %v3390
        %v4467 = vpack.c.b16 %v3395, %v3393
        %v4468 = vpack.c.b16 %v3396, %v3394
        %v4469 = vpack.c.b16 %v3399, %v3397
        %v4470 = vpack.c.b16 %v3400, %v3398
        %v4471 = vpack.c.b16 %v3403, %v3401
        %v4472 = vpack.c.b16 %v3404, %v3402
        %v4473 = vpack.c.b16 %v3407, %v3405
        %v4474 = vpack.c.b16 %v3408, %v3406
        %v4475 = vpack.c.b16 %v3411, %v3409
        %v4476 = vpack.c.b16 %v3412, %v3410
        %v4477 = vpack.c.b16 %v3415, %v3413
        %v4478 = vpack.c.b16 %v3416, %v3414
        %v4479 = vpack.c.b16 %v3419, %v3417
        %v4480 = vpack.c.b16 %v3420, %v3418
        %v4481 = vpack.c.b16 %v3423, %v3421
        %v4482 = vpack.c.b16 %v3424, %v3422
        %v4483 = vpack.c.b16 %v3427, %v3425
        %v4484 = vpack.c.b16 %v3428, %v3426
        %v4485 = vpack.c.b16 %v3431, %v3429
        %v4486 = vpack.c.b16 %v3432, %v3430
        %v4487 = vpack.c.b16 %v3435, %v3433
        %v4488 = vpack.c.b16 %v3436, %v3434
        %v4489 = vpack.c.b16 %v3439, %v3437
        %v4490 = vpack.c.b16 %v3440, %v3438
        %v4491 = vpack.c.b16 %v3443, %v3441
        %v4492 = vpack.c.b16 %v3444, %v3442
        %v4493 = vpack.c.b16 %v3447, %v3445
        %v4494 = vpack.c.b16 %v3448, %v3446
        %v4495 = vpack.c.b16 %v3451, %v3449
        %v4496 = vpack.c.b16 %v3452, %v3450
        %v4497 = vpack.c.b16 %v3455, %v3453
        %v4498 = vpack.c.b16 %v3456, %v3454
        %v4499 = vpack.c.b16 %v3459, %v3457
        %v4500 = vpack.c.b16 %v3460, %v3458
        %v4501 = vpack.c.b16 %v3463, %v3461
        %v4502 = vpack.c.b16 %v3464, %v3462
        %v4503 = vpack.c.b16 %v3467, %v3465
        %v4504 = vpack.c.b16 %v3468, %v3466
        %v4505 = vpack.c.b16 %v3471, %v3469
        %v4506 = vpack.c.b16 %v3472, %v3470
        %v4507 = vpack.c.b16 %v3475, %v3473
        %v4508 = vpack.c.b16 %v3476, %v3474
        %v4509 = vpack.c.b16 %v3479, %v3477
        %v4510 = vpack.c.b16 %v3480, %v3478
        %v4511 = vpack.c.b16 %v3483, %v3481
        %v4512 = vpack.c.b16 %v3484, %v3482
        %v4513 = vpack.c.b16 %v3487, %v3485
        %v4514 = vpack.c.b16 %v3488, %v3486
        %v4515 = vpack.c.b16 %v3491, %v3489
        %v4516 = vpack.c.b16 %v3492, %v3490
        %v4517 = vpack.c.b16 %v3495, %v3493
        %v4518 = vpack.c.b16 %v3496, %v3494
        %v4519 = vpack.c.b16 %v3499, %v3497
        %v4520 = vpack.c.b16 %v3500, %v3498
        %v4521 = vpack.c.b16 %v3503, %v3501
        %v4522 = vpack.c.b16 %v3504, %v3502
        %v4523 = vpack.c.b16 %v3507, %v3505
        %v4524 = vpack.c.b16 %v3508, %v3506
        %v4525 = vpack.c.b16 %v3511, %v3509
        %v4526 = vpack.c.b16 %v3512, %v3510
        %v4527 = vpack.c.b16 %v3515, %v3513
        %v4528 = vpack.c.b16 %v3516, %v3514
        %v4529 = vpack.c.b16 %v3519, %v3517
        %v4530 = vpack.c.b16 %v3520, %v3518
        %v4531 = vpack.c.b16 %v3523, %v3521
        %v4532 = vpack.c.b16 %v3524, %v3522
        %v4533 = vpack.c.b16 %v3527, %v3525
        %v4534 = vpack.c.b16 %v3528, %v3526
        %v4535 = vpack.c.b16 %v3531, %v3529
        %v4536 = vpack.c.b16 %v3532, %v3530
        %v4537 = vpack.c.b16 %v3535, %v3533
        %v4538 = vpack.c.b16 %v3536, %v3534
        %v4539 = vpack.c.b16 %v3539, %v3537
        %v4540 = vpack.c.b16 %v3540, %v3538
        %v4541 = vpack.c.b16 %v3543, %v3541
        %v4542 = vpack.c.b16 %v3544, %v3542
        %v4543 = vpack.c.b16 %v3547, %v3545
        %v4544 = vpack.c.b16 %v3548, %v3546
        %v4545 = vpack.c.b16 %v3551, %v3549
        %v4546 = vpack.c.b16 %v3552, %v3550
        %v4547 = vpack.c.b16 %v3555, %v3553
        %v4548 = vpack.c.b16 %v3556, %v3554
        %v4549 = vpack.c.b16 %v3559, %v3557
        %v4550 = vpack.c.b16 %v3560, %v3558
        %v4551 = vpack.c.b16 %v3563, %v3561
        %v4552 = vpack.c.b16 %v3564, %v3562
        %v4553 = vpack.c.b16 %v3567, %v3565
        %v4554 = vpack.c.b16 %v3568, %v3566
        %v4555 = vpack.c.b16 %v3571, %v3569
        %v4556 = vpack.c.b16 %v3572, %v3570
        %v4557 = vpack.c.b16 %v3575, %v3573
        %v4558 = vpack.c.b16 %v3576, %v3574
        %v4559 = vpack.c.b16 %v3579, %v3577
        %v4560 = vpack.c.b16 %v3580, %v3578
        %v4561 = vpack.c.b16 %v3583, %v3581
        %v4562 = vpack.c.b16 %v3584, %v3582
        %v4563 = vpack.c.b16 %v3587, %v3585
        %v4564 = vpack.c.b16 %v3588, %v3586
        %v4565 = vpack.c.b16 %v3591, %v3589
        %v4566 = vpack.c.b16 %v3592, %v3590
        %v4567 = vpack.c.b16 %v3595, %v3593
        %v4568 = vpack.c.b16 %v3596, %v3594
        %v4569 = vpack.c.b16 %v3599, %v3597
        %v4570 = vpack.c.b16 %v3600, %v3598
        %v4571 = vpack.c.b16 %v3603, %v3601
        %v4572 = vpack.c.b16 %v3604, %v3602
        %v4573 = vpack.c.b16 %v3607, %v3605
        %v4574 = vpack.c.b16 %v3608, %v3606
        %v4575 = vpack.c.b16 %v3611, %v3609
        %v4576 = vpack.c.b16 %v3612, %v3610
        %v4577 = vpack.c.b16 %v3615, %v3613
        %v4578 = vpack.c.b16 %v3616, %v3614
        %v4579 = vpack.c.b16 %v3619, %v3617
        %v4580 = vpack.c.b16 %v3620, %v3618
        %v4581 = vpack.c.b16 %v3623, %v3621
        %v4582 = vpack.c.b16 %v3624, %v3622
        %v4583 = vpack.c.b16 %v3627, %v3625
        %v4584 = vpack.c.b16 %v3628, %v3626
        %v4585 = vpack.c.b16 %v3631, %v3629
        %v4586 = vpack.c.b16 %v3632, %v3630
        %v4587 = vpack.c.b16 %v3635, %v3633
        %v4588 = vpack.c.b16 %v3636, %v3634
        %v4589 = vpack.c.b16 %v3639, %v3637
        %v4590 = vpack.c.b16 %v3640, %v3638
        %v4591 = vpack.c.b16 %v3643, %v3641
        %v4592 = vpack.c.b16 %v3644, %v3642
        %v4593 = vpack.c.b16 %v3647, %v3645
        %v4594 = vpack.c.b16 %v3648, %v3646
        %v4595 = vpack.c.b16 %v3651, %v3649
        %v4596 = vpack.c.b16 %v3652, %v3650
        %v4597 = vpack.c.b16 %v3655, %v3653
        %v4598 = vpack.c.b16 %v3656, %v3654
        %v4599 = vpack.c.b16 %v3659, %v3657
        %v4600 = vpack.c.b16 %v3660, %v3658
        %v4601 = vpack.c.b16 %v3663, %v3661
        %v4602 = vpack.c.b16 %v3664, %v3662
        %v4603 = vpack.c.b16 %v3667, %v3665
        %v4604 = vpack.c.b16 %v3668, %v3666
        %v4605 = vpack.c.b16 %v3671, %v3669
        %v4606 = vpack.c.b16 %v3672, %v3670
        %v4607 = vpack.c.b16 %v3675, %v3673
        %v4608 = vpack.c.b16 %v3676, %v3674
        %v4609 = vpack.c.b16 %v3679, %v3677
        %v4610 = vpack.c.b16 %v3680, %v3678
        %v4611 = vpack.c.b16 %v3683, %v3681
        %v4612 = vpack.c.b16 %v3684, %v3682
        %v4613 = vpack.c.b16 %v3687, %v3685
        %v4614 = vpack.c.b16 %v3688, %v3686
        %v4615 = vpack.c.b16 %v3691, %v3689
        %v4616 = vpack.c.b16 %v3692, %v3690
        %v4617 = vpack.c.b16 %v3695, %v3693
        %v4618 = vpack.c.b16 %v3696, %v3694
        %v4619 = vpack.c.b16 %v3699, %v3697
        %v4620 = vpack.c.b16 %v3700, %v3698
        %v4621 = vpack.c.b16 %v3703, %v3701
        %v4622 = vpack.c.b16 %v3704, %v3702
        %v4623 = vpack.c.b16 %v3707, %v3705
        %v4624 = vpack.c.b16 %v3708, %v3706
        %v4625 = vpack.c.b16 %v3711, %v3709
        %v4626 = vpack.c.b16 %v3712, %v3710
        %v4627 = vpack.c.b16 %v3715, %v3713
        %v4628 = vpack.c.b16 %v3716, %v3714
        %v4629 = vpack.c.b16 %v3719, %v3717
        %v4630 = vpack.c.b16 %v3720, %v3718
        %v4631 = vpack.c.b16 %v3723, %v3721
        %v4632 = vpack.c.b16 %v3724, %v3722
        %v4633 = vpack.c.b16 %v3727, %v3725
        %v4634 = vpack.c.b16 %v3728, %v3726
        %v4635 = vpack.c.b16 %v3731, %v3729
        %v4636 = vpack.c.b16 %v3732, %v3730
        %v4637 = vpack.c.b16 %v3735, %v3733
        %v4638 = vpack.c.b16 %v3736, %v3734
        %v4639 = vpack.c.b16 %v3739, %v3737
        %v4640 = vpack.c.b16 %v3740, %v3738
        %v4641 = vpack.c.b16 %v3743, %v3741
        %v4642 = vpack.c.b16 %v3744, %v3742
        %v4643 = vpack.c.b16 %v3747, %v3745
        %v4644 = vpack.c.b16 %v3748, %v3746
        %v4645 = vpack.c.b16 %v3751, %v3749
        %v4646 = vpack.c.b16 %v3752, %v3750
        %v4647 = vpack.c.b16 %v3755, %v3753
        %v4648 = vpack.c.b16 %v3756, %v3754
        %v4649 = vpack.c.b16 %v3759, %v3757
        %v4650 = vpack.c.b16 %v3760, %v3758
        %v4651 = vpack.c.b16 %v3763, %v3761
        %v4652 = vpack.c.b16 %v3764, %v3762
        %v4653 = vpack.c.b16 %v3767, %v3765
        %v4654 = vpack.c.b16 %v3768, %v3766
        %v4655 = vpack.c.b16 %v3771, %v3769
        %v4656 = vpack.c.b16 %v3772, %v3770
        %v4657 = vpack.c.b16 %v3775, %v3773
        %v4658 = vpack.c.b16 %v3776, %v3774
        %v4659 = vpack.c.b16 %v3779, %v3777
        %v4660 = vpack.c.b16 %v3780, %v3778
        %v4661 = vpack.c.b16 %v3783, %v3781
        %v4662 = vpack.c.b16 %v3784, %v3782
        %v4663 = vpack.c.b16 %v3787, %v3785
        %v4664 = vpack.c.b16 %v3788, %v3786
        %v4665 = vpack.c.b16 %v3791, %v3789
        %v4666 = vpack.c.b16 %v3792, %v3790
        %v4667 = vpack.c.b16 %v3795, %v3793
        %v4668 = vpack.c.b16 %v3796, %v3794
        %v4669 = vpack.c.b16 %v3799, %v3797
        %v4670 = vpack.c.b16 %v3800, %v3798
        %v4671 = vpack.c.b16 %v3803, %v3801
        %v4672 = vpack.c.b16 %v3804, %v3802
        %v4673 = vpack.c.b16 %v3807, %v3805
        %v4674 = vpack.c.b16 %v3808, %v3806
        %v4675 = vpack.c.b16 %v3811, %v3809
        %v4676 = vpack.c.b16 %v3812, %v3810
        %v4677 = vpack.c.b16 %v3815, %v3813
        %v4678 = vpack.c.b16 %v3816, %v3814
        %v4679 = vpack.c.b16 %v3819, %v3817
        %v4680 = vpack.c.b16 %v3820, %v3818
        %v4681 = vpack.c.b16 %v3823, %v3821
        %v4682 = vpack.c.b16 %v3824, %v3822
        %v4683 = vpack.c.b16 %v3827, %v3825
        %v4684 = vpack.c.b16 %v3828, %v3826
        %v4685 = vpack.c.b16 %v3831, %v3829
        %v4686 = vpack.c.b16 %v3832, %v3830
        %v4687 = vpack.c.b16 %v3835, %v3833
        %v4688 = vpack.c.b16 %v3836, %v3834
        %v4689 = vpack.c.b16 %v3839, %v3837
        %v4690 = vpack.c.b16 %v3840, %v3838
        %v4691 = vpack.c.b16 %v3843, %v3841
        %v4692 = vpack.c.b16 %v3844, %v3842
        %v4693 = vpack.c.b16 %v3847, %v3845
        %v4694 = vpack.c.b16 %v3848, %v3846
        %v4695 = vpack.c.b16 %v3851, %v3849
        %v4696 = vpack.c.b16 %v3852, %v3850
        %v4697 = vpack.c.b16 %v3855, %v3853
        %v4698 = vpack.c.b16 %v3856, %v3854
        %v4699 = vpack.c.b16 %v3859, %v3857
        %v4700 = vpack.c.b16 %v3860, %v3858
        %v4701 = vpack.c.b16 %v3863, %v3861
        %v4702 = vpack.c.b16 %v3864, %v3862
        %v4703 = vpack.c.b16 %v3867, %v3865
        %v4704 = vpack.c.b16 %v3868, %v3866
        %v4705 = vpack.c.b16 %v3871, %v3869
        %v4706 = vpack.c.b16 %v3872, %v3870
        %v4707 = vpack.c.b16 %v3875, %v3873
        %v4708 = vpack.c.b16 %v3876, %v3874
        %v4709 = vpack.c.b16 %v3879, %v3877
        %v4710 = vpack.c.b16 %v3880, %v3878
        %v4711 = vpack.c.b16 %v3883, %v3881
        %v4712 = vpack.c.b16 %v3884, %v3882
        %v4713 = vpack.c.b16 %v3887, %v3885
        %v4714 = vpack.c.b16 %v3888, %v3886
        %v4715 = vpack.c.b16 %v3891, %v3889
        %v4716 = vpack.c.b16 %v3892, %v3890
        %v4717 = vpack.c.b16 %v3895, %v3893
        %v4718 = vpack.c.b16 %v3896, %v3894
        %v4719 = vpack.c.b16 %v3899, %v3897
        %v4720 = vpack.c.b16 %v3900, %v3898
        %v4721 = vpack.c.b16 %v3903, %v3901
        %v4722 = vpack.c.b16 %v3904, %v3902
        %v4723 = vpack.c.b16 %v3907, %v3905
        %v4724 = vpack.c.b16 %v3908, %v3906
        %v4725 = vpack.c.b16 %v3911, %v3909
        %v4726 = vpack.c.b16 %v3912, %v3910
        %v4727 = vpack.c.b16 %v3915, %v3913
        %v4728 = vpack.c.b16 %v3916, %v3914
        %v4729 = vpack.c.b16 %v3919, %v3917
        %v4730 = vpack.c.b16 %v3920, %v3918
        %v4731 = vpack.c.b16 %v3923, %v3921
        %v4732 = vpack.c.b16 %v3924, %v3922
        %v4733 = vpack.c.b16 %v3927, %v3925
        %v4734 = vpack.c.b16 %v3928, %v3926
        %v4735 = vpack.c.b16 %v3931, %v3929
        %v4736 = vpack.c.b16 %v3932, %v3930
        %v4737 = vpack.c.b16 %v3935, %v3933
        %v4738 = vpack.c.b16 %v3936, %v3934
        %v4739 = vpack.c.b16 %v3939, %v3937
        %v4740 = vpack.c.b16 %v3940, %v3938
        %v4741 = vpack.c.b16 %v3943, %v3941
        %v4742 = vpack.c.b16 %v3944, %v3942
        %v4743 = vpack.c.b16 %v3947, %v3945
        %v4744 = vpack.c.b16 %v3948, %v3946
        %v4745 = vpack.c.b16 %v3951, %v3949
        %v4746 = vpack.c.b16 %v3952, %v3950
        %v4747 = vpack.c.b16 %v3955, %v3953
        %v4748 = vpack.c.b16 %v3956, %v3954
        %v4749 = vpack.c.b16 %v3959, %v3957
        %v4750 = vpack.c.b16 %v3960, %v3958
        %v4751 = vpack.c.b16 %v3963, %v3961
        %v4752 = vpack.c.b16 %v3964, %v3962
        %v4753 = vpack.c.b16 %v3967, %v3965
        %v4754 = vpack.c.b16 %v3968, %v3966
        %v4755 = vpack.c.b16 %v3971, %v3969
        %v4756 = vpack.c.b16 %v3972, %v3970
        %5541 = vmatprep.subr.bf16.mxu0 %v3974
        %5542 = vmatpush1.bf16.msra.mxu0 %v3973
        %5543 = vmatprep.subr.bf16.mxu0 %v3976
        %5544 = vmatpush1.bf16.msra.mxu0 %v3975
        %5545 = vmatprep.subr.bf16.mxu0 %v3978
        %5546 = vmatpush1.bf16.msra.mxu0 %v3977
        %5547 = vmatprep.subr.bf16.mxu0 %v3980
        %5548 = vmatpush1.bf16.msra.mxu0 %v3979
        %5549 = vmatprep.subr.bf16.mxu0 %v3982
        %5550 = vmatpush1.bf16.msra.mxu0 %v3981
        %5551 = vmatprep.subr.bf16.mxu0 %v3984
        %5552 = vmatpush1.bf16.msra.mxu0 %v3983
        %5553 = vmatprep.subr.bf16.mxu0 %v3986
        %5554 = vmatpush1.bf16.msra.mxu0 %v3985
        %5555 = vmatprep.subr.bf16.mxu0 %v3988
        %5556 = vmatpush1.bf16.msra.mxu0 %v3987
        %5557 = vmatprep.subr.bf16.mxu0 %v3990
        %5558 = vmatpush1.bf16.msra.mxu0 %v3989
        %5559 = vmatprep.subr.bf16.mxu0 %v3992
        %5560 = vmatpush1.bf16.msra.mxu0 %v3991
        %5561 = vmatprep.subr.bf16.mxu0 %v3994
        %5562 = vmatpush1.bf16.msra.mxu0 %v3993
        %5563 = vmatprep.subr.bf16.mxu0 %v3996
        %5564 = vmatpush1.bf16.msra.mxu0 %v3995
        %5565 = vmatprep.subr.bf16.mxu0 %v3998
        %5566 = vmatpush1.bf16.msra.mxu0 %v3997
        %5567 = vmatprep.subr.bf16.mxu0 %v4000
        %5568 = vmatpush1.bf16.msra.mxu0 %v3999
        %5569 = vmatprep.subr.bf16.mxu0 %v4002
        %5570 = vmatpush1.bf16.msra.mxu0 %v4001
        %5571 = vmatprep.subr.bf16.mxu0 %v4004
        %5572 = vmatpush1.bf16.msra.mxu0 %v4003
        %5573 = vmatprep.mubr.bf16.mxu0 %v1301
        %5574 = vmatmul.mubr.bf16.gmra.mrb[0].mxu0 %v1287
        %v5575 = vpop.f32.mrb[0].mxu0
        %v5576 = vadd.f32 0.0, %v5575
        %v5577 = vpop.f32.mrb[0].mxu0
        %v5578 = vadd.f32 0.0, %v5577
        %v5579 = vpop.f32.mrb[0].mxu0
        %v5580 = vpop.f32.mrb[0].mxu0
        %5581 = vdwg.mxu0
        %5582 = vmatprep.subr.bf16.mxu0 %v4006
        %5583 = vmatpush1.bf16.msra.mxu0 %v4005
        %5584 = vmatprep.subr.bf16.mxu0 %v4008
        %5585 = vmatpush1.bf16.msra.mxu0 %v4007
        %5586 = vmatprep.subr.bf16.mxu0 %v4010
        %5587 = vmatpush1.bf16.msra.mxu0 %v4009
        %5588 = vmatprep.subr.bf16.mxu0 %v4012
        %5589 = vmatpush1.bf16.msra.mxu0 %v4011
        %5590 = vmatprep.subr.bf16.mxu0 %v4014
        %5591 = vmatpush1.bf16.msra.mxu0 %v4013
        %5592 = vmatprep.subr.bf16.mxu0 %v4016
        %5593 = vmatpush1.bf16.msra.mxu0 %v4015
        %5594 = vmatprep.subr.bf16.mxu0 %v4018
        %5595 = vmatpush1.bf16.msra.mxu0 %v4017
        %5596 = vmatprep.subr.bf16.mxu0 %v4020
        %5597 = vmatpush1.bf16.msra.mxu0 %v4019
        %5598 = vmatprep.subr.bf16.mxu0 %v4022
        %5599 = vmatpush1.bf16.msra.mxu0 %v4021
        %5600 = vmatprep.subr.bf16.mxu0 %v4024
        %5601 = vmatpush1.bf16.msra.mxu0 %v4023
        %5602 = vmatprep.subr.bf16.mxu0 %v4026
        %5603 = vmatpush1.bf16.msra.mxu0 %v4025
        %5604 = vmatprep.subr.bf16.mxu0 %v4028
        %5605 = vmatpush1.bf16.msra.mxu0 %v4027
        %5606 = vmatprep.subr.bf16.mxu0 %v4030
        %5607 = vmatpush1.bf16.msra.mxu0 %v4029
        %5608 = vmatprep.subr.bf16.mxu0 %v4032
        %5609 = vmatpush1.bf16.msra.mxu0 %v4031
        %5610 = vmatprep.subr.bf16.mxu0 %v4034
        %5611 = vmatpush1.bf16.msra.mxu0 %v4033
        %5612 = vmatprep.subr.bf16.mxu0 %v4036
        %5613 = vmatpush1.bf16.msra.mxu0 %v4035
        %5614 = vmatprep.mubr.bf16.mxu0 %v1311
        %5615 = vmatmul.mubr.bf16.gmra.mrb[0].mxu0 %v1309
        %v5616 = vpop.f32.mrb[0].mxu0
        %v5617 = vadd.f32 %v5576, %v5616
        %v5618 = vpop.f32.mrb[0].mxu0
        %v5619 = vadd.f32 %v5578, %v5618
        %v5620 = vpop.f32.mrb[0].mxu0
        %v5621 = vpop.f32.mrb[0].mxu0
        %5622 = vdwg.mxu0
        %5623 = vmatprep.subr.bf16.mxu0 %v4038
        %5624 = vmatpush1.bf16.msra.mxu0 %v4037
        %5625 = vmatprep.subr.bf16.mxu0 %v4040
        %5626 = vmatpush1.bf16.msra.mxu0 %v4039
        %5627 = vmatprep.subr.bf16.mxu0 %v4042
        %5628 = vmatpush1.bf16.msra.mxu0 %v4041
        %5629 = vmatprep.subr.bf16.mxu0 %v4044
        %5630 = vmatpush1.bf16.msra.mxu0 %v4043
        %5631 = vmatprep.subr.bf16.mxu0 %v4046
        %5632 = vmatpush1.bf16.msra.mxu0 %v4045
        %5633 = vmatprep.subr.bf16.mxu0 %v4048
        %5634 = vmatpush1.bf16.msra.mxu0 %v4047
        %5635 = vmatprep.subr.bf16.mxu0 %v4050
        %5636 = vmatpush1.bf16.msra.mxu0 %v4049
        %5637 = vmatprep.subr.bf16.mxu0 %v4052
        %5638 = vmatpush1.bf16.msra.mxu0 %v4051
        %5639 = vmatprep.subr.bf16.mxu0 %v4054
        %5640 = vmatpush1.bf16.msra.mxu0 %v4053
        %5641 = vmatprep.subr.bf16.mxu0 %v4056
        %5642 = vmatpush1.bf16.msra.mxu0 %v4055
        %5643 = vmatprep.subr.bf16.mxu0 %v4058
        %5644 = vmatpush1.bf16.msra.mxu0 %v4057
        %5645 = vmatprep.subr.bf16.mxu0 %v4060
        %5646 = vmatpush1.bf16.msra.mxu0 %v4059
        %5647 = vmatprep.subr.bf16.mxu0 %v4062
        %5648 = vmatpush1.bf16.msra.mxu0 %v4061
        %5649 = vmatprep.subr.bf16.mxu0 %v4064
        %5650 = vmatpush1.bf16.msra.mxu0 %v4063
        %5651 = vmatprep.subr.bf16.mxu0 %v4066
        %5652 = vmatpush1.bf16.msra.mxu0 %v4065
        %5653 = vmatprep.subr.bf16.mxu0 %v4068
        %5654 = vmatpush1.bf16.msra.mxu0 %v4067
        %5655 = vmatprep.mubr.bf16.mxu0 %v1308
        %5656 = vmatmul.mubr.bf16.gmra.mrb[0].mxu0 %v1294
        %v5657 = vpop.f32.mrb[0].mxu0
        %v5658 = vadd.f32 %v5617, %v5657
        %v5659 = vpop.f32.mrb[0].mxu0
        %v5660 = vadd.f32 %v5619, %v5659
        %v5661 = vpop.f32.mrb[0].mxu0
        %v5662 = vpop.f32.mrb[0].mxu0
        %5663 = vdwg.mxu0
        %5664 = vmatprep.subr.bf16.mxu0 %v4070
        %5665 = vmatpush1.bf16.msra.mxu0 %v4069
        %5666 = vmatprep.subr.bf16.mxu0 %v4072
        %5667 = vmatpush1.bf16.msra.mxu0 %v4071
        %5668 = vmatprep.subr.bf16.mxu0 %v4074
        %5669 = vmatpush1.bf16.msra.mxu0 %v4073
        %5670 = vmatprep.subr.bf16.mxu0 %v4076
        %5671 = vmatpush1.bf16.msra.mxu0 %v4075
        %5672 = vmatprep.subr.bf16.mxu0 %v4078
        %5673 = vmatpush1.bf16.msra.mxu0 %v4077
        %5674 = vmatprep.subr.bf16.mxu0 %v4080
        %5675 = vmatpush1.bf16.msra.mxu0 %v4079
        %5676 = vmatprep.subr.bf16.mxu0 %v4082
        %5677 = vmatpush1.bf16.msra.mxu0 %v4081
        %5678 = vmatprep.subr.bf16.mxu0 %v4084
        %5679 = vmatpush1.bf16.msra.mxu0 %v4083
        %5680 = vmatprep.subr.bf16.mxu0 %v4086
        %5681 = vmatpush1.bf16.msra.mxu0 %v4085
        %5682 = vmatprep.subr.bf16.mxu0 %v4088
        %5683 = vmatpush1.bf16.msra.mxu0 %v4087
        %5684 = vmatprep.subr.bf16.mxu0 %v4090
        %5685 = vmatpush1.bf16.msra.mxu0 %v4089
        %5686 = vmatprep.subr.bf16.mxu0 %v4092
        %5687 = vmatpush1.bf16.msra.mxu0 %v4091
        %5688 = vmatprep.subr.bf16.mxu0 %v4094
        %5689 = vmatpush1.bf16.msra.mxu0 %v4093
        %5690 = vmatprep.subr.bf16.mxu0 %v4096
        %5691 = vmatpush1.bf16.msra.mxu0 %v4095
        %5692 = vmatprep.subr.bf16.mxu0 %v4098
        %5693 = vmatpush1.bf16.msra.mxu0 %v4097
        %5694 = vmatprep.subr.bf16.mxu0 %v4100
        %5695 = vmatpush1.bf16.msra.mxu0 %v4099
        %5696 = vmatprep.mubr.bf16.mxu0 %v1312
        %5697 = vmatmul.mubr.bf16.gmra.mrb[0].mxu0 %v1310
        %v5698 = vpop.f32.mrb[0].mxu0
        %v5699 = vadd.f32 %v5658, %v5698
        %v5700 = vpop.f32.mrb[0].mxu0
        %v5701 = vadd.f32 %v5660, %v5700
        %v5702 = vpop.f32.mrb[0].mxu0
        %v5703 = vpop.f32.mrb[0].mxu0
        %5704 = vdwg.mxu0
        %5705 = vmatprep.subr.bf16.mxu0 %v4102
        %5706 = vmatpush1.bf16.msra.mxu0 %v4101
        %5707 = vmatprep.subr.bf16.mxu0 %v4104
        %5708 = vmatpush1.bf16.msra.mxu0 %v4103
        %5709 = vmatprep.subr.bf16.mxu0 %v4106
        %5710 = vmatpush1.bf16.msra.mxu0 %v4105
        %5711 = vmatprep.subr.bf16.mxu0 %v4108
        %5712 = vmatpush1.bf16.msra.mxu0 %v4107
        %5713 = vmatprep.subr.bf16.mxu0 %v4110
        %5714 = vmatpush1.bf16.msra.mxu0 %v4109
        %5715 = vmatprep.subr.bf16.mxu0 %v4112
        %5716 = vmatpush1.bf16.msra.mxu0 %v4111
        %5717 = vmatprep.subr.bf16.mxu0 %v4114
        %5718 = vmatpush1.bf16.msra.mxu0 %v4113
        %5719 = vmatprep.subr.bf16.mxu0 %v4116
        %5720 = vmatpush1.bf16.msra.mxu0 %v4115
        %5721 = vmatprep.subr.bf16.mxu0 %v4118
        %5722 = vmatpush1.bf16.msra.mxu0 %v4117
        %5723 = vmatprep.subr.bf16.mxu0 %v4120
        %5724 = vmatpush1.bf16.msra.mxu0 %v4119
        %5725 = vmatprep.subr.bf16.mxu0 %v4122
        %5726 = vmatpush1.bf16.msra.mxu0 %v4121
        %5727 = vmatprep.subr.bf16.mxu0 %v4124
        %5728 = vmatpush1.bf16.msra.mxu0 %v4123
        %5729 = vmatprep.subr.bf16.mxu0 %v4126
        %5730 = vmatpush1.bf16.msra.mxu0 %v4125
        %5731 = vmatprep.subr.bf16.mxu0 %v4128
        %5732 = vmatpush1.bf16.msra.mxu0 %v4127
        %5733 = vmatprep.subr.bf16.mxu0 %v4130
        %5734 = vmatpush1.bf16.msra.mxu0 %v4129
        %5735 = vmatprep.subr.bf16.mxu0 %v4132
        %5736 = vmatpush1.bf16.msra.mxu0 %v4131
        %5737 = vmatprep.mubr.bf16.mxu0 %v1350
        %5738 = vmatmul.mubr.bf16.gmra.mrb[0].mxu0 %v1336
        %v5739 = vpop.f32.mrb[0].mxu0
        %v5740 = vadd.f32 %v5699, %v5739
        %v5741 = vpop.f32.mrb[0].mxu0
        %v5742 = vadd.f32 %v5701, %v5741
        %v5743 = vpop.f32.mrb[0].mxu0
        %v5744 = vpop.f32.mrb[0].mxu0
        %5745 = vdwg.mxu0
        %5746 = vmatprep.subr.bf16.mxu0 %v4134
        %5747 = vmatpush1.bf16.msra.mxu0 %v4133
        %5748 = vmatprep.subr.bf16.mxu0 %v4136
        %5749 = vmatpush1.bf16.msra.mxu0 %v4135
        %5750 = vmatprep.subr.bf16.mxu0 %v4138
        %5751 = vmatpush1.bf16.msra.mxu0 %v4137
        %5752 = vmatprep.subr.bf16.mxu0 %v4140
        %5753 = vmatpush1.bf16.msra.mxu0 %v4139
        %5754 = vmatprep.subr.bf16.mxu0 %v4142
        %5755 = vmatpush1.bf16.msra.mxu0 %v4141
        %5756 = vmatprep.subr.bf16.mxu0 %v4144
        %5757 = vmatpush1.bf16.msra.mxu0 %v4143
        %5758 = vmatprep.subr.bf16.mxu0 %v4146
        %5759 = vmatpush1.bf16.msra.mxu0 %v4145
        %5760 = vmatprep.subr.bf16.mxu0 %v4148
        %5761 = vmatpush1.bf16.msra.mxu0 %v4147
        %5762 = vmatprep.subr.bf16.mxu0 %v4150
        %5763 = vmatpush1.bf16.msra.mxu0 %v4149
        %5764 = vmatprep.subr.bf16.mxu0 %v4152
        %5765 = vmatpush1.bf16.msra.mxu0 %v4151
        %5766 = vmatprep.subr.bf16.mxu0 %v4154
        %5767 = vmatpush1.bf16.msra.mxu0 %v4153
        %5768 = vmatprep.subr.bf16.mxu0 %v4156
        %5769 = vmatpush1.bf16.msra.mxu0 %v4155
        %5770 = vmatprep.subr.bf16.mxu0 %v4158
        %5771 = vmatpush1.bf16.msra.mxu0 %v4157
        %5772 = vmatprep.subr.bf16.mxu0 %v4160
        %5773 = vmatpush1.bf16.msra.mxu0 %v4159
        %5774 = vmatprep.subr.bf16.mxu0 %v4162
        %5775 = vmatpush1.bf16.msra.mxu0 %v4161
        %5776 = vmatprep.subr.bf16.mxu0 %v4164
        %5777 = vmatpush1.bf16.msra.mxu0 %v4163
        %5778 = vmatprep.mubr.bf16.mxu0 %v1360
        %5779 = vmatmul.mubr.bf16.gmra.mrb[0].mxu0 %v1358
        %v5780 = vpop.f32.mrb[0].mxu0
        %v5781 = vadd.f32 %v5740, %v5780
        %v5782 = vpop.f32.mrb[0].mxu0
        %v5783 = vadd.f32 %v5742, %v5782
        %v5784 = vpop.f32.mrb[0].mxu0
        %v5785 = vpop.f32.mrb[0].mxu0
        %5786 = vdwg.mxu0
        %5787 = vmatprep.subr.bf16.mxu0 %v4166
        %5788 = vmatpush1.bf16.msra.mxu0 %v4165
        %5789 = vmatprep.subr.bf16.mxu0 %v4168
        %5790 = vmatpush1.bf16.msra.mxu0 %v4167
        %5791 = vmatprep.subr.bf16.mxu0 %v4170
        %5792 = vmatpush1.bf16.msra.mxu0 %v4169
        %5793 = vmatprep.subr.bf16.mxu0 %v4172
        %5794 = vmatpush1.bf16.msra.mxu0 %v4171
        %5795 = vmatprep.subr.bf16.mxu0 %v4174
        %5796 = vmatpush1.bf16.msra.mxu0 %v4173
        %5797 = vmatprep.subr.bf16.mxu0 %v4176
        %5798 = vmatpush1.bf16.msra.mxu0 %v4175
        %5799 = vmatprep.subr.bf16.mxu0 %v4178
        %5800 = vmatpush1.bf16.msra.mxu0 %v4177
        %5801 = vmatprep.subr.bf16.mxu0 %v4180
        %5802 = vmatpush1.bf16.msra.mxu0 %v4179
        %5803 = vmatprep.subr.bf16.mxu0 %v4182
        %5804 = vmatpush1.bf16.msra.mxu0 %v4181
        %5805 = vmatprep.subr.bf16.mxu0 %v4184
        %5806 = vmatpush1.bf16.msra.mxu0 %v4183
        %5807 = vmatprep.subr.bf16.mxu0 %v4186
        %5808 = vmatpush1.bf16.msra.mxu0 %v4185
        %5809 = vmatprep.subr.bf16.mxu0 %v4188
        %5810 = vmatpush1.bf16.msra.mxu0 %v4187
        %5811 = vmatprep.subr.bf16.mxu0 %v4190
        %5812 = vmatpush1.bf16.msra.mxu0 %v4189
        %5813 = vmatprep.subr.bf16.mxu0 %v4192
        %5814 = vmatpush1.bf16.msra.mxu0 %v4191
        %5815 = vmatprep.subr.bf16.mxu0 %v4194
        %5816 = vmatpush1.bf16.msra.mxu0 %v4193
        %5817 = vmatprep.subr.bf16.mxu0 %v4196
        %5818 = vmatpush1.bf16.msra.mxu0 %v4195
        %5819 = vmatprep.mubr.bf16.mxu0 %v1357
        %5820 = vmatmul.mubr.bf16.gmra.mrb[0].mxu0 %v1343
        %v5821 = vpop.f32.mrb[0].mxu0
        %v5822 = vadd.f32 %v5781, %v5821
        %v5823 = vpop.f32.mrb[0].mxu0
        %v5824 = vadd.f32 %v5783, %v5823
        %v5825 = vpop.f32.mrb[0].mxu0
        %v5826 = vpop.f32.mrb[0].mxu0
        %5827 = vdwg.mxu0
        %5828 = vmatprep.subr.bf16.mxu0 %v4198
        %5829 = vmatpush1.bf16.msra.mxu0 %v4197
        %5830 = vmatprep.subr.bf16.mxu0 %v4200
        %5831 = vmatpush1.bf16.msra.mxu0 %v4199
        %5832 = vmatprep.subr.bf16.mxu0 %v4202
        %5833 = vmatpush1.bf16.msra.mxu0 %v4201
        %5834 = vmatprep.subr.bf16.mxu0 %v4204
        %5835 = vmatpush1.bf16.msra.mxu0 %v4203
        %5836 = vmatprep.subr.bf16.mxu0 %v4206
        %5837 = vmatpush1.bf16.msra.mxu0 %v4205
        %5838 = vmatprep.subr.bf16.mxu0 %v4208
        %5839 = vmatpush1.bf16.msra.mxu0 %v4207
        %5840 = vmatprep.subr.bf16.mxu0 %v4210
        %5841 = vmatpush1.bf16.msra.mxu0 %v4209
        %5842 = vmatprep.subr.bf16.mxu0 %v4212
        %5843 = vmatpush1.bf16.msra.mxu0 %v4211
        %5844 = vmatprep.subr.bf16.mxu0 %v4214
        %5845 = vmatpush1.bf16.msra.mxu0 %v4213
        %5846 = vmatprep.subr.bf16.mxu0 %v4216
        %5847 = vmatpush1.bf16.msra.mxu0 %v4215
        %5848 = vmatprep.subr.bf16.mxu0 %v4218
        %5849 = vmatpush1.bf16.msra.mxu0 %v4217
        %5850 = vmatprep.subr.bf16.mxu0 %v4220
        %5851 = vmatpush1.bf16.msra.mxu0 %v4219
        %5852 = vmatprep.subr.bf16.mxu0 %v4222
        %5853 = vmatpush1.bf16.msra.mxu0 %v4221
        %5854 = vmatprep.subr.bf16.mxu0 %v4224
        %5855 = vmatpush1.bf16.msra.mxu0 %v4223
        %5856 = vmatprep.subr.bf16.mxu0 %v4226
        %5857 = vmatpush1.bf16.msra.mxu0 %v4225
        %5858 = vmatprep.subr.bf16.mxu0 %v4228
        %5859 = vmatpush1.bf16.msra.mxu0 %v4227
        %5860 = vmatprep.mubr.bf16.mxu0 %v1361
        %5861 = vmatmul.mubr.bf16.gmra.mrb[0].mxu0 %v1359
        %v5862 = vpop.f32.mrb[0].mxu0
        %v5863 = vadd.f32 %v5822, %v5862
        %v5864 = vpop.f32.mrb[0].mxu0
        %v5865 = vadd.f32 %v5824, %v5864
        %v5866 = vpop.f32.mrb[0].mxu0
        %v5867 = vpop.f32.mrb[0].mxu0
        %5868 = vdwg.mxu0
        %5869 = vmatprep.subr.bf16.mxu0 %v4230
        %5870 = vmatpush1.bf16.msra.mxu0 %v4229
        %5871 = vmatprep.subr.bf16.mxu0 %v4232
        %5872 = vmatpush1.bf16.msra.mxu0 %v4231
        %5873 = vmatprep.subr.bf16.mxu0 %v4234
        %5874 = vmatpush1.bf16.msra.mxu0 %v4233
        %5875 = vmatprep.subr.bf16.mxu0 %v4236
        %5876 = vmatpush1.bf16.msra.mxu0 %v4235
        %5877 = vmatprep.subr.bf16.mxu0 %v4238
        %5878 = vmatpush1.bf16.msra.mxu0 %v4237
        %5879 = vmatprep.subr.bf16.mxu0 %v4240
        %5880 = vmatpush1.bf16.msra.mxu0 %v4239
        %5881 = vmatprep.subr.bf16.mxu0 %v4242
        %5882 = vmatpush1.bf16.msra.mxu0 %v4241
        %5883 = vmatprep.subr.bf16.mxu0 %v4244
        %5884 = vmatpush1.bf16.msra.mxu0 %v4243
        %5885 = vmatprep.subr.bf16.mxu0 %v4246
        %5886 = vmatpush1.bf16.msra.mxu0 %v4245
        %5887 = vmatprep.subr.bf16.mxu0 %v4248
        %5888 = vmatpush1.bf16.msra.mxu0 %v4247
        %5889 = vmatprep.subr.bf16.mxu0 %v4250
        %5890 = vmatpush1.bf16.msra.mxu0 %v4249
        %5891 = vmatprep.subr.bf16.mxu0 %v4252
        %5892 = vmatpush1.bf16.msra.mxu0 %v4251
        %5893 = vmatprep.subr.bf16.mxu0 %v4254
        %5894 = vmatpush1.bf16.msra.mxu0 %v4253
        %5895 = vmatprep.subr.bf16.mxu0 %v4256
        %5896 = vmatpush1.bf16.msra.mxu0 %v4255
        %5897 = vmatprep.subr.bf16.mxu0 %v4258
        %5898 = vmatpush1.bf16.msra.mxu0 %v4257
        %5899 = vmatprep.subr.bf16.mxu0 %v4260
        %5900 = vmatpush1.bf16.msra.mxu0 %v4259
        %5901 = vmatprep.mubr.bf16.mxu0 %v1399
        %5902 = vmatmul.mubr.bf16.gmra.mrb[0].mxu0 %v1385
        %v5903 = vpop.f32.mrb[0].mxu0
        %v5904 = vadd.f32 %v5863, %v5903
        %v5905 = vpop.f32.mrb[0].mxu0
        %v5906 = vadd.f32 %v5865, %v5905
        %v5907 = vpop.f32.mrb[0].mxu0
        %v5908 = vpop.f32.mrb[0].mxu0
        %5909 = vdwg.mxu0
        %5910 = vmatprep.subr.bf16.mxu0 %v4262
        %5911 = vmatpush1.bf16.msra.mxu0 %v4261
        %5912 = vmatprep.subr.bf16.mxu0 %v4264
        %5913 = vmatpush1.bf16.msra.mxu0 %v4263
        %5914 = vmatprep.subr.bf16.mxu0 %v4266
        %5915 = vmatpush1.bf16.msra.mxu0 %v4265
        %5916 = vmatprep.subr.bf16.mxu0 %v4268
        %5917 = vmatpush1.bf16.msra.mxu0 %v4267
        %5918 = vmatprep.subr.bf16.mxu0 %v4270
        %5919 = vmatpush1.bf16.msra.mxu0 %v4269
        %5920 = vmatprep.subr.bf16.mxu0 %v4272
        %5921 = vmatpush1.bf16.msra.mxu0 %v4271
        %5922 = vmatprep.subr.bf16.mxu0 %v4274
        %5923 = vmatpush1.bf16.msra.mxu0 %v4273
        %5924 = vmatprep.subr.bf16.mxu0 %v4276
        %5925 = vmatpush1.bf16.msra.mxu0 %v4275
        %5926 = vmatprep.subr.bf16.mxu0 %v4278
        %5927 = vmatpush1.bf16.msra.mxu0 %v4277
        %5928 = vmatprep.subr.bf16.mxu0 %v4280
        %5929 = vmatpush1.bf16.msra.mxu0 %v4279
        %5930 = vmatprep.subr.bf16.mxu0 %v4282
        %5931 = vmatpush1.bf16.msra.mxu0 %v4281
        %5932 = vmatprep.subr.bf16.mxu0 %v4284
        %5933 = vmatpush1.bf16.msra.mxu0 %v4283
        %5934 = vmatprep.subr.bf16.mxu0 %v4286
        %5935 = vmatpush1.bf16.msra.mxu0 %v4285
        %5936 = vmatprep.subr.bf16.mxu0 %v4288
        %5937 = vmatpush1.bf16.msra.mxu0 %v4287
        %5938 = vmatprep.subr.bf16.mxu0 %v4290
        %5939 = vmatpush1.bf16.msra.mxu0 %v4289
        %5940 = vmatprep.subr.bf16.mxu0 %v4292
        %5941 = vmatpush1.bf16.msra.mxu0 %v4291
        %5942 = vmatprep.mubr.bf16.mxu0 %v1409
        %5943 = vmatmul.mubr.bf16.gmra.mrb[0].mxu0 %v1407
        %v5944 = vpop.f32.mrb[0].mxu0
        %v5945 = vadd.f32 %v5904, %v5944
        %v5946 = vpop.f32.mrb[0].mxu0
        %v5947 = vadd.f32 %v5906, %v5946
        %v5948 = vpop.f32.mrb[0].mxu0
        %v5949 = vpop.f32.mrb[0].mxu0
        %5950 = vdwg.mxu0
        %5951 = vmatprep.subr.bf16.mxu0 %v4294
        %5952 = vmatpush1.bf16.msra.mxu0 %v4293
        %5953 = vmatprep.subr.bf16.mxu0 %v4296
        %5954 = vmatpush1.bf16.msra.mxu0 %v4295
        %5955 = vmatprep.subr.bf16.mxu0 %v4298
        %5956 = vmatpush1.bf16.msra.mxu0 %v4297
        %5957 = vmatprep.subr.bf16.mxu0 %v4300
        %5958 = vmatpush1.bf16.msra.mxu0 %v4299
        %5959 = vmatprep.subr.bf16.mxu0 %v4302
        %5960 = vmatpush1.bf16.msra.mxu0 %v4301
        %5961 = vmatprep.subr.bf16.mxu0 %v4304
        %5962 = vmatpush1.bf16.msra.mxu0 %v4303
        %5963 = vmatprep.subr.bf16.mxu0 %v4306
        %5964 = vmatpush1.bf16.msra.mxu0 %v4305
        %5965 = vmatprep.subr.bf16.mxu0 %v4308
        %5966 = vmatpush1.bf16.msra.mxu0 %v4307
        %5967 = vmatprep.subr.bf16.mxu0 %v4310
        %5968 = vmatpush1.bf16.msra.mxu0 %v4309
        %5969 = vmatprep.subr.bf16.mxu0 %v4312
        %5970 = vmatpush1.bf16.msra.mxu0 %v4311
        %5971 = vmatprep.subr.bf16.mxu0 %v4314
        %5972 = vmatpush1.bf16.msra.mxu0 %v4313
        %5973 = vmatprep.subr.bf16.mxu0 %v4316
        %5974 = vmatpush1.bf16.msra.mxu0 %v4315
        %5975 = vmatprep.subr.bf16.mxu0 %v4318
        %5976 = vmatpush1.bf16.msra.mxu0 %v4317
        %5977 = vmatprep.subr.bf16.mxu0 %v4320
        %5978 = vmatpush1.bf16.msra.mxu0 %v4319
        %5979 = vmatprep.subr.bf16.mxu0 %v4322
        %5980 = vmatpush1.bf16.msra.mxu0 %v4321
        %5981 = vmatprep.subr.bf16.mxu0 %v4324
        %5982 = vmatpush1.bf16.msra.mxu0 %v4323
        %5983 = vmatprep.mubr.bf16.mxu0 %v1406
        %5984 = vmatmul.mubr.bf16.gmra.mrb[0].mxu0 %v1392
        %v5985 = vpop.f32.mrb[0].mxu0
        %v5986 = vadd.f32 %v5945, %v5985
        %v5987 = vpop.f32.mrb[0].mxu0
        %v5988 = vadd.f32 %v5947, %v5987
        %v5989 = vpop.f32.mrb[0].mxu0
        %v5990 = vpop.f32.mrb[0].mxu0
        %5991 = vdwg.mxu0
        %5992 = vmatprep.subr.bf16.mxu0 %v4326
        %5993 = vmatpush1.bf16.msra.mxu0 %v4325
        %5994 = vmatprep.subr.bf16.mxu0 %v4328
        %5995 = vmatpush1.bf16.msra.mxu0 %v4327
        %5996 = vmatprep.subr.bf16.mxu0 %v4330
        %5997 = vmatpush1.bf16.msra.mxu0 %v4329
        %5998 = vmatprep.subr.bf16.mxu0 %v4332
        %5999 = vmatpush1.bf16.msra.mxu0 %v4331
        %6000 = vmatprep.subr.bf16.mxu0 %v4334
        %6001 = vmatpush1.bf16.msra.mxu0 %v4333
        %6002 = vmatprep.subr.bf16.mxu0 %v4336
        %6003 = vmatpush1.bf16.msra.mxu0 %v4335
        %6004 = vmatprep.subr.bf16.mxu0 %v4338
        %6005 = vmatpush1.bf16.msra.mxu0 %v4337
        %6006 = vmatprep.subr.bf16.mxu0 %v4340
        %6007 = vmatpush1.bf16.msra.mxu0 %v4339
        %6008 = vmatprep.subr.bf16.mxu0 %v4342
        %6009 = vmatpush1.bf16.msra.mxu0 %v4341
        %6010 = vmatprep.subr.bf16.mxu0 %v4344
        %6011 = vmatpush1.bf16.msra.mxu0 %v4343
        %6012 = vmatprep.subr.bf16.mxu0 %v4346
        %6013 = vmatpush1.bf16.msra.mxu0 %v4345
        %6014 = vmatprep.subr.bf16.mxu0 %v4348
        %6015 = vmatpush1.bf16.msra.mxu0 %v4347
        %6016 = vmatprep.subr.bf16.mxu0 %v4350
        %6017 = vmatpush1.bf16.msra.mxu0 %v4349
        %6018 = vmatprep.subr.bf16.mxu0 %v4352
        %6019 = vmatpush1.bf16.msra.mxu0 %v4351
        %6020 = vmatprep.subr.bf16.mxu0 %v4354
        %6021 = vmatpush1.bf16.msra.mxu0 %v4353
        %6022 = vmatprep.subr.bf16.mxu0 %v4356
        %6023 = vmatpush1.bf16.msra.mxu0 %v4355
        %6024 = vmatprep.mubr.bf16.mxu0 %v1410
        %6025 = vmatmul.mubr.bf16.gmra.mrb[0].mxu0 %v1408
        %v6026 = vpop.f32.mrb[0].mxu0
        %v6027 = vadd.f32 %v5986, %v6026
        %v6028 = vpop.f32.mrb[0].mxu0
        %v6029 = vadd.f32 %v5988, %v6028
        %v6030 = vpop.f32.mrb[0].mxu0
        %v6031 = vpop.f32.mrb[0].mxu0
        %6032 = vdwg.mxu0
        %6033 = vmatprep.subr.bf16.mxu0 %v4358
        %6034 = vmatpush1.bf16.msra.mxu0 %v4357
        %6035 = vmatprep.subr.bf16.mxu0 %v4360
        %6036 = vmatpush1.bf16.msra.mxu0 %v4359
        %6037 = vmatprep.subr.bf16.mxu0 %v4362
        %6038 = vmatpush1.bf16.msra.mxu0 %v4361
        %6039 = vmatprep.subr.bf16.mxu0 %v4364
        %6040 = vmatpush1.bf16.msra.mxu0 %v4363
        %6041 = vmatprep.subr.bf16.mxu0 %v4366
        %6042 = vmatpush1.bf16.msra.mxu0 %v4365
        %6043 = vmatprep.subr.bf16.mxu0 %v4368
        %6044 = vmatpush1.bf16.msra.mxu0 %v4367
        %6045 = vmatprep.subr.bf16.mxu0 %v4370
        %6046 = vmatpush1.bf16.msra.mxu0 %v4369
        %6047 = vmatprep.subr.bf16.mxu0 %v4372
        %6048 = vmatpush1.bf16.msra.mxu0 %v4371
        %6049 = vmatprep.subr.bf16.mxu0 %v4374
        %6050 = vmatpush1.bf16.msra.mxu0 %v4373
        %6051 = vmatprep.subr.bf16.mxu0 %v4376
        %6052 = vmatpush1.bf16.msra.mxu0 %v4375
        %6053 = vmatprep.subr.bf16.mxu0 %v4378
        %6054 = vmatpush1.bf16.msra.mxu0 %v4377
        %6055 = vmatprep.subr.bf16.mxu0 %v4380
        %6056 = vmatpush1.bf16.msra.mxu0 %v4379
        %6057 = vmatprep.subr.bf16.mxu0 %v4382
        %6058 = vmatpush1.bf16.msra.mxu0 %v4381
        %6059 = vmatprep.subr.bf16.mxu0 %v4384
        %6060 = vmatpush1.bf16.msra.mxu0 %v4383
        %6061 = vmatprep.subr.bf16.mxu0 %v4386
        %6062 = vmatpush1.bf16.msra.mxu0 %v4385
        %6063 = vmatprep.subr.bf16.mxu0 %v4388
        %6064 = vmatpush1.bf16.msra.mxu0 %v4387
        %6065 = vmatprep.mubr.bf16.mxu0 %v1448
        %6066 = vmatmul.mubr.bf16.gmra.mrb[0].mxu0 %v1434
        %v6067 = vpop.f32.mrb[0].mxu0
        %v6068 = vadd.f32 %v6027, %v6067
        %v6069 = vpop.f32.mrb[0].mxu0
        %v6070 = vadd.f32 %v6029, %v6069
        %v6071 = vpop.f32.mrb[0].mxu0
        %v6072 = vpop.f32.mrb[0].mxu0
        %6073 = vdwg.mxu0
        %6074 = vmatprep.subr.bf16.mxu0 %v4390
        %6075 = vmatpush1.bf16.msra.mxu0 %v4389
        %6076 = vmatprep.subr.bf16.mxu0 %v4392
        %6077 = vmatpush1.bf16.msra.mxu0 %v4391
        %6078 = vmatprep.subr.bf16.mxu0 %v4394
        %6079 = vmatpush1.bf16.msra.mxu0 %v4393
        %6080 = vmatprep.subr.bf16.mxu0 %v4396
        %6081 = vmatpush1.bf16.msra.mxu0 %v4395
        %6082 = vmatprep.subr.bf16.mxu0 %v4398
        %6083 = vmatpush1.bf16.msra.mxu0 %v4397
        %6084 = vmatprep.subr.bf16.mxu0 %v4400
        %6085 = vmatpush1.bf16.msra.mxu0 %v4399
        %6086 = vmatprep.subr.bf16.mxu0 %v4402
        %6087 = vmatpush1.bf16.msra.mxu0 %v4401
        %6088 = vmatprep.subr.bf16.mxu0 %v4404
        %6089 = vmatpush1.bf16.msra.mxu0 %v4403
        %6090 = vmatprep.subr.bf16.mxu0 %v4406
        %6091 = vmatpush1.bf16.msra.mxu0 %v4405
        %6092 = vmatprep.subr.bf16.mxu0 %v4408
        %6093 = vmatpush1.bf16.msra.mxu0 %v4407
        %6094 = vmatprep.subr.bf16.mxu0 %v4410
        %6095 = vmatpush1.bf16.msra.mxu0 %v4409
        %6096 = vmatprep.subr.bf16.mxu0 %v4412
        %6097 = vmatpush1.bf16.msra.mxu0 %v4411
        %6098 = vmatprep.subr.bf16.mxu0 %v4414
        %6099 = vmatpush1.bf16.msra.mxu0 %v4413
        %6100 = vmatprep.subr.bf16.mxu0 %v4416
        %6101 = vmatpush1.bf16.msra.mxu0 %v4415
        %6102 = vmatprep.subr.bf16.mxu0 %v4418
        %6103 = vmatpush1.bf16.msra.mxu0 %v4417
        %6104 = vmatprep.subr.bf16.mxu0 %v4420
        %6105 = vmatpush1.bf16.msra.mxu0 %v4419
        %6106 = vmatprep.mubr.bf16.mxu0 %v1458
        %6107 = vmatmul.mubr.bf16.gmra.mrb[0].mxu0 %v1456
        %v6108 = vpop.f32.mrb[0].mxu0
        %v6109 = vadd.f32 %v6068, %v6108
        %v6110 = vpop.f32.mrb[0].mxu0
        %v6111 = vadd.f32 %v6070, %v6110
        %v6112 = vpop.f32.mrb[0].mxu0
        %v6113 = vpop.f32.mrb[0].mxu0
        %6114 = vdwg.mxu0
        %6115 = vmatprep.subr.bf16.mxu0 %v4422
        %6116 = vmatpush1.bf16.msra.mxu0 %v4421
        %6117 = vmatprep.subr.bf16.mxu0 %v4424
        %6118 = vmatpush1.bf16.msra.mxu0 %v4423
        %6119 = vmatprep.subr.bf16.mxu0 %v4426
        %6120 = vmatpush1.bf16.msra.mxu0 %v4425
        %6121 = vmatprep.subr.bf16.mxu0 %v4428
        %6122 = vmatpush1.bf16.msra.mxu0 %v4427
        %6123 = vmatprep.subr.bf16.mxu0 %v4430
        %6124 = vmatpush1.bf16.msra.mxu0 %v4429
        %6125 = vmatprep.subr.bf16.mxu0 %v4432
        %6126 = vmatpush1.bf16.msra.mxu0 %v4431
        %6127 = vmatprep.subr.bf16.mxu0 %v4434
        %6128 = vmatpush1.bf16.msra.mxu0 %v4433
        %6129 = vmatprep.subr.bf16.mxu0 %v4436
        %6130 = vmatpush1.bf16.msra.mxu0 %v4435
        %6131 = vmatprep.subr.bf16.mxu0 %v4438
        %6132 = vmatpush1.bf16.msra.mxu0 %v4437
        %6133 = vmatprep.subr.bf16.mxu0 %v4440
        %6134 = vmatpush1.bf16.msra.mxu0 %v4439
        %6135 = vmatprep.subr.bf16.mxu0 %v4442
        %6136 = vmatpush1.bf16.msra.mxu0 %v4441
        %6137 = vmatprep.subr.bf16.mxu0 %v4444
        %6138 = vmatpush1.bf16.msra.mxu0 %v4443
        %6139 = vmatprep.subr.bf16.mxu0 %v4446
        %6140 = vmatpush1.bf16.msra.mxu0 %v4445
        %6141 = vmatprep.subr.bf16.mxu0 %v4448
        %6142 = vmatpush1.bf16.msra.mxu0 %v4447
        %6143 = vmatprep.subr.bf16.mxu0 %v4450
        %6144 = vmatpush1.bf16.msra.mxu0 %v4449
        %6145 = vmatprep.subr.bf16.mxu0 %v4452
        %6146 = vmatpush1.bf16.msra.mxu0 %v4451
        %6147 = vmatprep.mubr.bf16.mxu0 %v1455
        %6148 = vmatmul.mubr.bf16.gmra.mrb[0].mxu0 %v1441
        %v6149 = vpop.f32.mrb[0].mxu0
        %v6150 = vadd.f32 %v6109, %v6149
        %v6151 = vpop.f32.mrb[0].mxu0
        %v6152 = vadd.f32 %v6111, %v6151
        %v6153 = vpop.f32.mrb[0].mxu0
        %v6154 = vpop.f32.mrb[0].mxu0
        %6155 = vdwg.mxu0
        %6156 = vmatprep.subr.bf16.mxu0 %v4454
        %6157 = vmatpush1.bf16.msra.mxu0 %v4453
        %6158 = vmatprep.subr.bf16.mxu0 %v4456
        %6159 = vmatpush1.bf16.msra.mxu0 %v4455
        %6160 = vmatprep.subr.bf16.mxu0 %v4458
        %6161 = vmatpush1.bf16.msra.mxu0 %v4457
        %6162 = vmatprep.subr.bf16.mxu0 %v4460
        %6163 = vmatpush1.bf16.msra.mxu0 %v4459
        %6164 = vmatprep.subr.bf16.mxu0 %v4462
        %6165 = vmatpush1.bf16.msra.mxu0 %v4461
        %6166 = vmatprep.subr.bf16.mxu0 %v4464
        %6167 = vmatpush1.bf16.msra.mxu0 %v4463
        %6168 = vmatprep.subr.bf16.mxu0 %v4466
        %6169 = vmatpush1.bf16.msra.mxu0 %v4465
        %6170 = vmatprep.subr.bf16.mxu0 %v4468
        %6171 = vmatpush1.bf16.msra.mxu0 %v4467
        %6172 = vmatprep.subr.bf16.mxu0 %v4470
        %6173 = vmatpush1.bf16.msra.mxu0 %v4469
        %6174 = vmatprep.subr.bf16.mxu0 %v4472
        %6175 = vmatpush1.bf16.msra.mxu0 %v4471
        %6176 = vmatprep.subr.bf16.mxu0 %v4474
        %6177 = vmatpush1.bf16.msra.mxu0 %v4473
        %6178 = vmatprep.subr.bf16.mxu0 %v4476
        %6179 = vmatpush1.bf16.msra.mxu0 %v4475
        %6180 = vmatprep.subr.bf16.mxu0 %v4478
        %6181 = vmatpush1.bf16.msra.mxu0 %v4477
        %6182 = vmatprep.subr.bf16.mxu0 %v4480
        %6183 = vmatpush1.bf16.msra.mxu0 %v4479
        %6184 = vmatprep.subr.bf16.mxu0 %v4482
        %6185 = vmatpush1.bf16.msra.mxu0 %v4481
        %6186 = vmatprep.subr.bf16.mxu0 %v4484
        %6187 = vmatpush1.bf16.msra.mxu0 %v4483
        %6188 = vmatprep.mubr.bf16.mxu0 %v1459
        %6189 = vmatmul.mubr.bf16.gmra.mrb[0].mxu0 %v1457
        %v6190 = vpop.f32.mrb[0].mxu0
        %v6191 = vadd.f32 %v6150, %v6190
        %v6192 = vpop.f32.mrb[0].mxu0
        %v6193 = vadd.f32 %v6152, %v6192
        %v6194 = vpop.f32.mrb[0].mxu0
        %v6195 = vpop.f32.mrb[0].mxu0
        %6196 = vdwg.mxu0
        %6197 = vmatprep.subr.bf16.mxu0 %v4486
        %6198 = vmatpush1.bf16.msra.mxu0 %v4485
        %6199 = vmatprep.subr.bf16.mxu0 %v4488
        %6200 = vmatpush1.bf16.msra.mxu0 %v4487
        %6201 = vmatprep.subr.bf16.mxu0 %v4490
        %6202 = vmatpush1.bf16.msra.mxu0 %v4489
        %6203 = vmatprep.subr.bf16.mxu0 %v4492
        %6204 = vmatpush1.bf16.msra.mxu0 %v4491
        %6205 = vmatprep.subr.bf16.mxu0 %v4494
        %6206 = vmatpush1.bf16.msra.mxu0 %v4493
        %6207 = vmatprep.subr.bf16.mxu0 %v4496
        %6208 = vmatpush1.bf16.msra.mxu0 %v4495
        %6209 = vmatprep.subr.bf16.mxu0 %v4498
        %6210 = vmatpush1.bf16.msra.mxu0 %v4497
        %6211 = vmatprep.subr.bf16.mxu0 %v4500
        %6212 = vmatpush1.bf16.msra.mxu0 %v4499
        %6213 = vmatprep.subr.bf16.mxu0 %v4502
        %6214 = vmatpush1.bf16.msra.mxu0 %v4501
        %6215 = vmatprep.subr.bf16.mxu0 %v4504
        %6216 = vmatpush1.bf16.msra.mxu0 %v4503
        %6217 = vmatprep.subr.bf16.mxu0 %v4506
        %6218 = vmatpush1.bf16.msra.mxu0 %v4505
        %6219 = vmatprep.subr.bf16.mxu0 %v4508
        %6220 = vmatpush1.bf16.msra.mxu0 %v4507
        %6221 = vmatprep.subr.bf16.mxu0 %v4510
        %6222 = vmatpush1.bf16.msra.mxu0 %v4509
        %6223 = vmatprep.subr.bf16.mxu0 %v4512
        %6224 = vmatpush1.bf16.msra.mxu0 %v4511
        %6225 = vmatprep.subr.bf16.mxu0 %v4514
        %6226 = vmatpush1.bf16.msra.mxu0 %v4513
        %6227 = vmatprep.subr.bf16.mxu0 %v4516
        %6228 = vmatpush1.bf16.msra.mxu0 %v4515
        %6229 = vmatprep.mubr.bf16.mxu0 %v1497
        %6230 = vmatmul.mubr.bf16.gmra.mrb[0].mxu0 %v1483
        %v6231 = vpop.f32.mrb[0].mxu0
        %v6232 = vadd.f32 %v6191, %v6231
        %v6233 = vpop.f32.mrb[0].mxu0
        %v6234 = vadd.f32 %v6193, %v6233
        %v6235 = vpop.f32.mrb[0].mxu0
        %v6236 = vpop.f32.mrb[0].mxu0
        %6237 = vdwg.mxu0
        %6238 = vmatprep.subr.bf16.mxu0 %v4518
        %6239 = vmatpush1.bf16.msra.mxu0 %v4517
        %6240 = vmatprep.subr.bf16.mxu0 %v4520
        %6241 = vmatpush1.bf16.msra.mxu0 %v4519
        %6242 = vmatprep.subr.bf16.mxu0 %v4522
        %6243 = vmatpush1.bf16.msra.mxu0 %v4521
        %6244 = vmatprep.subr.bf16.mxu0 %v4524
        %6245 = vmatpush1.bf16.msra.mxu0 %v4523
        %6246 = vmatprep.subr.bf16.mxu0 %v4526
        %6247 = vmatpush1.bf16.msra.mxu0 %v4525
        %6248 = vmatprep.subr.bf16.mxu0 %v4528
        %6249 = vmatpush1.bf16.msra.mxu0 %v4527
        %6250 = vmatprep.subr.bf16.mxu0 %v4530
        %6251 = vmatpush1.bf16.msra.mxu0 %v4529
        %6252 = vmatprep.subr.bf16.mxu0 %v4532
        %6253 = vmatpush1.bf16.msra.mxu0 %v4531
        %6254 = vmatprep.subr.bf16.mxu0 %v4534
        %6255 = vmatpush1.bf16.msra.mxu0 %v4533
        %6256 = vmatprep.subr.bf16.mxu0 %v4536
        %6257 = vmatpush1.bf16.msra.mxu0 %v4535
        %6258 = vmatprep.subr.bf16.mxu0 %v4538
        %6259 = vmatpush1.bf16.msra.mxu0 %v4537
        %6260 = vmatprep.subr.bf16.mxu0 %v4540
        %6261 = vmatpush1.bf16.msra.mxu0 %v4539
        %6262 = vmatprep.subr.bf16.mxu0 %v4542
        %6263 = vmatpush1.bf16.msra.mxu0 %v4541
        %6264 = vmatprep.subr.bf16.mxu0 %v4544
        %6265 = vmatpush1.bf16.msra.mxu0 %v4543
        %6266 = vmatprep.subr.bf16.mxu0 %v4546
        %6267 = vmatpush1.bf16.msra.mxu0 %v4545
        %6268 = vmatprep.subr.bf16.mxu0 %v4548
        %6269 = vmatpush1.bf16.msra.mxu0 %v4547
        %6270 = vmatprep.mubr.bf16.mxu0 %v1507
        %6271 = vmatmul.mubr.bf16.gmra.mrb[0].mxu0 %v1505
        %v6272 = vpop.f32.mrb[0].mxu0
        %v6273 = vadd.f32 %v6232, %v6272
        %v6274 = vpop.f32.mrb[0].mxu0
        %v6275 = vadd.f32 %v6234, %v6274
        %v6276 = vpop.f32.mrb[0].mxu0
        %v6277 = vpop.f32.mrb[0].mxu0
        %6278 = vdwg.mxu0
        %6279 = vmatprep.subr.bf16.mxu0 %v4550
        %6280 = vmatpush1.bf16.msra.mxu0 %v4549
        %6281 = vmatprep.subr.bf16.mxu0 %v4552
        %6282 = vmatpush1.bf16.msra.mxu0 %v4551
        %6283 = vmatprep.subr.bf16.mxu0 %v4554
        %6284 = vmatpush1.bf16.msra.mxu0 %v4553
        %6285 = vmatprep.subr.bf16.mxu0 %v4556
        %6286 = vmatpush1.bf16.msra.mxu0 %v4555
        %6287 = vmatprep.subr.bf16.mxu0 %v4558
        %6288 = vmatpush1.bf16.msra.mxu0 %v4557
        %6289 = vmatprep.subr.bf16.mxu0 %v4560
        %6290 = vmatpush1.bf16.msra.mxu0 %v4559
        %6291 = vmatprep.subr.bf16.mxu0 %v4562
        %6292 = vmatpush1.bf16.msra.mxu0 %v4561
        %6293 = vmatprep.subr.bf16.mxu0 %v4564
        %6294 = vmatpush1.bf16.msra.mxu0 %v4563
        %6295 = vmatprep.subr.bf16.mxu0 %v4566
        %6296 = vmatpush1.bf16.msra.mxu0 %v4565
        %6297 = vmatprep.subr.bf16.mxu0 %v4568
        %6298 = vmatpush1.bf16.msra.mxu0 %v4567
        %6299 = vmatprep.subr.bf16.mxu0 %v4570
        %6300 = vmatpush1.bf16.msra.mxu0 %v4569
        %6301 = vmatprep.subr.bf16.mxu0 %v4572
        %6302 = vmatpush1.bf16.msra.mxu0 %v4571
        %6303 = vmatprep.subr.bf16.mxu0 %v4574
        %6304 = vmatpush1.bf16.msra.mxu0 %v4573
        %6305 = vmatprep.subr.bf16.mxu0 %v4576
        %6306 = vmatpush1.bf16.msra.mxu0 %v4575
        %6307 = vmatprep.subr.bf16.mxu0 %v4578
        %6308 = vmatpush1.bf16.msra.mxu0 %v4577
        %6309 = vmatprep.subr.bf16.mxu0 %v4580
        %6310 = vmatpush1.bf16.msra.mxu0 %v4579
        %6311 = vmatprep.mubr.bf16.mxu0 %v1504
        %6312 = vmatmul.mubr.bf16.gmra.mrb[0].mxu0 %v1490
        %v6313 = vpop.f32.mrb[0].mxu0
        %v6314 = vadd.f32 %v6273, %v6313
        %v6315 = vpop.f32.mrb[0].mxu0
        %v6316 = vadd.f32 %v6275, %v6315
        %v6317 = vpop.f32.mrb[0].mxu0
        %v6318 = vpop.f32.mrb[0].mxu0
        %6319 = vdwg.mxu0
        %6320 = vmatprep.subr.bf16.mxu0 %v4582
        %6321 = vmatpush1.bf16.msra.mxu0 %v4581
        %6322 = vmatprep.subr.bf16.mxu0 %v4584
        %6323 = vmatpush1.bf16.msra.mxu0 %v4583
        %6324 = vmatprep.subr.bf16.mxu0 %v4586
        %6325 = vmatpush1.bf16.msra.mxu0 %v4585
        %6326 = vmatprep.subr.bf16.mxu0 %v4588
        %6327 = vmatpush1.bf16.msra.mxu0 %v4587
        %6328 = vmatprep.subr.bf16.mxu0 %v4590
        %6329 = vmatpush1.bf16.msra.mxu0 %v4589
        %6330 = vmatprep.subr.bf16.mxu0 %v4592
        %6331 = vmatpush1.bf16.msra.mxu0 %v4591
        %6332 = vmatprep.subr.bf16.mxu0 %v4594
        %6333 = vmatpush1.bf16.msra.mxu0 %v4593
        %6334 = vmatprep.subr.bf16.mxu0 %v4596
        %6335 = vmatpush1.bf16.msra.mxu0 %v4595
        %6336 = vmatprep.subr.bf16.mxu0 %v4598
        %6337 = vmatpush1.bf16.msra.mxu0 %v4597
        %6338 = vmatprep.subr.bf16.mxu0 %v4600
        %6339 = vmatpush1.bf16.msra.mxu0 %v4599
        %6340 = vmatprep.subr.bf16.mxu0 %v4602
        %6341 = vmatpush1.bf16.msra.mxu0 %v4601
        %6342 = vmatprep.subr.bf16.mxu0 %v4604
        %6343 = vmatpush1.bf16.msra.mxu0 %v4603
        %6344 = vmatprep.subr.bf16.mxu0 %v4606
        %6345 = vmatpush1.bf16.msra.mxu0 %v4605
        %6346 = vmatprep.subr.bf16.mxu0 %v4608
        %6347 = vmatpush1.bf16.msra.mxu0 %v4607
        %6348 = vmatprep.subr.bf16.mxu0 %v4610
        %6349 = vmatpush1.bf16.msra.mxu0 %v4609
        %6350 = vmatprep.subr.bf16.mxu0 %v4612
        %6351 = vmatpush1.bf16.msra.mxu0 %v4611
        %6352 = vmatprep.mubr.bf16.mxu0 %v1508
        %6353 = vmatmul.mubr.bf16.gmra.mrb[0].mxu0 %v1506
        %v6354 = vpop.f32.mrb[0].mxu0
        %v6355 = vadd.f32 %v6314, %v6354
        %v6356 = vpop.f32.mrb[0].mxu0
        %v6357 = vadd.f32 %v6316, %v6356
        %v6358 = vpop.f32.mrb[0].mxu0
        %v6359 = vpop.f32.mrb[0].mxu0
        %6360 = vdwg.mxu0
        %6361 = vmatprep.subr.bf16.mxu0 %v4614
        %6362 = vmatpush1.bf16.msra.mxu0 %v4613
        %6363 = vmatprep.subr.bf16.mxu0 %v4616
        %6364 = vmatpush1.bf16.msra.mxu0 %v4615
        %6365 = vmatprep.subr.bf16.mxu0 %v4618
        %6366 = vmatpush1.bf16.msra.mxu0 %v4617
        %6367 = vmatprep.subr.bf16.mxu0 %v4620
        %6368 = vmatpush1.bf16.msra.mxu0 %v4619
        %6369 = vmatprep.subr.bf16.mxu0 %v4622
        %6370 = vmatpush1.bf16.msra.mxu0 %v4621
        %6371 = vmatprep.subr.bf16.mxu0 %v4624
        %6372 = vmatpush1.bf16.msra.mxu0 %v4623
        %6373 = vmatprep.subr.bf16.mxu0 %v4626
        %6374 = vmatpush1.bf16.msra.mxu0 %v4625
        %6375 = vmatprep.subr.bf16.mxu0 %v4628
        %6376 = vmatpush1.bf16.msra.mxu0 %v4627
        %6377 = vmatprep.subr.bf16.mxu0 %v4630
        %6378 = vmatpush1.bf16.msra.mxu0 %v4629
        %6379 = vmatprep.subr.bf16.mxu0 %v4632
        %6380 = vmatpush1.bf16.msra.mxu0 %v4631
        %6381 = vmatprep.subr.bf16.mxu0 %v4634
        %6382 = vmatpush1.bf16.msra.mxu0 %v4633
        %6383 = vmatprep.subr.bf16.mxu0 %v4636
        %6384 = vmatpush1.bf16.msra.mxu0 %v4635
        %6385 = vmatprep.subr.bf16.mxu0 %v4638
        %6386 = vmatpush1.bf16.msra.mxu0 %v4637
        %6387 = vmatprep.subr.bf16.mxu0 %v4640
        %6388 = vmatpush1.bf16.msra.mxu0 %v4639
        %6389 = vmatprep.subr.bf16.mxu0 %v4642
        %6390 = vmatpush1.bf16.msra.mxu0 %v4641
        %6391 = vmatprep.subr.bf16.mxu0 %v4644
        %6392 = vmatpush1.bf16.msra.mxu0 %v4643
        %6393 = vmatprep.mubr.bf16.mxu0 %v1546
        %6394 = vmatmul.mubr.bf16.gmra.mrb[0].mxu0 %v1532
        %v6395 = vpop.f32.mrb[0].mxu0
        %v6396 = vadd.f32 %v6355, %v6395
        %v6397 = vpop.f32.mrb[0].mxu0
        %v6398 = vadd.f32 %v6357, %v6397
        %v6399 = vpop.f32.mrb[0].mxu0
        %v6400 = vpop.f32.mrb[0].mxu0
        %6401 = vdwg.mxu0
        %6402 = vmatprep.subr.bf16.mxu0 %v4646
        %6403 = vmatpush1.bf16.msra.mxu0 %v4645
        %6404 = vmatprep.subr.bf16.mxu0 %v4648
        %6405 = vmatpush1.bf16.msra.mxu0 %v4647
        %6406 = vmatprep.subr.bf16.mxu0 %v4650
        %6407 = vmatpush1.bf16.msra.mxu0 %v4649
        %6408 = vmatprep.subr.bf16.mxu0 %v4652
        %6409 = vmatpush1.bf16.msra.mxu0 %v4651
        %6410 = vmatprep.subr.bf16.mxu0 %v4654
        %6411 = vmatpush1.bf16.msra.mxu0 %v4653
        %6412 = vmatprep.subr.bf16.mxu0 %v4656
        %6413 = vmatpush1.bf16.msra.mxu0 %v4655
        %6414 = vmatprep.subr.bf16.mxu0 %v4658
        %6415 = vmatpush1.bf16.msra.mxu0 %v4657
        %6416 = vmatprep.subr.bf16.mxu0 %v4660
        %6417 = vmatpush1.bf16.msra.mxu0 %v4659
        %6418 = vmatprep.subr.bf16.mxu0 %v4662
        %6419 = vmatpush1.bf16.msra.mxu0 %v4661
        %6420 = vmatprep.subr.bf16.mxu0 %v4664
        %6421 = vmatpush1.bf16.msra.mxu0 %v4663
        %6422 = vmatprep.subr.bf16.mxu0 %v4666
        %6423 = vmatpush1.bf16.msra.mxu0 %v4665
        %6424 = vmatprep.subr.bf16.mxu0 %v4668
        %6425 = vmatpush1.bf16.msra.mxu0 %v4667
        %6426 = vmatprep.subr.bf16.mxu0 %v4670
        %6427 = vmatpush1.bf16.msra.mxu0 %v4669
        %6428 = vmatprep.subr.bf16.mxu0 %v4672
        %6429 = vmatpush1.bf16.msra.mxu0 %v4671
        %6430 = vmatprep.subr.bf16.mxu0 %v4674
        %6431 = vmatpush1.bf16.msra.mxu0 %v4673
        %6432 = vmatprep.subr.bf16.mxu0 %v4676
        %6433 = vmatpush1.bf16.msra.mxu0 %v4675
        %6434 = vmatprep.mubr.bf16.mxu0 %v1556
        %6435 = vmatmul.mubr.bf16.gmra.mrb[0].mxu0 %v1554
        %v6436 = vpop.f32.mrb[0].mxu0
        %v6437 = vadd.f32 %v6396, %v6436
        %v6438 = vpop.f32.mrb[0].mxu0
        %v6439 = vadd.f32 %v6398, %v6438
        %v6440 = vpop.f32.mrb[0].mxu0
        %v6441 = vpop.f32.mrb[0].mxu0
        %6442 = vdwg.mxu0
        %6443 = vmatprep.subr.bf16.mxu0 %v4678
        %6444 = vmatpush1.bf16.msra.mxu0 %v4677
        %6445 = vmatprep.subr.bf16.mxu0 %v4680
        %6446 = vmatpush1.bf16.msra.mxu0 %v4679
        %6447 = vmatprep.subr.bf16.mxu0 %v4682
        %6448 = vmatpush1.bf16.msra.mxu0 %v4681
        %6449 = vmatprep.subr.bf16.mxu0 %v4684
        %6450 = vmatpush1.bf16.msra.mxu0 %v4683
        %6451 = vmatprep.subr.bf16.mxu0 %v4686
        %6452 = vmatpush1.bf16.msra.mxu0 %v4685
        %6453 = vmatprep.subr.bf16.mxu0 %v4688
        %6454 = vmatpush1.bf16.msra.mxu0 %v4687
        %6455 = vmatprep.subr.bf16.mxu0 %v4690
        %6456 = vmatpush1.bf16.msra.mxu0 %v4689
        %6457 = vmatprep.subr.bf16.mxu0 %v4692
        %6458 = vmatpush1.bf16.msra.mxu0 %v4691
        %6459 = vmatprep.subr.bf16.mxu0 %v4694
        %6460 = vmatpush1.bf16.msra.mxu0 %v4693
        %6461 = vmatprep.subr.bf16.mxu0 %v4696
        %6462 = vmatpush1.bf16.msra.mxu0 %v4695
        %6463 = vmatprep.subr.bf16.mxu0 %v4698
        %6464 = vmatpush1.bf16.msra.mxu0 %v4697
        %6465 = vmatprep.subr.bf16.mxu0 %v4700
        %6466 = vmatpush1.bf16.msra.mxu0 %v4699
        %6467 = vmatprep.subr.bf16.mxu0 %v4702
        %6468 = vmatpush1.bf16.msra.mxu0 %v4701
        %6469 = vmatprep.subr.bf16.mxu0 %v4704
        %6470 = vmatpush1.bf16.msra.mxu0 %v4703
        %6471 = vmatprep.subr.bf16.mxu0 %v4706
        %6472 = vmatpush1.bf16.msra.mxu0 %v4705
        %6473 = vmatprep.subr.bf16.mxu0 %v4708
        %6474 = vmatpush1.bf16.msra.mxu0 %v4707
        %6475 = vmatprep.mubr.bf16.mxu0 %v1553
        %6476 = vmatmul.mubr.bf16.gmra.mrb[0].mxu0 %v1539
        %v6477 = vpop.f32.mrb[0].mxu0
        %v6478 = vadd.f32 %v6437, %v6477
        %v6479 = vpop.f32.mrb[0].mxu0
        %v6480 = vadd.f32 %v6439, %v6479
        %v6481 = vpop.f32.mrb[0].mxu0
        %v6482 = vpop.f32.mrb[0].mxu0
        %6483 = vdwg.mxu0
        %6484 = vmatprep.subr.bf16.mxu0 %v4710
        %6485 = vmatpush1.bf16.msra.mxu0 %v4709
        %6486 = vmatprep.subr.bf16.mxu0 %v4712
        %6487 = vmatpush1.bf16.msra.mxu0 %v4711
        %6488 = vmatprep.subr.bf16.mxu0 %v4714
        %6489 = vmatpush1.bf16.msra.mxu0 %v4713
        %6490 = vmatprep.subr.bf16.mxu0 %v4716
        %6491 = vmatpush1.bf16.msra.mxu0 %v4715
        %6492 = vmatprep.subr.bf16.mxu0 %v4718
        %6493 = vmatpush1.bf16.msra.mxu0 %v4717
        %6494 = vmatprep.subr.bf16.mxu0 %v4720
        %6495 = vmatpush1.bf16.msra.mxu0 %v4719
        %6496 = vmatprep.subr.bf16.mxu0 %v4722
        %6497 = vmatpush1.bf16.msra.mxu0 %v4721
        %6498 = vmatprep.subr.bf16.mxu0 %v4724
        %6499 = vmatpush1.bf16.msra.mxu0 %v4723
        %6500 = vmatprep.subr.bf16.mxu0 %v4726
        %6501 = vmatpush1.bf16.msra.mxu0 %v4725
        %6502 = vmatprep.subr.bf16.mxu0 %v4728
        %6503 = vmatpush1.bf16.msra.mxu0 %v4727
        %6504 = vmatprep.subr.bf16.mxu0 %v4730
        %6505 = vmatpush1.bf16.msra.mxu0 %v4729
        %6506 = vmatprep.subr.bf16.mxu0 %v4732
        %6507 = vmatpush1.bf16.msra.mxu0 %v4731
        %6508 = vmatprep.subr.bf16.mxu0 %v4734
        %6509 = vmatpush1.bf16.msra.mxu0 %v4733
        %6510 = vmatprep.subr.bf16.mxu0 %v4736
        %6511 = vmatpush1.bf16.msra.mxu0 %v4735
        %6512 = vmatprep.subr.bf16.mxu0 %v4738
        %6513 = vmatpush1.bf16.msra.mxu0 %v4737
        %6514 = vmatprep.subr.bf16.mxu0 %v4740
        %6515 = vmatpush1.bf16.msra.mxu0 %v4739
        %6516 = vmatprep.mubr.bf16.mxu0 %v1557
        %6517 = vmatmul.mubr.bf16.gmra.mrb[0].mxu0 %v1555
        %v6518 = vpop.f32.mrb[0].mxu0
        %v6519 = vadd.f32 %v6478, %v6518
        %v6520 = vpop.f32.mrb[0].mxu0
        %v6521 = vadd.f32 %v6480, %v6520
        %v6522 = vpop.f32.mrb[0].mxu0
        %v6523 = vpop.f32.mrb[0].mxu0
        %6524 = vdwg.mxu0
        %6525 = vmatprep.subr.bf16.mxu0 %v4742
        %6526 = vmatpush1.bf16.msra.mxu0 %v4741
        %6527 = vmatprep.subr.bf16.mxu0 %v4744
        %6528 = vmatpush1.bf16.msra.mxu0 %v4743
        %6529 = vmatprep.subr.bf16.mxu0 %v4746
        %6530 = vmatpush1.bf16.msra.mxu0 %v4745
        %6531 = vmatprep.subr.bf16.mxu0 %v4748
        %6532 = vmatpush1.bf16.msra.mxu0 %v4747
        %6533 = vmatprep.subr.bf16.mxu0 %v4750
        %6534 = vmatpush1.bf16.msra.mxu0 %v4749
        %6535 = vmatprep.subr.bf16.mxu0 %v4752
        %6536 = vmatpush1.bf16.msra.mxu0 %v4751
        %6537 = vmatprep.subr.bf16.mxu0 %v4754
        %6538 = vmatpush1.bf16.msra.mxu0 %v4753
        %6539 = vmatprep.subr.bf16.mxu0 %v4756
        %6540 = vmatpush1.bf16.msra.mxu0 %v4755
        %6541 = vmatprep.subr.bf16.mxu0 0
        %6542 = vmatpush1.bf16.msra.mxu0 0
        %6543 = vmatprep.subr.bf16.mxu0 0
        %6544 = vmatpush1.bf16.msra.mxu0 0
        %6545 = vmatprep.subr.bf16.mxu0 0
        %6546 = vmatpush1.bf16.msra.mxu0 0
        %6547 = vmatprep.subr.bf16.mxu0 0
        %6548 = vmatpush1.bf16.msra.mxu0 0
        %6549 = vmatprep.subr.bf16.mxu0 0
        %6550 = vmatpush1.bf16.msra.mxu0 0
        %6551 = vmatprep.subr.bf16.mxu0 0
        %6552 = vmatpush1.bf16.msra.mxu0 0
        %6553 = vmatprep.subr.bf16.mxu0 0
        %6554 = vmatpush1.bf16.msra.mxu0 0
        %6555 = vmatprep.subr.bf16.mxu0 0
        %6556 = vmatpush1.bf16.msra.mxu0 0
        %6557 = vmatprep.mubr.bf16.mxu0 0
        %6558 = vmatmul.mubr.bf16.gmra.mrb[0].mxu0 %v1571
        %v6559 = vpop.f32.mrb[0].mxu0
        %v6560 = vadd.f32 %v6519, %v6559
        %v6561 = vpop.f32.mrb[0].mxu0
        %v6562 = vadd.f32 %v6521, %v6561
        %v6563 = vpop.f32.mrb[0].mxu0
        %v6564 = vpop.f32.mrb[0].mxu0
        %6565 = vdwg.mxu0
        %v6568 = vcombine.low %v6560, %v6562
        %v6570 = vunpack.c.l.s4 1983009808
        %v6571 = vunpack.c.0.s8 %v6570
        %v6572 = vlaneseq
        %v6573 = vshrl.u32 %v6572, 7
        %v6574 = vsub.s32 %v6571, %v6573
        %v6575 = vrot.slane %v6568, %v6574
        %v6577 = vadd.f32 %v465, %v6575
        %6578 = vst [vmem:[#allocation2] sm:$0xf] %v6577
        %p6579 = scmp.eq.s32.totalorder %s30, 3
        // Predicated region
        $region93: #{tpu_custom_call.1} parent=55 // pred_check
          %p6580 = pneg %p6579
        $region94: #{tpu_custom_call.1} parent=55 // pred_check_branch
          %6582 = sbr.rel (%p6580) target = $region96
        $region95: #{tpu_custom_call.1} parent=55 // pred_region
          %v6583 = vld [vmem:[#allocation2] sm:$0xf]
          %v6584 = vld [vmem:[#allocation8] sm:$0x3]
          %v6586 = vlaneseq
          %v6587 = vshrl.u32 %v6586, 7
          %v6588 = vsub.s32 0, %v6587
          %v6589 = vrot.slane %v6584, %v6588
          %v6590 = vlaneseq
          %v6591 = vshrl.u32 %v6590, 7
          %v6592 = vsub.s32 1, %v6591
          %v6593 = vrot.slane %v6584, %v6592
          %v6594 = vcombine.low %v6589, %v6593
          %v6596 = vunpack.c.l.s4 1983009808
          %v6597 = vunpack.c.0.s8 %v6596
          %v6598 = vlaneseq
          %v6599 = vshrl.u32 %v6598, 7
          %v6600 = vsub.s32 %v6597, %v6599
          %v6601 = vrot.slane %v6594, %v6600
          %v6603 = vadd.f32 %v6583, %v6601
          %vm6604 = vcmp.gt.f32.partialorder %v6603, 0.0
          %v6605 = vmul.f32 %v6603, 0.01
          %v6606 = vsel %vm6604, %v6603, %v6605
          %v6607 = vld [vmem:[#allocation9] sm:$0xff]
          %v6608 = vld [vmem:[#allocation9 + $0x8] sm:$0xff]
          %v6609 = vld [vmem:[#allocation9 + $0x10] sm:$0xff]
          %v6610 = vld [vmem:[#allocation9 + $0x18] sm:$0xff]
          %v6611 = vld [vmem:[#allocation9 + $0x20] sm:$0xff]
          %v6612 = vld [vmem:[#allocation9 + $0x28] sm:$0xff]
          %v6613 = vld [vmem:[#allocation9 + $0x30] sm:$0xff]
          %v6614 = vld [vmem:[#allocation9 + $0x38] sm:$0xff]
          %v6615 = vld [vmem:[#allocation9 + $0x40] sm:$0xff]
          %v6616 = vld [vmem:[#allocation9 + $0x48] sm:$0xff]
          %v6617 = vld [vmem:[#allocation9 + $0x50] sm:$0xff]
          %v6618 = vld [vmem:[#allocation9 + $0x58] sm:$0xff]
          %v6619 = vld [vmem:[#allocation9 + $0x60] sm:$0xff]
          %v6620 = vld [vmem:[#allocation9 + $0x68] sm:$0xff]
          %v6621 = vld [vmem:[#allocation9 + $0x70] sm:$0xff]
          %v6622 = vld [vmem:[#allocation9 + $0x78] sm:$0xff]
          %v6623 = vld [vmem:[#allocation9 + $0x80] sm:$0xff]
          %v6624 = vld [vmem:[#allocation9 + $0x88] sm:$0xff]
          %v6625 = vld [vmem:[#allocation9 + $0x90] sm:$0xff]
          %v6626 = vld [vmem:[#allocation9 + $0x98] sm:$0xff]
          %v6627 = vld [vmem:[#allocation9 + $0xa0] sm:$0xff]
          %v6628 = vld [vmem:[#allocation9 + $0xa8] sm:$0xff]
          %v6629 = vld [vmem:[#allocation9 + $0xb0] sm:$0xff]
          %v6630 = vld [vmem:[#allocation9 + $0xb8] sm:$0xff]
          %v6631 = vld [vmem:[#allocation9 + $0xc0] sm:$0xff]
          %v6632 = vld [vmem:[#allocation9 + $0xc8] sm:$0xff]
          %v6633 = vld [vmem:[#allocation9 + $0xd0] sm:$0xff]
          %v6634 = vld [vmem:[#allocation9 + $0xd8] sm:$0xff]
          %v6635 = vld [vmem:[#allocation9 + $0xe0] sm:$0xff]
          %v6636 = vld [vmem:[#allocation9 + $0xe8] sm:$0xff]
          %v6637 = vld [vmem:[#allocation9 + $0xf0] sm:$0xff]
          %v6638 = vld [vmem:[#allocation9 + $0xf8] sm:$0xff]
          %v6639 = vld [vmem:[#allocation11] sm:$0x1]
          %v6641 = vlaneseq
          %v6642 = vshrl.u32 %v6641, 7
          %v6643 = vsub.s32 0, %v6642
          %v6644 = vrot.slane %v6639, %v6643
          %v6648 = vunpack.c.l.s4 1983009808
          %v6649 = vunpack.c.0.s8 %v6648
          %v6650 = vlaneseq
          %v6651 = vshrl.u32 %v6650, 7
          %v6652 = vsub.s32 %v6649, %v6651
          %v6653 = vrot.slane %v6606, %v6652
          %v6654 = vcombine.high %v6653, %v6653
          %6657 = vmatprep.subr.mxu0 0.0
          %6658 = vmatpush1.msra.mxu0 %v6607
          %6659 = vmatprep.subr.mxu0 0.0
          %6660 = vmatpush1.msra.mxu0 %v6608
          %6661 = vmatprep.subr.mxu0 0.0
          %6662 = vmatpush1.msra.mxu0 %v6609
          %6663 = vmatprep.subr.mxu0 0.0
          %6664 = vmatpush1.msra.mxu0 %v6610
          %6665 = vmatprep.subr.mxu0 0.0
          %6666 = vmatpush1.msra.mxu0 %v6611
          %6667 = vmatprep.subr.mxu0 0.0
          %6668 = vmatpush1.msra.mxu0 %v6612
          %6669 = vmatprep.subr.mxu0 0.0
          %6670 = vmatpush1.msra.mxu0 %v6613
          %6671 = vmatprep.subr.mxu0 0.0
          %6672 = vmatpush1.msra.mxu0 %v6614
          %6673 = vmatprep.subr.mxu0 0.0
          %6674 = vmatpush1.msra.mxu0 %v6615
          %6675 = vmatprep.subr.mxu0 0.0
          %6676 = vmatpush1.msra.mxu0 %v6616
          %6677 = vmatprep.subr.mxu0 0.0
          %6678 = vmatpush1.msra.mxu0 %v6617
          %6679 = vmatprep.subr.mxu0 0.0
          %6680 = vmatpush1.msra.mxu0 %v6618
          %6681 = vmatprep.subr.mxu0 0.0
          %6682 = vmatpush1.msra.mxu0 %v6619
          %6683 = vmatprep.subr.mxu0 0.0
          %6684 = vmatpush1.msra.mxu0 %v6620
          %6685 = vmatprep.subr.mxu0 0.0
          %6686 = vmatpush1.msra.mxu0 %v6621
          %6687 = vmatprep.subr.mxu0 0.0
          %6688 = vmatpush1.msra.mxu0 %v6622
          %6689 = vmatprep.subr.mxu0 0.0
          %6690 = vmatpush1.msra.mxu0 %v6623
          %6691 = vmatprep.subr.mxu0 0.0
          %6692 = vmatpush1.msra.mxu0 %v6624
          %6693 = vmatprep.subr.mxu0 0.0
          %6694 = vmatpush1.msra.mxu0 %v6625
          %6695 = vmatprep.subr.mxu0 0.0
          %6696 = vmatpush1.msra.mxu0 %v6626
          %6697 = vmatprep.subr.mxu0 0.0
          %6698 = vmatpush1.msra.mxu0 %v6627
          %6699 = vmatprep.subr.mxu0 0.0
          %6700 = vmatpush1.msra.mxu0 %v6628
          %6701 = vmatprep.subr.mxu0 0.0
          %6702 = vmatpush1.msra.mxu0 %v6629
          %6703 = vmatprep.subr.mxu0 0.0
          %6704 = vmatpush1.msra.mxu0 %v6630
          %6705 = vmatprep.subr.mxu0 0.0
          %6706 = vmatpush1.msra.mxu0 %v6631
          %6707 = vmatprep.subr.mxu0 0.0
          %6708 = vmatpush1.msra.mxu0 %v6632
          %6709 = vmatprep.subr.mxu0 0.0
          %6710 = vmatpush1.msra.mxu0 %v6633
          %6711 = vmatprep.subr.mxu0 0.0
          %6712 = vmatpush1.msra.mxu0 %v6634
          %6713 = vmatprep.subr.mxu0 0.0
          %6714 = vmatpush1.msra.mxu0 %v6635
          %6715 = vmatprep.subr.mxu0 0.0
          %6716 = vmatpush1.msra.mxu0 %v6636
          %6717 = vmatprep.subr.mxu0 0.0
          %6718 = vmatpush1.msra.mxu0 %v6637
          %6719 = vmatprep.subr.mxu0 0.0
          %6720 = vmatpush1.msra.mxu0 %v6638
          %6721 = vmatprep.mubr.f32.mxu0 %v6654
          %6722 = vmatmul.mubr.f32.gmra.mrb[0].mxu0 %v6653
          %v6723 = vpop.f32.mrb[0].mxu0
          %v6724 = vadd.f32 %v6644, %v6723
          %v6725 = vpop.f32.mrb[0].mxu0
          %6726 = vdwg.mxu0
          %vm6727 = vcmp.gt.f32.partialorder %v6724, 0.0
          %v6728 = vmul.f32 %v6724, 0.01
          %v6729 = vsel %vm6727, %v6724, %v6728
          %v6730 = vld [vmem:[%s5] sm:$0xff]
          %v6731 = vld [vmem:[%s5 + $0x8] sm:$0xff]
          %v6732 = vld [vmem:[%s5 + $0x10] sm:$0xff]
          %v6733 = vld [vmem:[%s5 + $0x18] sm:$0xff]
          %v6734 = vld [vmem:[%s5 + $0x20] sm:$0xff]
          %v6735 = vld [vmem:[%s5 + $0x28] sm:$0xff]
          %v6736 = vld [vmem:[%s5 + $0x30] sm:$0xff]
          %v6737 = vld [vmem:[%s5 + $0x38] sm:$0xff]
          %v6738 = vld [vmem:[%s5 + $0x40] sm:$0xff]
          %v6739 = vld [vmem:[%s5 + $0x48] sm:$0xff]
          %v6740 = vld [vmem:[%s5 + $0x50] sm:$0xff]
          %v6741 = vld [vmem:[%s5 + $0x58] sm:$0xff]
          %v6742 = vld [vmem:[%s5 + $0x60] sm:$0xff]
          %v6743 = vld [vmem:[%s5 + $0x68] sm:$0xff]
          %v6744 = vld [vmem:[%s5 + $0x70] sm:$0xff]
          %v6745 = vld [vmem:[%s5 + $0x78] sm:$0xff]
          %v6746 = vld [vmem:[#allocation12] sm:$0x1]
          %v6748 = vlaneseq
          %v6749 = vshrl.u32 %v6748, 7
          %v6750 = vsub.s32 0, %v6749
          %v6751 = vrot.slane %v6746, %v6750
          %6753 = vmatprep.subr.mxu0 0.0
          %6754 = vmatpush1.msra.mxu0 %v6730
          %6755 = vmatprep.subr.mxu0 0.0
          %6756 = vmatpush1.msra.mxu0 %v6731
          %6757 = vmatprep.subr.mxu0 0.0
          %6758 = vmatpush1.msra.mxu0 %v6732
          %6759 = vmatprep.subr.mxu0 0.0
          %6760 = vmatpush1.msra.mxu0 %v6733
          %6761 = vmatprep.subr.mxu0 0.0
          %6762 = vmatpush1.msra.mxu0 %v6734
          %6763 = vmatprep.subr.mxu0 0.0
          %6764 = vmatpush1.msra.mxu0 %v6735
          %6765 = vmatprep.subr.mxu0 0.0
          %6766 = vmatpush1.msra.mxu0 %v6736
          %6767 = vmatprep.subr.mxu0 0.0
          %6768 = vmatpush1.msra.mxu0 %v6737
          %6769 = vmatprep.subr.mxu0 0.0
          %6770 = vmatpush1.msra.mxu0 %v6738
          %6771 = vmatprep.subr.mxu0 0.0
          %6772 = vmatpush1.msra.mxu0 %v6739
          %6773 = vmatprep.subr.mxu0 0.0
          %6774 = vmatpush1.msra.mxu0 %v6740
          %6775 = vmatprep.subr.mxu0 0.0
          %6776 = vmatpush1.msra.mxu0 %v6741
          %6777 = vmatprep.subr.mxu0 0.0
          %6778 = vmatpush1.msra.mxu0 %v6742
          %6779 = vmatprep.subr.mxu0 0.0
          %6780 = vmatpush1.msra.mxu0 %v6743
          %6781 = vmatprep.subr.mxu0 0.0
          %6782 = vmatpush1.msra.mxu0 %v6744
          %6783 = vmatprep.subr.mxu0 0.0
          %6784 = vmatpush1.msra.mxu0 %v6745
          %6785 = vmatprep.subr.mxu0 0.0
          %6786 = vmatpush1.msra.mxu0 0.0
          %6787 = vmatprep.subr.mxu0 0.0
          %6788 = vmatpush1.msra.mxu0 0.0
          %6789 = vmatprep.subr.mxu0 0.0
          %6790 = vmatpush1.msra.mxu0 0.0
          %6791 = vmatprep.subr.mxu0 0.0
          %6792 = vmatpush1.msra.mxu0 0.0
          %6793 = vmatprep.subr.mxu0 0.0
          %6794 = vmatpush1.msra.mxu0 0.0
          %6795 = vmatprep.subr.mxu0 0.0
          %6796 = vmatpush1.msra.mxu0 0.0
          %6797 = vmatprep.subr.mxu0 0.0
          %6798 = vmatpush1.msra.mxu0 0.0
          %6799 = vmatprep.subr.mxu0 0.0
          %6800 = vmatpush1.msra.mxu0 0.0
          %6801 = vmatprep.subr.mxu0 0.0
          %6802 = vmatpush1.msra.mxu0 0.0
          %6803 = vmatprep.subr.mxu0 0.0
          %6804 = vmatpush1.msra.mxu0 0.0
          %6805 = vmatprep.subr.mxu0 0.0
          %6806 = vmatpush1.msra.mxu0 0.0
          %6807 = vmatprep.subr.mxu0 0.0
          %6808 = vmatpush1.msra.mxu0 0.0
          %6809 = vmatprep.subr.mxu0 0.0
          %6810 = vmatpush1.msra.mxu0 0.0
          %6811 = vmatprep.subr.mxu0 0.0
          %6812 = vmatpush1.msra.mxu0 0.0
          %6813 = vmatprep.subr.mxu0 0.0
          %6814 = vmatpush1.msra.mxu0 0.0
          %6815 = vmatprep.subr.mxu0 0.0
          %6816 = vmatpush1.msra.mxu0 0.0
          %6817 = vmatprep.mubr.f32.mxu0 0.0
          %6818 = vmatmul.mubr.f32.gmra.mrb[0].mxu0 %v6729
          %v6819 = vpop.f32.mrb[0].mxu0
          %v6820 = vadd.f32 %v6751, %v6819
          %v6821 = vpop.f32.mrb[0].mxu0
          %6822 = vdwg.mxu0
          %vm6823 = vcmp.gt.f32.partialorder %v6820, 0.0
          %v6824 = vmul.f32 %v6820, 0.01
          %v6825 = vsel %vm6823, %v6820, %v6824
          %v6826 = vld [vmem:[#allocation14] sm:$0xff]
          %v6827 = vld [vmem:[#allocation14 + $0x8] sm:$0xff]
          %v6828 = vld [vmem:[#allocation14 + $0x10] sm:$0xff]
          %v6829 = vld [vmem:[#allocation14 + $0x18] sm:$0xff]
          %v6830 = vld [vmem:[#allocation14 + $0x20] sm:$0xff]
          %v6831 = vld [vmem:[#allocation14 + $0x28] sm:$0xff]
          %v6832 = vld [vmem:[#allocation14 + $0x30] sm:$0xff]
          %v6833 = vld [vmem:[#allocation14 + $0x38] sm:$0xff]
          %v6834 = vld [vmem:[#allocation15] sm:$0x1]
          %v6836 = vlaneseq
          %v6837 = vshrl.u32 %v6836, 7
          %v6838 = vsub.s32 0, %v6837
          %v6839 = vrot.slane %v6834, %v6838
          %vm6841 = vcmask 523264
          %v6843 = vsel %vm6841, %v6825, 0
          %6845 = vmatprep.subr.mxu0 0.0
          %6846 = vmatpush1.msra.mxu0 %v6826
          %6847 = vmatprep.subr.mxu0 0.0
          %6848 = vmatpush1.msra.mxu0 %v6827
          %6849 = vmatprep.subr.mxu0 0.0
          %6850 = vmatpush1.msra.mxu0 %v6828
          %6851 = vmatprep.subr.mxu0 0.0
          %6852 = vmatpush1.msra.mxu0 %v6829
          %6853 = vmatprep.subr.mxu0 0.0
          %6854 = vmatpush1.msra.mxu0 %v6830
          %6855 = vmatprep.subr.mxu0 0.0
          %6856 = vmatpush1.msra.mxu0 %v6831
          %6857 = vmatprep.subr.mxu0 0.0
          %6858 = vmatpush1.msra.mxu0 %v6832
          %6859 = vmatprep.subr.mxu0 0.0
          %6860 = vmatpush1.msra.mxu0 %v6833
          %6861 = vmatprep.subr.mxu0 0.0
          %6862 = vmatpush1.msra.mxu0 0.0
          %6863 = vmatprep.subr.mxu0 0.0
          %6864 = vmatpush1.msra.mxu0 0.0
          %6865 = vmatprep.subr.mxu0 0.0
          %6866 = vmatpush1.msra.mxu0 0.0
          %6867 = vmatprep.subr.mxu0 0.0
          %6868 = vmatpush1.msra.mxu0 0.0
          %6869 = vmatprep.subr.mxu0 0.0
          %6870 = vmatpush1.msra.mxu0 0.0
          %6871 = vmatprep.subr.mxu0 0.0
          %6872 = vmatpush1.msra.mxu0 0.0
          %6873 = vmatprep.subr.mxu0 0.0
          %6874 = vmatpush1.msra.mxu0 0.0
          %6875 = vmatprep.subr.mxu0 0.0
          %6876 = vmatpush1.msra.mxu0 0.0
          %6877 = vmatprep.subr.mxu0 0.0
          %6878 = vmatpush1.msra.mxu0 0.0
          %6879 = vmatprep.subr.mxu0 0.0
          %6880 = vmatpush1.msra.mxu0 0.0
          %6881 = vmatprep.subr.mxu0 0.0
          %6882 = vmatpush1.msra.mxu0 0.0
          %6883 = vmatprep.subr.mxu0 0.0
          %6884 = vmatpush1.msra.mxu0 0.0
          %6885 = vmatprep.subr.mxu0 0.0
          %6886 = vmatpush1.msra.mxu0 0.0
          %6887 = vmatprep.subr.mxu0 0.0
          %6888 = vmatpush1.msra.mxu0 0.0
          %6889 = vmatprep.subr.mxu0 0.0
          %6890 = vmatpush1.msra.mxu0 0.0
          %6891 = vmatprep.subr.mxu0 0.0
          %6892 = vmatpush1.msra.mxu0 0.0
          %6893 = vmatprep.subr.mxu0 0.0
          %6894 = vmatpush1.msra.mxu0 0.0
          %6895 = vmatprep.subr.mxu0 0.0
          %6896 = vmatpush1.msra.mxu0 0.0
          %6897 = vmatprep.subr.mxu0 0.0
          %6898 = vmatpush1.msra.mxu0 0.0
          %6899 = vmatprep.subr.mxu0 0.0
          %6900 = vmatpush1.msra.mxu0 0.0
          %6901 = vmatprep.subr.mxu0 0.0
          %6902 = vmatpush1.msra.mxu0 0.0
          %6903 = vmatprep.subr.mxu0 0.0
          %6904 = vmatpush1.msra.mxu0 0.0
          %6905 = vmatprep.subr.mxu0 0.0
          %6906 = vmatpush1.msra.mxu0 0.0
          %6907 = vmatprep.subr.mxu0 0.0
          %6908 = vmatpush1.msra.mxu0 0.0
          %6909 = vmatprep.mubr.f32.mxu0 0.0
          %6910 = vmatmul.mubr.f32.gmra.mrb[0].mxu0 %v6843
          %v6911 = vpop.f32.mrb[0].mxu0
          %v6912 = vadd.f32 %v6839, %v6911
          %v6913 = vpop.f32.mrb[0].mxu0
          %6914 = vdwg.mxu0
          %vm6915 = vcmask 1041408
          %v6916 = vsel %vm6915, %v6912, -inf
          %6917 = vmax.xlane.f32.xlu0 %v6916
          %v6918 = vpop.xlane.xlu0 %6917
          %v6919 = vsub.f32 %v6912, %v6918
          %v6920 = vmul.f32 %v6919, 1.442695
          %v6921 = vpow.pop %v6920
          %v6922 = vsel %vm6915, %v6921, 0.0
          %6923 = vadd.xlane.f32.xlu0 %v6922
          %v6924 = vpop.xlane.xlu0 %6923
          %v6925 = vlog2.pop %v6924
          %v6926 = vmul.f32 %v6925, 0.6931472
          %v6927 = vsub.f32 %v6919, %v6926
          %6928 = vst [vmem:[#allocation17] sm:$0x3] %v6927
        $region96: #{tpu_custom_call.1} parent=55 // pred_fallthru
          _
        // Predicated region
        $region97: #{tpu_custom_call.1} parent=55 // pred_check
          %p6929 = pneg %p242
        $region98: #{tpu_custom_call.1} parent=55 // pred_check_branch
          %6931 = sbr.rel (%p6929) target = $region100
        $region99: #{tpu_custom_call.1} parent=55 // pred_region
          %s6933 = ssub.s32 32, 32
          %6934 = vsyncadd [#allocation5], %s6933
          %s6936 = sshll.u32 [#allocation17], 4
          %s6937 = int_to_ptr.vmem [resolvable:$true] %s6936
          %6939 = dma.vmem_to_hbm [thread:$0]  %s6937, 32, %s9, [#allocation5]
        $region100: #{tpu_custom_call.1} parent=55 // pred_fallthru
          _
        // Predicated region
        $region101: #{tpu_custom_call.1} parent=55 // pred_check
          %p6940 = pneg %p242
        $region102: #{tpu_custom_call.1} parent=55 // pred_check_branch
          %6942 = sbr.rel (%p6940) target = $region104
        $region103: #{tpu_custom_call.1} parent=55 // pred_region
          %6943 = dma.done [#allocation5], 32
        $region104: #{tpu_custom_call.1} parent=55 // pred_fallthru
          _
      $region56: #{tpu_custom_call.1} parent=5 // pred_fallthru
        _
      %p6944 = scmp.le.s32.totalorder 2, %s25
      // Predicated region
      $region105: #{tpu_custom_call.1} parent=5 // pred_check
        %p6945 = pneg %p6944
      $region106: #{tpu_custom_call.1} parent=5 // pred_check_branch
        %6947 = sbr.rel (%p6945) target = $region108
      $region107: #{tpu_custom_call.1} parent=5 // pred_region
        %s6948 = ssub.s32 %s25, 2
      $region108: #{tpu_custom_call.1} parent=5 // pred_fallthru
        _
    $region6: #{tpu_custom_call.1} parent=1 // loop_footer
      %s29 = sadd.s32 1, %s25
    $region7: #{tpu_custom_call.1} parent=1 // loop_footer_branch
      %24 = sbr.rel target = $region3
    $region8: #{tpu_custom_call.1} parent=1 // loop_exit
      _
    %6949 = vsyncpa [#allocation4], 1
    %s6950 = scalar_lea.sflag [#allocation4], 1
    %6951 = vsyncpa %s6950, 1
    %6952 = vsyncpa [#allocation7], 1
    %s6953 = scalar_lea.sflag [#allocation7], 1
    %6954 = vsyncpa %s6953, 1
    %6955 = vsyncpa [#allocation10], 1
    %6956 = vsyncpa [#allocation13], 1
    %6957 = vsyncpa [#allocation16], 1
    %6958 = vsyncpa [#allocation5], 1
    %s6959 = scalar_lea.sflag [#allocation5], 1
    %6960 = vsyncpa %s6959, 1

</llo_original>
